<compile_context>
chip_gen: v5e
topology: v5e:2x2
jax: 0.10.0
libtpu: 0.0.40
codegen_flags: <defaults>
</compile_context>

<pallas_src>
import jax
import jax.numpy as jnp
from jax.experimental import pallas as pl
from jax.experimental.pallas import tpu as pltpu

# Explicit per-dot precisions (replaces the old global 'highest' config).
HI = jax.lax.Precision.HIGHEST
# Precision of the one-hot incidence (gather/scatter/pool) dots.  They
# dominate FLOPs at scale; the one-hots are exact in bf16, so for large
# batched graphs set this to jax.lax.Precision.DEFAULT for 1-pass bf16 MXU
# (2-6x fewer passes) at ~1e-3 relative error in the gathered features.
# Kept at HIGHEST so the demo's 1e-3 tolerance vs the f32 reference holds.
ONEHOT_PRECISION = jax.lax.Precision.HIGHEST


def _graph_layer_kernel(
    x_ref, src_ref, dst_ref, dst_row_ref, batch_row_ref, eattr_ref, invc_ref,
    w_ref, we_ae_ref, vec_ref, wl_ref,
    out_ref,
):
    f32 = jnp.float32
    n = x_ref.shape[0]          # nodes
    e = src_ref.shape[0]        # edges
    g = out_ref.shape[0]        # graphs
    d = x_ref.shape[1]          # feature dim

    # --- one-hot incidence matrices, built once and reused by both convs ---
    col_iota_en = jax.lax.broadcasted_iota(jnp.int32, (e, n), 1)
    src_oh = (src_ref[...] == col_iota_en).astype(f32)            # (E, N)
    dst_oh = (dst_ref[...] == col_iota_en).astype(f32)            # (E, N)
    row_iota_ne = jax.lax.broadcasted_iota(jnp.int32, (n, e), 0)
    dst_oh_t = (dst_row_ref[...] == row_iota_ne).astype(f32)      # (N, E)
    row_iota_gn = jax.lax.broadcasted_iota(jnp.int32, (g, n), 0)
    batch_oh_t = (batch_row_ref[...] == row_iota_gn).astype(f32)  # (G, N)

    def mm(a, b, precision):
        return jnp.dot(a, b, preferred_element_type=f32, precision=precision)

    def layer_norm(v, gamma, beta):
        mu = jnp.mean(v, axis=-1, keepdims=True)
        var = jnp.mean((v - mu) ** 2, axis=-1, keepdims=True)
        return (v - mu) * jax.lax.rsqrt(var + 1e-5) * gamma + beta

    def eagat(xv, conv):
        # One dot yields node features AND both attention-score columns
        # (W_aug = [W | W@an] folded in the wrapper).
        h_aug = mm(xv, w_ref[conv], HI)                           # (N, D+2)
        node_sc = h_aug[:, d:]                                    # (N, 2)

        # Edge score directly from edge_attr (We @ ae folded in the wrapper):
        # VPU multiply + lane reduce, no MXU round trip.
        edge_sc = jnp.sum(eattr_ref[...] * we_ae_ref[conv:conv + 1, :],
                          axis=-1, keepdims=True)                 # (E, 1)

        # Single incidence gather for source features + source score.
        h_aug_src = mm(src_oh, h_aug, ONEHOT_PRECISION)           # (E, D+2)
        h_src = h_aug_src[:, :d]                                  # (E, D)
        src_sc = h_aug_src[:, d:d + 1]                            # (E, 1)
        # Destination score: width-2 gather, take the dst column.
        dst_sc = mm(dst_oh, node_sc, ONEHOT_PRECISION)[:, 1:2]    # (E, 1)

        logits = src_sc + dst_sc + edge_sc
        logits = jnp.where(logits > 0, logits, 0.2 * logits)      # LeakyReLU(0.2)

        # Numerically stable segment softmax over destination nodes.
        masked = jnp.where(dst_oh > 0, logits, f32(-1e30))        # (E, N)
        seg_max = jnp.max(masked, axis=0, keepdims=True)          # (1, N)
        max_e = jnp.sum(dst_oh * seg_max, axis=1, keepdims=True)  # (E, 1)
        ex = jnp.exp(logits - max_e)                              # (E, 1)

        # Scatter messages and the softmax denominator in ONE dot; the
        # normalization only depends on the destination node so it is pulled
        # out of the edge sum and applied per node afterwards.
        msg_aug = jnp.concatenate([ex * h_src, ex], axis=-1)      # (E, D+1)
        scat = mm(dst_oh_t, msg_aug, ONEHOT_PRECISION)            # (N, D+1)
        denom = scat[:, d:d + 1]                                  # (N, 1)
        inv = pl.reciprocal(jnp.where(denom > 0, denom, f32(1.0)), approx=False)
        bias = vec_ref[3 * conv:3 * conv + 1, :]                  # (1, D)
        return scat[:, :d] * inv + bias                           # (N, D)

    x1 = eagat(x_ref[...], 0)
    x2 = layer_norm(x1, vec_ref[1:2, :], vec_ref[2:3, :])
    x3 = eagat(x2, 1)
    x4 = layer_norm(x3, vec_ref[4:5, :], vec_ref[5:6, :])

    # global_mean_pool(x4, batch): per-graph 1/count precomputed in wrapper.
    pooled = mm(batch_oh_t, x4, ONEHOT_PRECISION) * invc_ref[...]  # (G, D)

    # Linear -> LayerNorm -> ReLU
    y = mm(pooled, wl_ref[...], HI) + vec_ref[6:7, :]
    y = layer_norm(y, vec_ref[7:8, :], vec_ref[8:9, :])
    # TODO(synk): at large G*D, pad the output to a 128-lane-dense block.
    out_ref[...] = jnp.maximum(y, 0.0)


def graph_layer(x, edge_index, batch, edge_attr, params, num_graphs):
    """x: (N, D) f32; edge_index: (2, E) i32; batch: (N,) i32; edge_attr: (E, Fe)."""
    n, d = x.shape
    e = edge_index.shape[1]
    f32 = jnp.float32

    # Index prep once in the wrapper (column/row int32 vectors for the kernel).
    src_col = edge_index[0].reshape(e, 1).astype(jnp.int32)
    dst_col = edge_index[1].reshape(e, 1).astype(jnp.int32)
    dst_row = edge_index[1].reshape(1, e).astype(jnp.int32)
    batch_row = batch.reshape(1, n).astype(jnp.int32)

    # Fold the attention projections into the feature weights.
    def fold(w, an):
        return jnp.concatenate([w, jnp.dot(w, an, precision=HI)], axis=1)
    w_aug = jnp.stack([fold(params["w1"], params["an1"]),
                       fold(params["w2"], params["an2"])])        # (2, D, D+2)
    we_ae = jnp.stack([jnp.dot(params["we1"], params["ae1"], precision=HI)[:, 0],
                       jnp.dot(params["we2"], params["ae2"], precision=HI)[:, 0]])  # (2, FE)

    # Pack the nine (1, D) bias/gamma/beta rows into one operand (fewer DMAs).
    vecs = jnp.concatenate([params["b1"], params["g1"], params["bt1"],
                            params["b2"], params["g2"], params["bt2"],
                            params["bl"], params["gl"], params["btl"]], axis=0)  # (9, D)

    # Per-graph 1/|nodes| (static per batch) computed once in the wrapper.
    counts = jax.ops.segment_sum(jnp.ones((n,), f32), batch,
                                 num_segments=num_graphs)
    inv_counts = (1.0 / jnp.where(counts > 0, counts, 1.0)).reshape(num_graphs, 1)

    operands = (
        x.astype(f32), src_col, dst_col, dst_row, batch_row,
        edge_attr.astype(f32), inv_counts,
        w_aug.astype(f32), we_ae.astype(f32), vecs.astype(f32),
        params["wl"].astype(f32),
    )
    vmem = pl.BlockSpec(memory_space=pltpu.MemorySpace.VMEM)
    return pl.pallas_call(
        _graph_layer_kernel,
        out_shape=jax.ShapeDtypeStruct((num_graphs, d), f32),
        in_specs=[vmem] * len(operands),
        out_specs=vmem,
    )(*operands)


def _reference(x, edge_index, batch, edge_attr, params, num_graphs):
    """Pure-JAX reference (segment ops, full f32 precision) — identical semantics."""
    src, dst = edge_index[0], edge_index[1]
    n = x.shape[0]

    def layer_norm(v, gamma, beta):
        mu = jnp.mean(v, axis=-1, keepdims=True)
        var = jnp.mean((v - mu) ** 2, axis=-1, keepdims=True)
        return (v - mu) * jax.lax.rsqrt(var + 1e-5) * gamma + beta

    def eagat(xv, w, we, an, ae, b):
        h = jnp.dot(xv, w, precision=HI)
        he = jnp.dot(edge_attr, we, precision=HI)
        node_sc = jnp.dot(h, an, precision=HI)                # (N, 2)
        edge_sc = jnp.dot(he, ae, precision=HI)[:, 0]         # (E,)
        logits = node_sc[src, 0] + node_sc[dst, 1] + edge_sc
        logits = jnp.where(logits > 0, logits, 0.2 * logits)
        seg_max = jax.ops.segment_max(logits, dst, num_segments=n)
        seg_max = jnp.where(jnp.isfinite(seg_max), seg_max, 0.0)
        ex = jnp.exp(logits - seg_max[dst])
        denom = jax.ops.segment_sum(ex, dst, num_segments=n)
        alpha = ex / jnp.where(denom > 0, denom, 1.0)[dst]
        msg = alpha[:, None] * h[src]
        return jax.ops.segment_sum(msg, dst, num_segments=n) + b

    x1 = eagat(x, params["w1"], params["we1"], params["an1"], params["ae1"], params["b1"])
    x2 = layer_norm(x1, params["g1"], params["bt1"])
    x3 = eagat(x2, params["w2"], params["we2"], params["an2"], params["ae2"], params["b2"])
    x4 = layer_norm(x3, params["g2"], params["bt2"])

    sums = jax.ops.segment_sum(x4, batch, num_segments=num_graphs)
    counts = jax.ops.segment_sum(jnp.ones((n,), jnp.float32), batch,
                                 num_segments=num_graphs)
    pooled = sums / jnp.where(counts > 0, counts, 1.0)[:, None]

    y = jnp.dot(pooled, params["wl"], precision=HI) + params["bl"]
    y = layer_norm(y, params["gl"], params["btl"])
    return jnp.maximum(y, 0.0)


if __name__ == "__main__":
    N, D, FE, G, EPG = 16, 32, 8, 2, 20   # nodes, dim, edge_dim, graphs, edges/graph
    key = jax.random.PRNGKey(0)
    ks = jax.random.split(key, 24)

    # Two graphs of 8 nodes each, 20 random intra-graph edges per graph.
    src0 = jax.random.randint(ks[0], (EPG,), 0, 8)
    dst0 = jax.random.randint(ks[1], (EPG,), 0, 8)
    src1 = jax.random.randint(ks[2], (EPG,), 8, 16)
    dst1 = jax.random.randint(ks[3], (EPG,), 8, 16)
    edge_index = jnp.stack([jnp.concatenate([src0, src1]),
                            jnp.concatenate([dst0, dst1])]).astype(jnp.int32)
    batch = jnp.concatenate([jnp.zeros((8,), jnp.int32),
                             jnp.ones((8,), jnp.int32)])
    x = jax.random.normal(ks[4], (N, D), jnp.float32)
    edge_attr = jax.random.normal(ks[5], (2 * EPG, FE), jnp.float32)

    def dense(k, shape, scale=0.2):
        return scale * jax.random.normal(k, shape, jnp.float32)

    params = dict(
        w1=dense(ks[6], (D, D)), we1=dense(ks[7], (FE, D)),
        an1=dense(ks[8], (D, 2)), ae1=dense(ks[9], (D, 1)),
        b1=dense(ks[10], (1, D), 0.1),
        g1=1.0 + dense(ks[11], (1, D), 0.1), bt1=dense(ks[12], (1, D), 0.1),
        w2=dense(ks[13], (D, D)), we2=dense(ks[14], (FE, D)),
        an2=dense(ks[15], (D, 2)), ae2=dense(ks[16], (D, 1)),
        b2=dense(ks[17], (1, D), 0.1),
        g2=1.0 + dense(ks[18], (1, D), 0.1), bt2=dense(ks[19], (1, D), 0.1),
        wl=dense(ks[20], (D, D)), bl=dense(ks[21], (1, D), 0.1),
        gl=1.0 + dense(ks[22], (1, D), 0.1), btl=dense(ks[23], (1, D), 0.1),
    )

    out = graph_layer(x, edge_index, batch, edge_attr, params, G)
    out = jax.block_until_ready(out)

    ref = _reference(x, edge_index, batch, edge_attr, params, G)
    assert out.shape == (G, D)
    assert jnp.allclose(out, ref, atol=1e-3, rtol=1e-3), \
        float(jnp.max(jnp.abs(out - ref)))

    print("KERNEL_OK")
</pallas_src>

<mosaic_0001>
module attributes {stable_mosaic.version = 11 : i64} {
  func.func @_graph_layer_kernel(%arg0: memref<16x32xf32, #tpu.memory_space<vmem>>, %arg1: memref<40x1xi32, #tpu.memory_space<vmem>>, %arg2: memref<40x1xi32, #tpu.memory_space<vmem>>, %arg3: memref<1x40xi32, #tpu.memory_space<vmem>>, %arg4: memref<1x16xi32, #tpu.memory_space<vmem>>, %arg5: memref<40x8xf32, #tpu.memory_space<vmem>>, %arg6: memref<2x1xf32, #tpu.memory_space<vmem>>, %arg7: memref<2x32x34xf32, #tpu.memory_space<vmem>>, %arg8: memref<2x8xf32, #tpu.memory_space<vmem>>, %arg9: memref<9x32xf32, #tpu.memory_space<vmem>>, %arg10: memref<32x32xf32, #tpu.memory_space<vmem>>, %arg11: memref<2x32xf32, #tpu.memory_space<vmem>>) attributes {dimension_semantics = [], scalar_prefetch = 0 : i64, scratch_operands = 0 : i64, tpu.core_type = #tpu.core_type<tc>} {
    %0 = tpu.iota {dimensions = array<i32: 1>} : vector<40x16xi32>
    %c0 = arith.constant 0 : index
    %c0_0 = arith.constant 0 : index
    %1 = vector.load %arg1[%c0, %c0_0] : memref<40x1xi32, #tpu.memory_space<vmem>>, vector<40x1xi32>
    %2 = vector.broadcast %1 : vector<40x1xi32> to vector<40x16xi32>
    %3 = arith.cmpi eq, %2, %0 : vector<40x16xi32>
    %4 = arith.extui %3 : vector<40x16xi1> to vector<40x16xi32>
    %5 = arith.sitofp %4 : vector<40x16xi32> to vector<40x16xf32>
    %c0_1 = arith.constant 0 : index
    %c0_2 = arith.constant 0 : index
    %6 = vector.load %arg2[%c0_1, %c0_2] : memref<40x1xi32, #tpu.memory_space<vmem>>, vector<40x1xi32>
    %7 = vector.broadcast %6 : vector<40x1xi32> to vector<40x16xi32>
    %8 = arith.cmpi eq, %7, %0 : vector<40x16xi32>
    %9 = arith.extui %8 : vector<40x16xi1> to vector<40x16xi32>
    %10 = arith.sitofp %9 : vector<40x16xi32> to vector<40x16xf32>
    %11 = tpu.iota {dimensions = array<i32: 0>} : vector<16x40xi32>
    %c0_3 = arith.constant 0 : index
    %c0_4 = arith.constant 0 : index
    %12 = vector.load %arg3[%c0_3, %c0_4] : memref<1x40xi32, #tpu.memory_space<vmem>>, vector<1x40xi32>
    %13 = vector.broadcast %12 : vector<1x40xi32> to vector<16x40xi32>
    %14 = arith.cmpi eq, %13, %11 : vector<16x40xi32>
    %15 = arith.extui %14 : vector<16x40xi1> to vector<16x40xi32>
    %16 = arith.sitofp %15 : vector<16x40xi32> to vector<16x40xf32>
    %17 = tpu.iota {dimensions = array<i32: 0>} : vector<2x16xi32>
    %c0_5 = arith.constant 0 : index
    %c0_6 = arith.constant 0 : index
    %18 = vector.load %arg4[%c0_5, %c0_6] : memref<1x16xi32, #tpu.memory_space<vmem>>, vector<1x16xi32>
    %19 = vector.broadcast %18 : vector<1x16xi32> to vector<2x16xi32>
    %20 = arith.cmpi eq, %19, %17 : vector<2x16xi32>
    %21 = arith.extui %20 : vector<2x16xi1> to vector<2x16xi32>
    %22 = arith.sitofp %21 : vector<2x16xi32> to vector<2x16xf32>
    %c0_7 = arith.constant 0 : index
    %c0_8 = arith.constant 0 : index
    %23 = vector.load %arg0[%c0_7, %c0_8] : memref<16x32xf32, #tpu.memory_space<vmem>>, vector<16x32xf32>
    %c0_9 = arith.constant 0 : index
    %c0_10 = arith.constant 0 : index
    %c0_11 = arith.constant 0 : index
    %24 = vector.load %arg7[%c0_9, %c0_10, %c0_11] : memref<2x32x34xf32, #tpu.memory_space<vmem>>, vector<1x32x34xf32>
    %25 = vector.shape_cast %24 : vector<1x32x34xf32> to vector<32x34xf32>
    %cst = arith.constant dense<0.000000e+00> : vector<16x34xf32>
    %26 = tpu.matmul %23, %25, %cst {dimension_numbers = #tpu.dot_dimension_numbers<[1], [0], [0], [1], [0, 0, 1, 1], [], []>, precision = #tpu.contract_precision<fp32>} : vector<16x32xf32>, vector<32x34xf32>, vector<16x34xf32> -> vector<16x34xf32>
    %27 = vector.extract_strided_slice %26 {offsets = [0, 32], sizes = [16, 2], strides = [1, 1]} : vector<16x34xf32> to vector<16x2xf32>
    %c0_12 = arith.constant 0 : index
    %c0_13 = arith.constant 0 : index
    %28 = vector.load %arg5[%c0_12, %c0_13] : memref<40x8xf32, #tpu.memory_space<vmem>>, vector<40x8xf32>
    %c0_14 = arith.constant 0 : index
    %c0_15 = arith.constant 0 : index
    %29 = vector.load %arg8[%c0_14, %c0_15] : memref<2x8xf32, #tpu.memory_space<vmem>>, vector<1x8xf32>
    %30 = vector.broadcast %29 : vector<1x8xf32> to vector<40x8xf32>
    %31 = arith.mulf %28, %30 : vector<40x8xf32>
    %cst_16 = arith.constant dense<0.000000e+00> : vector<40xf32>
    %32 = vector.multi_reduction <add>, %31, %cst_16 [1] : vector<40x8xf32> to vector<40xf32>
    %33 = vector.shape_cast %32 : vector<40xf32> to vector<40x1xf32>
    %cst_17 = arith.constant dense<0.000000e+00> : vector<40x34xf32>
    %34 = tpu.matmul %5, %26, %cst_17 {dimension_numbers = #tpu.dot_dimension_numbers<[1], [0], [0], [1], [0, 0, 1, 1], [], []>, precision = #tpu.contract_precision<fp32>} : vector<40x16xf32>, vector<16x34xf32>, vector<40x34xf32> -> vector<40x34xf32>
    %35 = vector.extract_strided_slice %34 {offsets = [0, 0], sizes = [40, 32], strides = [1, 1]} : vector<40x34xf32> to vector<40x32xf32>
    %36 = vector.extract_strided_slice %34 {offsets = [0, 32], sizes = [40, 1], strides = [1, 1]} : vector<40x34xf32> to vector<40x1xf32>
    %cst_18 = arith.constant dense<0.000000e+00> : vector<40x2xf32>
    %37 = tpu.matmul %10, %27, %cst_18 {dimension_numbers = #tpu.dot_dimension_numbers<[1], [0], [0], [1], [0, 0, 1, 1], [], []>, precision = #tpu.contract_precision<fp32>} : vector<40x16xf32>, vector<16x2xf32>, vector<40x2xf32> -> vector<40x2xf32>
    %38 = vector.extract_strided_slice %37 {offsets = [0, 1], sizes = [40, 1], strides = [1, 1]} : vector<40x2xf32> to vector<40x1xf32>
    %39 = arith.addf %36, %38 : vector<40x1xf32>
    %40 = arith.addf %39, %33 : vector<40x1xf32>
    %cst_19 = arith.constant 0.000000e+00 : f32
    %41 = vector.broadcast %cst_19 : f32 to vector<40x1xf32>
    %42 = arith.cmpf ogt, %40, %41 : vector<40x1xf32>
    %cst_20 = arith.constant 2.000000e-01 : f32
    %43 = vector.broadcast %cst_20 : f32 to vector<40x1xf32>
    %44 = arith.mulf %43, %40 : vector<40x1xf32>
    %45 = arith.select %42, %40, %44 : vector<40x1xi1>, vector<40x1xf32>
    %cst_21 = arith.constant 0.000000e+00 : f32
    %46 = vector.broadcast %cst_21 : f32 to vector<40x16xf32>
    %47 = arith.cmpf ogt, %10, %46 : vector<40x16xf32>
    %cst_22 = arith.constant -1.000000e+30 : f32
    %48 = vector.shape_cast %45 : vector<40x1xf32> to vector<40x1xf32>
    %49 = vector.broadcast %48 : vector<40x1xf32> to vector<40x16xf32>
    %50 = vector.broadcast %cst_22 : f32 to vector<40x16xf32>
    %51 = arith.select %47, %49, %50 : vector<40x16xi1>, vector<40x16xf32>
    %cst_23 = arith.constant dense<0xFF800000> : vector<16xf32>
    %52 = vector.multi_reduction <maximumf>, %51, %cst_23 [0] : vector<40x16xf32> to vector<16xf32>
    %53 = vector.shape_cast %52 : vector<16xf32> to vector<1x16xf32>
    %54 = vector.broadcast %53 : vector<1x16xf32> to vector<40x16xf32>
    %55 = arith.mulf %10, %54 : vector<40x16xf32>
    %cst_24 = arith.constant dense<0.000000e+00> : vector<40xf32>
    %56 = vector.multi_reduction <add>, %55, %cst_24 [1] : vector<40x16xf32> to vector<40xf32>
    %57 = vector.shape_cast %56 : vector<40xf32> to vector<40x1xf32>
    %58 = arith.subf %45, %57 : vector<40x1xf32>
    %59 = math.exp %58 : vector<40x1xf32>
    %60 = vector.broadcast %59 : vector<40x1xf32> to vector<40x32xf32>
    %61 = arith.mulf %60, %35 : vector<40x32xf32>
    %62 = tpu.concatenate %61, %59 in 1 : vector<40x32xf32>, vector<40x1xf32> -> vector<40x33xf32>
    %cst_25 = arith.constant dense<0.000000e+00> : vector<16x33xf32>
    %63 = tpu.matmul %16, %62, %cst_25 {dimension_numbers = #tpu.dot_dimension_numbers<[1], [0], [0], [1], [0, 0, 1, 1], [], []>, precision = #tpu.contract_precision<fp32>} : vector<16x40xf32>, vector<40x33xf32>, vector<16x33xf32> -> vector<16x33xf32>
    %64 = vector.extract_strided_slice %63 {offsets = [0, 32], sizes = [16, 1], strides = [1, 1]} : vector<16x33xf32> to vector<16x1xf32>
    %cst_26 = arith.constant 0.000000e+00 : f32
    %65 = vector.broadcast %cst_26 : f32 to vector<16x1xf32>
    %66 = arith.cmpf ogt, %64, %65 : vector<16x1xf32>
    %cst_27 = arith.constant 1.000000e+00 : f32
    %67 = vector.broadcast %cst_27 : f32 to vector<16x1xf32>
    %68 = arith.select %66, %64, %67 : vector<16x1xi1>, vector<16x1xf32>
    %69 = tpu.reciprocal %68 : vector<16x1xf32> -> vector<16x1xf32>
    %c0_28 = arith.constant 0 : index
    %c0_29 = arith.constant 0 : index
    %70 = vector.load %arg9[%c0_28, %c0_29] : memref<9x32xf32, #tpu.memory_space<vmem>>, vector<1x32xf32>
    %71 = vector.extract_strided_slice %63 {offsets = [0, 0], sizes = [16, 32], strides = [1, 1]} : vector<16x33xf32> to vector<16x32xf32>
    %72 = vector.broadcast %69 : vector<16x1xf32> to vector<16x32xf32>
    %73 = arith.mulf %71, %72 : vector<16x32xf32>
    %74 = vector.broadcast %70 : vector<1x32xf32> to vector<16x32xf32>
    %75 = arith.addf %73, %74 : vector<16x32xf32>
    %c1 = arith.constant 1 : index
    %c0_30 = arith.constant 0 : index
    %76 = vector.load %arg9[%c1, %c0_30] : memref<9x32xf32, #tpu.memory_space<vmem>>, vector<1x32xf32>
    %c2 = arith.constant 2 : index
    %c0_31 = arith.constant 0 : index
    %77 = vector.load %arg9[%c2, %c0_31] : memref<9x32xf32, #tpu.memory_space<vmem>>, vector<1x32xf32>
    %cst_32 = arith.constant dense<0.000000e+00> : vector<16xf32>
    %78 = vector.multi_reduction <add>, %75, %cst_32 [1] : vector<16x32xf32> to vector<16xf32>
    %79 = vector.shape_cast %78 : vector<16xf32> to vector<16x1xf32>
    %cst_33 = arith.constant 3.200000e+01 : f32
    %80 = vector.broadcast %cst_33 : f32 to vector<16x1xf32>
    %81 = arith.divf %79, %80 : vector<16x1xf32>
    %82 = vector.broadcast %81 : vector<16x1xf32> to vector<16x32xf32>
    %83 = arith.subf %75, %82 : vector<16x32xf32>
    %84 = arith.mulf %83, %83 : vector<16x32xf32>
    %cst_34 = arith.constant dense<0.000000e+00> : vector<16xf32>
    %85 = vector.multi_reduction <add>, %84, %cst_34 [1] : vector<16x32xf32> to vector<16xf32>
    %86 = vector.shape_cast %85 : vector<16xf32> to vector<16x1xf32>
    %cst_35 = arith.constant 3.200000e+01 : f32
    %87 = vector.broadcast %cst_35 : f32 to vector<16x1xf32>
    %88 = arith.divf %86, %87 : vector<16x1xf32>
    %89 = vector.broadcast %81 : vector<16x1xf32> to vector<16x32xf32>
    %90 = arith.subf %75, %89 : vector<16x32xf32>
    %cst_36 = arith.constant 9.99999974E-6 : f32
    %91 = vector.broadcast %cst_36 : f32 to vector<16x1xf32>
    %92 = arith.addf %88, %91 : vector<16x1xf32>
    %93 = math.rsqrt %92 : vector<16x1xf32>
    %94 = vector.broadcast %93 : vector<16x1xf32> to vector<16x32xf32>
    %95 = arith.mulf %90, %94 : vector<16x32xf32>
    %96 = vector.broadcast %76 : vector<1x32xf32> to vector<16x32xf32>
    %97 = arith.mulf %95, %96 : vector<16x32xf32>
    %98 = vector.broadcast %77 : vector<1x32xf32> to vector<16x32xf32>
    %99 = arith.addf %97, %98 : vector<16x32xf32>
    %c1_37 = arith.constant 1 : index
    %c0_38 = arith.constant 0 : index
    %c0_39 = arith.constant 0 : index
    %100 = vector.load %arg7[%c1_37, %c0_38, %c0_39] : memref<2x32x34xf32, #tpu.memory_space<vmem>>, vector<1x32x34xf32>
    %101 = vector.shape_cast %100 : vector<1x32x34xf32> to vector<32x34xf32>
    %cst_40 = arith.constant dense<0.000000e+00> : vector<16x34xf32>
    %102 = tpu.matmul %99, %101, %cst_40 {dimension_numbers = #tpu.dot_dimension_numbers<[1], [0], [0], [1], [0, 0, 1, 1], [], []>, precision = #tpu.contract_precision<fp32>} : vector<16x32xf32>, vector<32x34xf32>, vector<16x34xf32> -> vector<16x34xf32>
    %103 = vector.extract_strided_slice %102 {offsets = [0, 32], sizes = [16, 2], strides = [1, 1]} : vector<16x34xf32> to vector<16x2xf32>
    %c0_41 = arith.constant 0 : index
    %c0_42 = arith.constant 0 : index
    %104 = vector.load %arg5[%c0_41, %c0_42] : memref<40x8xf32, #tpu.memory_space<vmem>>, vector<40x8xf32>
    %c1_43 = arith.constant 1 : index
    %c0_44 = arith.constant 0 : index
    %105 = vector.load %arg8[%c1_43, %c0_44] : memref<2x8xf32, #tpu.memory_space<vmem>>, vector<1x8xf32>
    %106 = vector.broadcast %105 : vector<1x8xf32> to vector<40x8xf32>
    %107 = arith.mulf %104, %106 : vector<40x8xf32>
    %cst_45 = arith.constant dense<0.000000e+00> : vector<40xf32>
    %108 = vector.multi_reduction <add>, %107, %cst_45 [1] : vector<40x8xf32> to vector<40xf32>
    %109 = vector.shape_cast %108 : vector<40xf32> to vector<40x1xf32>
    %cst_46 = arith.constant dense<0.000000e+00> : vector<40x34xf32>
    %110 = tpu.matmul %5, %102, %cst_46 {dimension_numbers = #tpu.dot_dimension_numbers<[1], [0], [0], [1], [0, 0, 1, 1], [], []>, precision = #tpu.contract_precision<fp32>} : vector<40x16xf32>, vector<16x34xf32>, vector<40x34xf32> -> vector<40x34xf32>
    %111 = vector.extract_strided_slice %110 {offsets = [0, 0], sizes = [40, 32], strides = [1, 1]} : vector<40x34xf32> to vector<40x32xf32>
    %112 = vector.extract_strided_slice %110 {offsets = [0, 32], sizes = [40, 1], strides = [1, 1]} : vector<40x34xf32> to vector<40x1xf32>
    %cst_47 = arith.constant dense<0.000000e+00> : vector<40x2xf32>
    %113 = tpu.matmul %10, %103, %cst_47 {dimension_numbers = #tpu.dot_dimension_numbers<[1], [0], [0], [1], [0, 0, 1, 1], [], []>, precision = #tpu.contract_precision<fp32>} : vector<40x16xf32>, vector<16x2xf32>, vector<40x2xf32> -> vector<40x2xf32>
    %114 = vector.extract_strided_slice %113 {offsets = [0, 1], sizes = [40, 1], strides = [1, 1]} : vector<40x2xf32> to vector<40x1xf32>
    %115 = arith.addf %112, %114 : vector<40x1xf32>
    %116 = arith.addf %115, %109 : vector<40x1xf32>
    %cst_48 = arith.constant 0.000000e+00 : f32
    %117 = vector.broadcast %cst_48 : f32 to vector<40x1xf32>
    %118 = arith.cmpf ogt, %116, %117 : vector<40x1xf32>
    %cst_49 = arith.constant 2.000000e-01 : f32
    %119 = vector.broadcast %cst_49 : f32 to vector<40x1xf32>
    %120 = arith.mulf %119, %116 : vector<40x1xf32>
    %121 = arith.select %118, %116, %120 : vector<40x1xi1>, vector<40x1xf32>
    %cst_50 = arith.constant 0.000000e+00 : f32
    %122 = vector.broadcast %cst_50 : f32 to vector<40x16xf32>
    %123 = arith.cmpf ogt, %10, %122 : vector<40x16xf32>
    %cst_51 = arith.constant -1.000000e+30 : f32
    %124 = vector.shape_cast %121 : vector<40x1xf32> to vector<40x1xf32>
    %125 = vector.broadcast %124 : vector<40x1xf32> to vector<40x16xf32>
    %126 = vector.broadcast %cst_51 : f32 to vector<40x16xf32>
    %127 = arith.select %123, %125, %126 : vector<40x16xi1>, vector<40x16xf32>
    %cst_52 = arith.constant dense<0xFF800000> : vector<16xf32>
    %128 = vector.multi_reduction <maximumf>, %127, %cst_52 [0] : vector<40x16xf32> to vector<16xf32>
    %129 = vector.shape_cast %128 : vector<16xf32> to vector<1x16xf32>
    %130 = vector.broadcast %129 : vector<1x16xf32> to vector<40x16xf32>
    %131 = arith.mulf %10, %130 : vector<40x16xf32>
    %cst_53 = arith.constant dense<0.000000e+00> : vector<40xf32>
    %132 = vector.multi_reduction <add>, %131, %cst_53 [1] : vector<40x16xf32> to vector<40xf32>
    %133 = vector.shape_cast %132 : vector<40xf32> to vector<40x1xf32>
    %134 = arith.subf %121, %133 : vector<40x1xf32>
    %135 = math.exp %134 : vector<40x1xf32>
    %136 = vector.broadcast %135 : vector<40x1xf32> to vector<40x32xf32>
    %137 = arith.mulf %136, %111 : vector<40x32xf32>
    %138 = tpu.concatenate %137, %135 in 1 : vector<40x32xf32>, vector<40x1xf32> -> vector<40x33xf32>
    %cst_54 = arith.constant dense<0.000000e+00> : vector<16x33xf32>
    %139 = tpu.matmul %16, %138, %cst_54 {dimension_numbers = #tpu.dot_dimension_numbers<[1], [0], [0], [1], [0, 0, 1, 1], [], []>, precision = #tpu.contract_precision<fp32>} : vector<16x40xf32>, vector<40x33xf32>, vector<16x33xf32> -> vector<16x33xf32>
    %140 = vector.extract_strided_slice %139 {offsets = [0, 32], sizes = [16, 1], strides = [1, 1]} : vector<16x33xf32> to vector<16x1xf32>
    %cst_55 = arith.constant 0.000000e+00 : f32
    %141 = vector.broadcast %cst_55 : f32 to vector<16x1xf32>
    %142 = arith.cmpf ogt, %140, %141 : vector<16x1xf32>
    %cst_56 = arith.constant 1.000000e+00 : f32
    %143 = vector.broadcast %cst_56 : f32 to vector<16x1xf32>
    %144 = arith.select %142, %140, %143 : vector<16x1xi1>, vector<16x1xf32>
    %145 = tpu.reciprocal %144 : vector<16x1xf32> -> vector<16x1xf32>
    %c3 = arith.constant 3 : index
    %c0_57 = arith.constant 0 : index
    %146 = vector.load %arg9[%c3, %c0_57] : memref<9x32xf32, #tpu.memory_space<vmem>>, vector<1x32xf32>
    %147 = vector.extract_strided_slice %139 {offsets = [0, 0], sizes = [16, 32], strides = [1, 1]} : vector<16x33xf32> to vector<16x32xf32>
    %148 = vector.broadcast %145 : vector<16x1xf32> to vector<16x32xf32>
    %149 = arith.mulf %147, %148 : vector<16x32xf32>
    %150 = vector.broadcast %146 : vector<1x32xf32> to vector<16x32xf32>
    %151 = arith.addf %149, %150 : vector<16x32xf32>
    %c4 = arith.constant 4 : index
    %c0_58 = arith.constant 0 : index
    %152 = vector.load %arg9[%c4, %c0_58] : memref<9x32xf32, #tpu.memory_space<vmem>>, vector<1x32xf32>
    %c5 = arith.constant 5 : index
    %c0_59 = arith.constant 0 : index
    %153 = vector.load %arg9[%c5, %c0_59] : memref<9x32xf32, #tpu.memory_space<vmem>>, vector<1x32xf32>
    %cst_60 = arith.constant dense<0.000000e+00> : vector<16xf32>
    %154 = vector.multi_reduction <add>, %151, %cst_60 [1] : vector<16x32xf32> to vector<16xf32>
    %155 = vector.shape_cast %154 : vector<16xf32> to vector<16x1xf32>
    %cst_61 = arith.constant 3.200000e+01 : f32
    %156 = vector.broadcast %cst_61 : f32 to vector<16x1xf32>
    %157 = arith.divf %155, %156 : vector<16x1xf32>
    %158 = vector.broadcast %157 : vector<16x1xf32> to vector<16x32xf32>
    %159 = arith.subf %151, %158 : vector<16x32xf32>
    %160 = arith.mulf %159, %159 : vector<16x32xf32>
    %cst_62 = arith.constant dense<0.000000e+00> : vector<16xf32>
    %161 = vector.multi_reduction <add>, %160, %cst_62 [1] : vector<16x32xf32> to vector<16xf32>
    %162 = vector.shape_cast %161 : vector<16xf32> to vector<16x1xf32>
    %cst_63 = arith.constant 3.200000e+01 : f32
    %163 = vector.broadcast %cst_63 : f32 to vector<16x1xf32>
    %164 = arith.divf %162, %163 : vector<16x1xf32>
    %165 = vector.broadcast %157 : vector<16x1xf32> to vector<16x32xf32>
    %166 = arith.subf %151, %165 : vector<16x32xf32>
    %cst_64 = arith.constant 9.99999974E-6 : f32
    %167 = vector.broadcast %cst_64 : f32 to vector<16x1xf32>
    %168 = arith.addf %164, %167 : vector<16x1xf32>
    %169 = math.rsqrt %168 : vector<16x1xf32>
    %170 = vector.broadcast %169 : vector<16x1xf32> to vector<16x32xf32>
    %171 = arith.mulf %166, %170 : vector<16x32xf32>
    %172 = vector.broadcast %152 : vector<1x32xf32> to vector<16x32xf32>
    %173 = arith.mulf %171, %172 : vector<16x32xf32>
    %174 = vector.broadcast %153 : vector<1x32xf32> to vector<16x32xf32>
    %175 = arith.addf %173, %174 : vector<16x32xf32>
    %cst_65 = arith.constant dense<0.000000e+00> : vector<2x32xf32>
    %176 = tpu.matmul %22, %175, %cst_65 {dimension_numbers = #tpu.dot_dimension_numbers<[1], [0], [0], [1], [0, 0, 1, 1], [], []>, precision = #tpu.contract_precision<fp32>} : vector<2x16xf32>, vector<16x32xf32>, vector<2x32xf32> -> vector<2x32xf32>
    %c0_66 = arith.constant 0 : index
    %c0_67 = arith.constant 0 : index
    %177 = vector.load %arg6[%c0_66, %c0_67] : memref<2x1xf32, #tpu.memory_space<vmem>>, vector<2x1xf32>
    %178 = vector.broadcast %177 : vector<2x1xf32> to vector<2x32xf32>
    %179 = arith.mulf %176, %178 : vector<2x32xf32>
    %c0_68 = arith.constant 0 : index
    %c0_69 = arith.constant 0 : index
    %180 = vector.load %arg10[%c0_68, %c0_69] : memref<32x32xf32, #tpu.memory_space<vmem>>, vector<32x32xf32>
    %cst_70 = arith.constant dense<0.000000e+00> : vector<2x32xf32>
    %181 = tpu.matmul %179, %180, %cst_70 {dimension_numbers = #tpu.dot_dimension_numbers<[1], [0], [0], [1], [0, 0, 1, 1], [], []>, precision = #tpu.contract_precision<fp32>} : vector<2x32xf32>, vector<32x32xf32>, vector<2x32xf32> -> vector<2x32xf32>
    %c6 = arith.constant 6 : index
    %c0_71 = arith.constant 0 : index
    %182 = vector.load %arg9[%c6, %c0_71] : memref<9x32xf32, #tpu.memory_space<vmem>>, vector<1x32xf32>
    %183 = vector.broadcast %182 : vector<1x32xf32> to vector<2x32xf32>
    %184 = arith.addf %181, %183 : vector<2x32xf32>
    %c7 = arith.constant 7 : index
    %c0_72 = arith.constant 0 : index
    %185 = vector.load %arg9[%c7, %c0_72] : memref<9x32xf32, #tpu.memory_space<vmem>>, vector<1x32xf32>
    %c8 = arith.constant 8 : index
    %c0_73 = arith.constant 0 : index
    %186 = vector.load %arg9[%c8, %c0_73] : memref<9x32xf32, #tpu.memory_space<vmem>>, vector<1x32xf32>
    %cst_74 = arith.constant dense<0.000000e+00> : vector<2xf32>
    %187 = vector.multi_reduction <add>, %184, %cst_74 [1] : vector<2x32xf32> to vector<2xf32>
    %188 = vector.shape_cast %187 : vector<2xf32> to vector<2x1xf32>
    %cst_75 = arith.constant 3.200000e+01 : f32
    %189 = vector.broadcast %cst_75 : f32 to vector<2x1xf32>
    %190 = arith.divf %188, %189 : vector<2x1xf32>
    %191 = vector.broadcast %190 : vector<2x1xf32> to vector<2x32xf32>
    %192 = arith.subf %184, %191 : vector<2x32xf32>
    %193 = arith.mulf %192, %192 : vector<2x32xf32>
    %cst_76 = arith.constant dense<0.000000e+00> : vector<2xf32>
    %194 = vector.multi_reduction <add>, %193, %cst_76 [1] : vector<2x32xf32> to vector<2xf32>
    %195 = vector.shape_cast %194 : vector<2xf32> to vector<2x1xf32>
    %cst_77 = arith.constant 3.200000e+01 : f32
    %196 = vector.broadcast %cst_77 : f32 to vector<2x1xf32>
    %197 = arith.divf %195, %196 : vector<2x1xf32>
    %198 = vector.broadcast %190 : vector<2x1xf32> to vector<2x32xf32>
    %199 = arith.subf %184, %198 : vector<2x32xf32>
    %cst_78 = arith.constant 9.99999974E-6 : f32
    %200 = vector.broadcast %cst_78 : f32 to vector<2x1xf32>
    %201 = arith.addf %197, %200 : vector<2x1xf32>
    %202 = math.rsqrt %201 : vector<2x1xf32>
    %203 = vector.broadcast %202 : vector<2x1xf32> to vector<2x32xf32>
    %204 = arith.mulf %199, %203 : vector<2x32xf32>
    %205 = vector.broadcast %185 : vector<1x32xf32> to vector<2x32xf32>
    %206 = arith.mulf %204, %205 : vector<2x32xf32>
    %207 = vector.broadcast %186 : vector<1x32xf32> to vector<2x32xf32>
    %208 = arith.addf %206, %207 : vector<2x32xf32>
    %cst_79 = arith.constant 0.000000e+00 : f32
    %209 = vector.broadcast %cst_79 : f32 to vector<2x32xf32>
    %210 = arith.maximumf %208, %209 : vector<2x32xf32>
    %c0_80 = arith.constant 0 : index
    %c0_81 = arith.constant 0 : index
    %211 = vector.load %arg11[%c0_80, %c0_81] : memref<2x32xf32, #tpu.memory_space<vmem>>, vector<2x32xf32>
    tpu.vector_store %arg11[%c0_80, %c0_81], %210 {strides = array<i32>} : memref<2x32xf32, #tpu.memory_space<vmem>>, vector<2x32xf32>,
    return
  }
}

</mosaic_0001>

<llo_original>
// kernel: tpu_custom_call.1
$region0: #{tpu_custom_call.1}
  #allocation0 [shape = 'u32[]', space=smem, size = 0x4, offset = 0x4, fixed_abs, tag = 'smem constant byte address 0x4 - core index']
  #allocation1 [shape = 'u32[72,128]{1,0:T(1,128)}', space=vmem, size = 0x9000, scoped, tag = 'internal scratch']
  %s0 = inlined_call_operand.vmem [shape: f32[16,32], index: 0, kind: input, shape index: {}]
  %s1 = inlined_call_operand.vmem [shape: s32[40,1], index: 1, kind: input, shape index: {}]
  %s2 = inlined_call_operand.vmem [shape: s32[40,1], index: 2, kind: input, shape index: {}]
  %s3 = inlined_call_operand.vmem [shape: s32[1,40], index: 3, kind: input, shape index: {}]
  %s4 = inlined_call_operand.vmem [shape: s32[1,16], index: 4, kind: input, shape index: {}]
  %s5 = inlined_call_operand.vmem [shape: f32[40,8], index: 5, kind: input, shape index: {}]
  %s6 = inlined_call_operand.vmem [shape: f32[2,1], index: 6, kind: input, shape index: {}]
  %s7 = inlined_call_operand.vmem [shape: f32[2,32,34], index: 7, kind: input, shape index: {}]
  %s8 = inlined_call_operand.vmem [shape: f32[2,8], index: 8, kind: input, shape index: {}]
  %s9 = inlined_call_operand.hbm [shape: f32[9,32], index: 9, kind: input, shape index: {}]
  %s10 = inlined_call_operand.vmem [shape: f32[32,32], index: 10, kind: input, shape index: {}]
  %s11 = inlined_call_operand.hbm [shape: f32[2,32], index: 11, kind: output, shape index: {}]
  %s12 = sld [smem:[#allocation0]]
  $region58: #{tpu_custom_call.1} parent=0
    _
  %s14 = ssub.s32 1, %s12
  %s15 = scalar_select 0, %s14, %s12
  $region1: #{tpu_custom_call.1} parent=0
    #allocation2 [shape = 'u8[8192]{0}', space=vmem, size = 0x2000, scoped, tag = 'input window, operand 9, single buffered']
    #allocation3 [shape = 's32[1]{0}', space=sflag, size = 0x4, scoped, tag = 'scoped memory for tpu_custom_call.1']
    #allocation4 [shape = 's32[1]{0}', space=sflag, size = 0x4, scoped, tag = 'scoped memory for tpu_custom_call.1']
    #allocation5 [shape = 'u8[1024]{0}', space=vmem, size = 0x400, scoped, tag = 'output window, operand 0, single buffered']
    %16 = vsyncpa [#allocation3], 0
    %17 = vsyncpa [#allocation4], 0
    // Predicated region
    $region2: #{tpu_custom_call.1} parent=1 // pred_check
      _
    $region3: #{tpu_custom_call.1} parent=1 // pred_check_branch
      %19 = sbr.rel (0) target = $region5
    $region4: #{tpu_custom_call.1} parent=1 // pred_region
      _
    $region5: #{tpu_custom_call.1} parent=1 // pred_fallthru
      _
    // Predicated region
    $region6: #{tpu_custom_call.1} parent=1 // pred_check
      _
    $region7: #{tpu_custom_call.1} parent=1 // pred_check_branch
      %21 = sbr.rel (0) target = $region9
    $region8: #{tpu_custom_call.1} parent=1 // pred_region
      _
    $region9: #{tpu_custom_call.1} parent=1 // pred_fallthru
      _
    // Predicated region
    $region10: #{tpu_custom_call.1} parent=1 // pred_check
      _
    $region11: #{tpu_custom_call.1} parent=1 // pred_check_branch
      %23 = sbr.rel (0) target = $region13
    $region12: #{tpu_custom_call.1} parent=1 // pred_region
      _
    $region13: #{tpu_custom_call.1} parent=1 // pred_fallthru
      _
    // Predicated region
    $region14: #{tpu_custom_call.1} parent=1 // pred_check
      _
    $region15: #{tpu_custom_call.1} parent=1 // pred_check_branch
      %25 = sbr.rel (0) target = $region17
    $region16: #{tpu_custom_call.1} parent=1 // pred_region
      _
    $region17: #{tpu_custom_call.1} parent=1 // pred_fallthru
      _
    // Predicated region
    $region18: #{tpu_custom_call.1} parent=1 // pred_check
      _
    $region19: #{tpu_custom_call.1} parent=1 // pred_check_branch
      %27 = sbr.rel (0) target = $region21
    $region20: #{tpu_custom_call.1} parent=1 // pred_region
      _
    $region21: #{tpu_custom_call.1} parent=1 // pred_fallthru
      _
    // Predicated region
    $region22: #{tpu_custom_call.1} parent=1 // pred_check
      _
    $region23: #{tpu_custom_call.1} parent=1 // pred_check_branch
      %29 = sbr.rel (0) target = $region25
    $region24: #{tpu_custom_call.1} parent=1 // pred_region
      _
    $region25: #{tpu_custom_call.1} parent=1 // pred_fallthru
      _
    // Predicated region
    $region26: #{tpu_custom_call.1} parent=1 // pred_check
      _
    $region27: #{tpu_custom_call.1} parent=1 // pred_check_branch
      %31 = sbr.rel (0) target = $region29
    $region28: #{tpu_custom_call.1} parent=1 // pred_region
      _
    $region29: #{tpu_custom_call.1} parent=1 // pred_fallthru
      _
    // Predicated region
    $region30: #{tpu_custom_call.1} parent=1 // pred_check
      _
    $region31: #{tpu_custom_call.1} parent=1 // pred_check_branch
      %33 = sbr.rel (0) target = $region33
    $region32: #{tpu_custom_call.1} parent=1 // pred_region
      _
    $region33: #{tpu_custom_call.1} parent=1 // pred_fallthru
      _
    // Predicated region
    $region34: #{tpu_custom_call.1} parent=1 // pred_check
      _
    $region35: #{tpu_custom_call.1} parent=1 // pred_check_branch
      %35 = sbr.rel (0) target = $region37
    $region36: #{tpu_custom_call.1} parent=1 // pred_region
      _
    $region37: #{tpu_custom_call.1} parent=1 // pred_fallthru
      _
    // Predicated region
    $region38: #{tpu_custom_call.1} parent=1 // pred_check
      _
    $region39: #{tpu_custom_call.1} parent=1 // pred_check_branch
      %37 = sbr.rel (0) target = $region41
    $region40: #{tpu_custom_call.1} parent=1 // pred_region
      %39 = vsyncadd [#allocation3], 0
      %s40 = sshll.u32 %s9, 4
      %s41 = int_to_ptr.hbm [resolvable:$true] %s40
      %s42 = sshll.u32 [#allocation2], 4
      %s43 = int_to_ptr.vmem [resolvable:$true] %s42
      %48 = dma.hbm_to_vmem [thread:$0]  %s41, 256, %s43, [#allocation3], 128, 128, 8
    $region41: #{tpu_custom_call.1} parent=1 // pred_fallthru
      _
    // Predicated region
    $region42: #{tpu_custom_call.1} parent=1 // pred_check
      _
    $region43: #{tpu_custom_call.1} parent=1 // pred_check_branch
      %50 = sbr.rel (0) target = $region45
    $region44: #{tpu_custom_call.1} parent=1 // pred_region
      _
    $region45: #{tpu_custom_call.1} parent=1 // pred_fallthru
      _
    // Predicated region
    $region46: #{tpu_custom_call.1} parent=1 // pred_check
      _
    $region47: #{tpu_custom_call.1} parent=1 // pred_check_branch
      %52 = sbr.rel (0) target = $region49
    $region48: #{tpu_custom_call.1} parent=1 // pred_region
      %54 = dma.done [#allocation3], 256
    $region49: #{tpu_custom_call.1} parent=1 // pred_fallthru
      _
    %v55 = vlaneseq
    %v56 = vand.u32 %v55, 127
    %v57 = vld [vmem:[%s1] sm:$0xff]
    %v58 = vld [vmem:[%s1 + $0x8] sm:$0xff]
    %v59 = vld [vmem:[%s1 + $0x10] sm:$0xff]
    %v60 = vld [vmem:[%s1 + $0x18] sm:$0xff]
    %v61 = vld [vmem:[%s1 + $0x20] sm:$0xff]
    %62 = vset.pattern.permute.xlu0 0
    %63 = vperm.xlu0 %62, %v57
    %v64 = vpop.permute.xlu0 %63
    %65 = vset.pattern.permute.xlu0 0
    %66 = vperm.xlu0 %65, %v58
    %v67 = vpop.permute.xlu0 %66
    %68 = vset.pattern.permute.xlu0 0
    %69 = vperm.xlu0 %68, %v59
    %v70 = vpop.permute.xlu0 %69
    %71 = vset.pattern.permute.xlu0 0
    %72 = vperm.xlu0 %71, %v60
    %v73 = vpop.permute.xlu0 %72
    %74 = vset.pattern.permute.xlu0 0
    %75 = vperm.xlu0 %74, %v61
    %v76 = vpop.permute.xlu0 %75
    %vm77 = vcmp.eq.s32.totalorder %v64, %v56
    %vm78 = vcmp.eq.s32.totalorder %v67, %v56
    %vm79 = vcmp.eq.s32.totalorder %v70, %v56
    %vm80 = vcmp.eq.s32.totalorder %v73, %v56
    %vm81 = vcmp.eq.s32.totalorder %v76, %v56
    %v82 = vsel %vm77, 1, 0
    %v83 = vsel %vm78, 1, 0
    %v84 = vsel %vm79, 1, 0
    %v85 = vsel %vm80, 1, 0
    %v86 = vsel %vm81, 1, 0
    %v87 = vcvt.s32.f32 %v82
    %v88 = vcvt.s32.f32 %v83
    %v89 = vcvt.s32.f32 %v84
    %v90 = vcvt.s32.f32 %v85
    %v91 = vcvt.s32.f32 %v86
    %v92 = vld [vmem:[%s2] sm:$0xff]
    %v93 = vld [vmem:[%s2 + $0x8] sm:$0xff]
    %v94 = vld [vmem:[%s2 + $0x10] sm:$0xff]
    %v95 = vld [vmem:[%s2 + $0x18] sm:$0xff]
    %v96 = vld [vmem:[%s2 + $0x20] sm:$0xff]
    %97 = vset.pattern.permute.xlu0 0
    %98 = vperm.xlu0 %97, %v92
    %v99 = vpop.permute.xlu0 %98
    %100 = vset.pattern.permute.xlu0 0
    %101 = vperm.xlu0 %100, %v93
    %v102 = vpop.permute.xlu0 %101
    %103 = vset.pattern.permute.xlu0 0
    %104 = vperm.xlu0 %103, %v94
    %v105 = vpop.permute.xlu0 %104
    %106 = vset.pattern.permute.xlu0 0
    %107 = vperm.xlu0 %106, %v95
    %v108 = vpop.permute.xlu0 %107
    %109 = vset.pattern.permute.xlu0 0
    %110 = vperm.xlu0 %109, %v96
    %v111 = vpop.permute.xlu0 %110
    %vm112 = vcmp.eq.s32.totalorder %v99, %v56
    %vm113 = vcmp.eq.s32.totalorder %v102, %v56
    %vm114 = vcmp.eq.s32.totalorder %v105, %v56
    %vm115 = vcmp.eq.s32.totalorder %v108, %v56
    %vm116 = vcmp.eq.s32.totalorder %v111, %v56
    %v117 = vsel %vm112, 1, 0
    %v118 = vsel %vm113, 1, 0
    %v119 = vsel %vm114, 1, 0
    %v120 = vsel %vm115, 1, 0
    %v121 = vsel %vm116, 1, 0
    %v122 = vcvt.s32.f32 %v117
    %v123 = vcvt.s32.f32 %v118
    %v124 = vcvt.s32.f32 %v119
    %v125 = vcvt.s32.f32 %v120
    %v126 = vcvt.s32.f32 %v121
    %v127 = vlaneseq
    %v128 = vshrl.u32 %v127, 7
    %v129 = vadd.s32 %v128, 8
    %v130 = vld [vmem:[%s3] sm:$0x1]
    %v131 = vperm.slane %v130, 0
    %vm132 = vcmp.eq.s32.totalorder %v131, %v128
    %vm133 = vcmp.eq.s32.totalorder %v131, %v129
    %v134 = vsel %vm132, 1, 0
    %v135 = vsel %vm133, 1, 0
    %v136 = vcvt.s32.f32 %v134
    %v137 = vcvt.s32.f32 %v135
    %v138 = vld [vmem:[%s4] sm:$0x1]
    %v139 = vperm.slane %v138, 0
    %vm140 = vcmp.eq.s32.totalorder %v139, %v128
    %v141 = vsel %vm140, 1, 0
    %v142 = vcvt.s32.f32 %v141
    %v143 = vld [vmem:[%s0] sm:$0xff]
    %v144 = vld [vmem:[%s0 + $0x8] sm:$0xff]
    %v145 = vld [vmem:[%s7] sm:$0xff]
    %v146 = vld [vmem:[%s7 + $0x8] sm:$0xff]
    %v147 = vld [vmem:[%s7 + $0x10] sm:$0xff]
    %v148 = vld [vmem:[%s7 + $0x18] sm:$0xff]
    %vm149 = vcmask 261120
    %v151 = vsel %vm149, %v143, 0
    %v154 = vsel %vm149, %v144, 0
    %156 = vmatpush.msra.mxu0 0.0
    %157 = vmatpush.msra.mxu0 0.0
    %158 = vmatpush.msra.mxu0 0.0
    %159 = vmatpush.msra.mxu0 0.0
    %160 = vmatpush.msra.mxu0 0.0
    %161 = vmatpush.msra.mxu0 0.0
    %162 = vmatpush.msra.mxu0 0.0
    %163 = vmatpush.msra.mxu0 0.0
    %164 = vmatpush.msra.mxu0 0.0
    %165 = vmatpush.msra.mxu0 0.0
    %166 = vmatpush.msra.mxu0 0.0
    %167 = vmatpush.msra.mxu0 0.0
    %v168 = vand.u32 %v148, 4294901760
    %169 = vmatpush.msra.mxu0 %v168
    %v170 = vand.u32 %v147, 4294901760
    %171 = vmatpush.msra.mxu0 %v170
    %v172 = vand.u32 %v146, 4294901760
    %173 = vmatpush.msra.mxu0 %v172
    %v174 = vand.u32 %v145, 4294901760
    %175 = vmatpush.msra.mxu0 %v174
    %v176 = vand.u32 %v151, 4294901760
    %v177 = vsub.f32 %v151, %v176
    %v178 = vand.u32 %v177, 4294901760
    %v179 = vsub.f32 %v177, %v178
    %v180 = vand.u32 %v179, 4294901760
    %181 = vmatmul.f32.gmra.mxu0 %v180
    %v182 = vpop.f32.mrf.mxu0
    %v183 = vadd.f32 0.0, %v182
    %v184 = vand.u32 %v154, 4294901760
    %v185 = vsub.f32 %v154, %v184
    %v186 = vand.u32 %v185, 4294901760
    %v187 = vsub.f32 %v185, %v186
    %v188 = vand.u32 %v187, 4294901760
    %189 = vmatmul.f32.gmra.mxu0 %v188
    %v190 = vpop.f32.mrf.mxu0
    %v191 = vadd.f32 0.0, %v190
    %192 = vdwg.mxu0
    %193 = vmatpush.msra.mxu0 0.0
    %194 = vmatpush.msra.mxu0 0.0
    %195 = vmatpush.msra.mxu0 0.0
    %196 = vmatpush.msra.mxu0 0.0
    %197 = vmatpush.msra.mxu0 0.0
    %198 = vmatpush.msra.mxu0 0.0
    %199 = vmatpush.msra.mxu0 0.0
    %200 = vmatpush.msra.mxu0 0.0
    %201 = vmatpush.msra.mxu0 0.0
    %202 = vmatpush.msra.mxu0 0.0
    %203 = vmatpush.msra.mxu0 0.0
    %204 = vmatpush.msra.mxu0 0.0
    %v205 = vand.u32 %v148, 4294901760
    %v206 = vsub.f32 %v148, %v205
    %v207 = vand.u32 %v206, 4294901760
    %v208 = vsub.f32 %v206, %v207
    %v209 = vand.u32 %v208, 4294901760
    %210 = vmatpush.msra.mxu0 %v209
    %v211 = vand.u32 %v147, 4294901760
    %v212 = vsub.f32 %v147, %v211
    %v213 = vand.u32 %v212, 4294901760
    %v214 = vsub.f32 %v212, %v213
    %v215 = vand.u32 %v214, 4294901760
    %216 = vmatpush.msra.mxu0 %v215
    %v217 = vand.u32 %v146, 4294901760
    %v218 = vsub.f32 %v146, %v217
    %v219 = vand.u32 %v218, 4294901760
    %v220 = vsub.f32 %v218, %v219
    %v221 = vand.u32 %v220, 4294901760
    %222 = vmatpush.msra.mxu0 %v221
    %v223 = vand.u32 %v145, 4294901760
    %v224 = vsub.f32 %v145, %v223
    %v225 = vand.u32 %v224, 4294901760
    %v226 = vsub.f32 %v224, %v225
    %v227 = vand.u32 %v226, 4294901760
    %228 = vmatpush.msra.mxu0 %v227
    %v229 = vand.u32 %v151, 4294901760
    %230 = vmatmul.f32.gmra.mxu0 %v229
    %v231 = vpop.f32.mrf.mxu0
    %v232 = vadd.f32 %v183, %v231
    %v233 = vand.u32 %v154, 4294901760
    %234 = vmatmul.f32.gmra.mxu0 %v233
    %v235 = vpop.f32.mrf.mxu0
    %v236 = vadd.f32 %v191, %v235
    %237 = vdwg.mxu0
    %238 = vmatpush.msra.mxu0 0.0
    %239 = vmatpush.msra.mxu0 0.0
    %240 = vmatpush.msra.mxu0 0.0
    %241 = vmatpush.msra.mxu0 0.0
    %242 = vmatpush.msra.mxu0 0.0
    %243 = vmatpush.msra.mxu0 0.0
    %244 = vmatpush.msra.mxu0 0.0
    %245 = vmatpush.msra.mxu0 0.0
    %246 = vmatpush.msra.mxu0 0.0
    %247 = vmatpush.msra.mxu0 0.0
    %248 = vmatpush.msra.mxu0 0.0
    %249 = vmatpush.msra.mxu0 0.0
    %v250 = vand.u32 %v148, 4294901760
    %v251 = vsub.f32 %v148, %v250
    %252 = vmatpush.msra.mxu0 %v251
    %v253 = vand.u32 %v147, 4294901760
    %v254 = vsub.f32 %v147, %v253
    %255 = vmatpush.msra.mxu0 %v254
    %v256 = vand.u32 %v146, 4294901760
    %v257 = vsub.f32 %v146, %v256
    %258 = vmatpush.msra.mxu0 %v257
    %v259 = vand.u32 %v145, 4294901760
    %v260 = vsub.f32 %v145, %v259
    %261 = vmatpush.msra.mxu0 %v260
    %v262 = vand.u32 %v151, 4294901760
    %v263 = vsub.f32 %v151, %v262
    %264 = vmatmul.f32.gmra.mxu0 %v263
    %v265 = vpop.f32.mrf.mxu0
    %v266 = vadd.f32 %v232, %v265
    %v267 = vand.u32 %v154, 4294901760
    %v268 = vsub.f32 %v154, %v267
    %269 = vmatmul.f32.gmra.mxu0 %v268
    %v270 = vpop.f32.mrf.mxu0
    %v271 = vadd.f32 %v236, %v270
    %272 = vdwg.mxu0
    %273 = vmatpush.msra.mxu0 0.0
    %274 = vmatpush.msra.mxu0 0.0
    %275 = vmatpush.msra.mxu0 0.0
    %276 = vmatpush.msra.mxu0 0.0
    %277 = vmatpush.msra.mxu0 0.0
    %278 = vmatpush.msra.mxu0 0.0
    %279 = vmatpush.msra.mxu0 0.0
    %280 = vmatpush.msra.mxu0 0.0
    %281 = vmatpush.msra.mxu0 0.0
    %282 = vmatpush.msra.mxu0 0.0
    %283 = vmatpush.msra.mxu0 0.0
    %284 = vmatpush.msra.mxu0 0.0
    %v285 = vand.u32 %v148, 4294901760
    %286 = vmatpush.msra.mxu0 %v285
    %v287 = vand.u32 %v147, 4294901760
    %288 = vmatpush.msra.mxu0 %v287
    %v289 = vand.u32 %v146, 4294901760
    %290 = vmatpush.msra.mxu0 %v289
    %v291 = vand.u32 %v145, 4294901760
    %292 = vmatpush.msra.mxu0 %v291
    %v293 = vand.u32 %v151, 4294901760
    %v294 = vsub.f32 %v151, %v293
    %v295 = vand.u32 %v294, 4294901760
    %296 = vmatmul.f32.gmra.mxu0 %v295
    %v297 = vpop.f32.mrf.mxu0
    %v298 = vadd.f32 %v266, %v297
    %v299 = vand.u32 %v154, 4294901760
    %v300 = vsub.f32 %v154, %v299
    %v301 = vand.u32 %v300, 4294901760
    %302 = vmatmul.f32.gmra.mxu0 %v301
    %v303 = vpop.f32.mrf.mxu0
    %v304 = vadd.f32 %v271, %v303
    %305 = vdwg.mxu0
    %306 = vmatpush.msra.mxu0 0.0
    %307 = vmatpush.msra.mxu0 0.0
    %308 = vmatpush.msra.mxu0 0.0
    %309 = vmatpush.msra.mxu0 0.0
    %310 = vmatpush.msra.mxu0 0.0
    %311 = vmatpush.msra.mxu0 0.0
    %312 = vmatpush.msra.mxu0 0.0
    %313 = vmatpush.msra.mxu0 0.0
    %314 = vmatpush.msra.mxu0 0.0
    %315 = vmatpush.msra.mxu0 0.0
    %316 = vmatpush.msra.mxu0 0.0
    %317 = vmatpush.msra.mxu0 0.0
    %v318 = vand.u32 %v148, 4294901760
    %v319 = vsub.f32 %v148, %v318
    %v320 = vand.u32 %v319, 4294901760
    %321 = vmatpush.msra.mxu0 %v320
    %v322 = vand.u32 %v147, 4294901760
    %v323 = vsub.f32 %v147, %v322
    %v324 = vand.u32 %v323, 4294901760
    %325 = vmatpush.msra.mxu0 %v324
    %v326 = vand.u32 %v146, 4294901760
    %v327 = vsub.f32 %v146, %v326
    %v328 = vand.u32 %v327, 4294901760
    %329 = vmatpush.msra.mxu0 %v328
    %v330 = vand.u32 %v145, 4294901760
    %v331 = vsub.f32 %v145, %v330
    %v332 = vand.u32 %v331, 4294901760
    %333 = vmatpush.msra.mxu0 %v332
    %v334 = vand.u32 %v151, 4294901760
    %335 = vmatmul.f32.gmra.mxu0 %v334
    %v336 = vpop.f32.mrf.mxu0
    %v337 = vadd.f32 %v298, %v336
    %v338 = vand.u32 %v154, 4294901760
    %339 = vmatmul.f32.gmra.mxu0 %v338
    %v340 = vpop.f32.mrf.mxu0
    %v341 = vadd.f32 %v304, %v340
    %342 = vdwg.mxu0
    %343 = vmatpush.msra.mxu0 0.0
    %344 = vmatpush.msra.mxu0 0.0
    %345 = vmatpush.msra.mxu0 0.0
    %346 = vmatpush.msra.mxu0 0.0
    %347 = vmatpush.msra.mxu0 0.0
    %348 = vmatpush.msra.mxu0 0.0
    %349 = vmatpush.msra.mxu0 0.0
    %350 = vmatpush.msra.mxu0 0.0
    %351 = vmatpush.msra.mxu0 0.0
    %352 = vmatpush.msra.mxu0 0.0
    %353 = vmatpush.msra.mxu0 0.0
    %354 = vmatpush.msra.mxu0 0.0
    %v355 = vand.u32 %v148, 4294901760
    %356 = vmatpush.msra.mxu0 %v355
    %v357 = vand.u32 %v147, 4294901760
    %358 = vmatpush.msra.mxu0 %v357
    %v359 = vand.u32 %v146, 4294901760
    %360 = vmatpush.msra.mxu0 %v359
    %v361 = vand.u32 %v145, 4294901760
    %362 = vmatpush.msra.mxu0 %v361
    %v363 = vand.u32 %v151, 4294901760
    %364 = vmatmul.f32.gmra.mxu0 %v363
    %v365 = vpop.f32.mrf.mxu0
    %v366 = vadd.f32 %v337, %v365
    %v367 = vand.u32 %v154, 4294901760
    %368 = vmatmul.f32.gmra.mxu0 %v367
    %v369 = vpop.f32.mrf.mxu0
    %v370 = vadd.f32 %v341, %v369
    %371 = vdwg.mxu0
    %v372 = vld [vmem:[%s5] sm:$0xff]
    %v373 = vld [vmem:[%s5 + $0x8] sm:$0xff]
    %v374 = vld [vmem:[%s5 + $0x10] sm:$0xff]
    %v375 = vld [vmem:[%s5 + $0x18] sm:$0xff]
    %v376 = vld [vmem:[%s5 + $0x20] sm:$0xff]
    %v377 = vld [vmem:[%s8] sm:$0x1]
    %v378 = vperm.slane %v377, 0
    %v379 = vmul.f32 %v372, %v378
    %v380 = vmul.f32 %v373, %v378
    %v381 = vmul.f32 %v374, %v378
    %v382 = vmul.f32 %v375, %v378
    %v383 = vmul.f32 %v376, %v378
    %vm384 = vcmask 64512
    %v385 = vsel %vm384, %v379, 0.0
    %386 = vadd.xlane.f32.xlu0 %v385
    %v387 = vpop.xlane.xlu0 %386
    %v388 = vsel %vm384, %v380, 0.0
    %389 = vadd.xlane.f32.xlu0 %v388
    %v390 = vpop.xlane.xlu0 %389
    %v391 = vsel %vm384, %v381, 0.0
    %392 = vadd.xlane.f32.xlu0 %v391
    %v393 = vpop.xlane.xlu0 %392
    %v394 = vsel %vm384, %v382, 0.0
    %395 = vadd.xlane.f32.xlu0 %v394
    %v396 = vpop.xlane.xlu0 %395
    %v397 = vsel %vm384, %v383, 0.0
    %398 = vadd.xlane.f32.xlu0 %v397
    %v399 = vpop.xlane.xlu0 %398
    %vm400 = vcmask 130048
    %v402 = vsel %vm400, %v87, 0
    %v405 = vsel %vm400, %v88, 0
    %v408 = vsel %vm400, %v89, 0
    %v411 = vsel %vm400, %v90, 0
    %v414 = vsel %vm400, %v91, 0
    %416 = vmatpush.msra.mxu0 0.0
    %417 = vmatpush.msra.mxu0 0.0
    %418 = vmatpush.msra.mxu0 0.0
    %419 = vmatpush.msra.mxu0 0.0
    %420 = vmatpush.msra.mxu0 0.0
    %421 = vmatpush.msra.mxu0 0.0
    %422 = vmatpush.msra.mxu0 0.0
    %423 = vmatpush.msra.mxu0 0.0
    %424 = vmatpush.msra.mxu0 0.0
    %425 = vmatpush.msra.mxu0 0.0
    %426 = vmatpush.msra.mxu0 0.0
    %427 = vmatpush.msra.mxu0 0.0
    %428 = vmatpush.msra.mxu0 0.0
    %429 = vmatpush.msra.mxu0 0.0
    %v430 = vand.u32 %v370, 4294901760
    %431 = vmatpush.msra.mxu0 %v430
    %v432 = vand.u32 %v366, 4294901760
    %433 = vmatpush.msra.mxu0 %v432
    %v434 = vand.u32 %v402, 4294901760
    %v435 = vsub.f32 %v402, %v434
    %v436 = vand.u32 %v435, 4294901760
    %v437 = vsub.f32 %v435, %v436
    %v438 = vand.u32 %v437, 4294901760
    %439 = vmatmul.f32.gmra.mxu0 %v438
    %v440 = vpop.f32.mrf.mxu0
    %v441 = vadd.f32 0.0, %v440
    %v442 = vand.u32 %v405, 4294901760
    %v443 = vsub.f32 %v405, %v442
    %v444 = vand.u32 %v443, 4294901760
    %v445 = vsub.f32 %v443, %v444
    %v446 = vand.u32 %v445, 4294901760
    %447 = vmatmul.f32.gmra.mxu0 %v446
    %v448 = vpop.f32.mrf.mxu0
    %v449 = vadd.f32 0.0, %v448
    %v450 = vand.u32 %v408, 4294901760
    %v451 = vsub.f32 %v408, %v450
    %v452 = vand.u32 %v451, 4294901760
    %v453 = vsub.f32 %v451, %v452
    %v454 = vand.u32 %v453, 4294901760
    %455 = vmatmul.f32.gmra.mxu0 %v454
    %v456 = vpop.f32.mrf.mxu0
    %v457 = vadd.f32 0.0, %v456
    %v458 = vand.u32 %v411, 4294901760
    %v459 = vsub.f32 %v411, %v458
    %v460 = vand.u32 %v459, 4294901760
    %v461 = vsub.f32 %v459, %v460
    %v462 = vand.u32 %v461, 4294901760
    %463 = vmatmul.f32.gmra.mxu0 %v462
    %v464 = vpop.f32.mrf.mxu0
    %v465 = vadd.f32 0.0, %v464
    %v466 = vand.u32 %v414, 4294901760
    %v467 = vsub.f32 %v414, %v466
    %v468 = vand.u32 %v467, 4294901760
    %v469 = vsub.f32 %v467, %v468
    %v470 = vand.u32 %v469, 4294901760
    %471 = vmatmul.f32.gmra.mxu0 %v470
    %v472 = vpop.f32.mrf.mxu0
    %v473 = vadd.f32 0.0, %v472
    %474 = vdwg.mxu0
    %475 = vmatpush.msra.mxu0 0.0
    %476 = vmatpush.msra.mxu0 0.0
    %477 = vmatpush.msra.mxu0 0.0
    %478 = vmatpush.msra.mxu0 0.0
    %479 = vmatpush.msra.mxu0 0.0
    %480 = vmatpush.msra.mxu0 0.0
    %481 = vmatpush.msra.mxu0 0.0
    %482 = vmatpush.msra.mxu0 0.0
    %483 = vmatpush.msra.mxu0 0.0
    %484 = vmatpush.msra.mxu0 0.0
    %485 = vmatpush.msra.mxu0 0.0
    %486 = vmatpush.msra.mxu0 0.0
    %487 = vmatpush.msra.mxu0 0.0
    %488 = vmatpush.msra.mxu0 0.0
    %v489 = vand.u32 %v370, 4294901760
    %v490 = vsub.f32 %v370, %v489
    %v491 = vand.u32 %v490, 4294901760
    %v492 = vsub.f32 %v490, %v491
    %v493 = vand.u32 %v492, 4294901760
    %494 = vmatpush.msra.mxu0 %v493
    %v495 = vand.u32 %v366, 4294901760
    %v496 = vsub.f32 %v366, %v495
    %v497 = vand.u32 %v496, 4294901760
    %v498 = vsub.f32 %v496, %v497
    %v499 = vand.u32 %v498, 4294901760
    %500 = vmatpush.msra.mxu0 %v499
    %v501 = vand.u32 %v402, 4294901760
    %502 = vmatmul.f32.gmra.mxu0 %v501
    %v503 = vpop.f32.mrf.mxu0
    %v504 = vadd.f32 %v441, %v503
    %v505 = vand.u32 %v405, 4294901760
    %506 = vmatmul.f32.gmra.mxu0 %v505
    %v507 = vpop.f32.mrf.mxu0
    %v508 = vadd.f32 %v449, %v507
    %v509 = vand.u32 %v408, 4294901760
    %510 = vmatmul.f32.gmra.mxu0 %v509
    %v511 = vpop.f32.mrf.mxu0
    %v512 = vadd.f32 %v457, %v511
    %v513 = vand.u32 %v411, 4294901760
    %514 = vmatmul.f32.gmra.mxu0 %v513
    %v515 = vpop.f32.mrf.mxu0
    %v516 = vadd.f32 %v465, %v515
    %v517 = vand.u32 %v414, 4294901760
    %518 = vmatmul.f32.gmra.mxu0 %v517
    %v519 = vpop.f32.mrf.mxu0
    %v520 = vadd.f32 %v473, %v519
    %521 = vdwg.mxu0
    %522 = vmatpush.msra.mxu0 0.0
    %523 = vmatpush.msra.mxu0 0.0
    %524 = vmatpush.msra.mxu0 0.0
    %525 = vmatpush.msra.mxu0 0.0
    %526 = vmatpush.msra.mxu0 0.0
    %527 = vmatpush.msra.mxu0 0.0
    %528 = vmatpush.msra.mxu0 0.0
    %529 = vmatpush.msra.mxu0 0.0
    %530 = vmatpush.msra.mxu0 0.0
    %531 = vmatpush.msra.mxu0 0.0
    %532 = vmatpush.msra.mxu0 0.0
    %533 = vmatpush.msra.mxu0 0.0
    %534 = vmatpush.msra.mxu0 0.0
    %535 = vmatpush.msra.mxu0 0.0
    %v536 = vand.u32 %v370, 4294901760
    %v537 = vsub.f32 %v370, %v536
    %538 = vmatpush.msra.mxu0 %v537
    %v539 = vand.u32 %v366, 4294901760
    %v540 = vsub.f32 %v366, %v539
    %541 = vmatpush.msra.mxu0 %v540
    %v542 = vand.u32 %v402, 4294901760
    %v543 = vsub.f32 %v402, %v542
    %544 = vmatmul.f32.gmra.mxu0 %v543
    %v545 = vpop.f32.mrf.mxu0
    %v546 = vadd.f32 %v504, %v545
    %v547 = vand.u32 %v405, 4294901760
    %v548 = vsub.f32 %v405, %v547
    %549 = vmatmul.f32.gmra.mxu0 %v548
    %v550 = vpop.f32.mrf.mxu0
    %v551 = vadd.f32 %v508, %v550
    %v552 = vand.u32 %v408, 4294901760
    %v553 = vsub.f32 %v408, %v552
    %554 = vmatmul.f32.gmra.mxu0 %v553
    %v555 = vpop.f32.mrf.mxu0
    %v556 = vadd.f32 %v512, %v555
    %v557 = vand.u32 %v411, 4294901760
    %v558 = vsub.f32 %v411, %v557
    %559 = vmatmul.f32.gmra.mxu0 %v558
    %v560 = vpop.f32.mrf.mxu0
    %v561 = vadd.f32 %v516, %v560
    %v562 = vand.u32 %v414, 4294901760
    %v563 = vsub.f32 %v414, %v562
    %564 = vmatmul.f32.gmra.mxu0 %v563
    %v565 = vpop.f32.mrf.mxu0
    %v566 = vadd.f32 %v520, %v565
    %567 = vdwg.mxu0
    %568 = vmatpush.msra.mxu0 0.0
    %569 = vmatpush.msra.mxu0 0.0
    %570 = vmatpush.msra.mxu0 0.0
    %571 = vmatpush.msra.mxu0 0.0
    %572 = vmatpush.msra.mxu0 0.0
    %573 = vmatpush.msra.mxu0 0.0
    %574 = vmatpush.msra.mxu0 0.0
    %575 = vmatpush.msra.mxu0 0.0
    %576 = vmatpush.msra.mxu0 0.0
    %577 = vmatpush.msra.mxu0 0.0
    %578 = vmatpush.msra.mxu0 0.0
    %579 = vmatpush.msra.mxu0 0.0
    %580 = vmatpush.msra.mxu0 0.0
    %581 = vmatpush.msra.mxu0 0.0
    %v582 = vand.u32 %v370, 4294901760
    %583 = vmatpush.msra.mxu0 %v582
    %v584 = vand.u32 %v366, 4294901760
    %585 = vmatpush.msra.mxu0 %v584
    %v586 = vand.u32 %v402, 4294901760
    %v587 = vsub.f32 %v402, %v586
    %v588 = vand.u32 %v587, 4294901760
    %589 = vmatmul.f32.gmra.mxu0 %v588
    %v590 = vpop.f32.mrf.mxu0
    %v591 = vadd.f32 %v546, %v590
    %v592 = vand.u32 %v405, 4294901760
    %v593 = vsub.f32 %v405, %v592
    %v594 = vand.u32 %v593, 4294901760
    %595 = vmatmul.f32.gmra.mxu0 %v594
    %v596 = vpop.f32.mrf.mxu0
    %v597 = vadd.f32 %v551, %v596
    %v598 = vand.u32 %v408, 4294901760
    %v599 = vsub.f32 %v408, %v598
    %v600 = vand.u32 %v599, 4294901760
    %601 = vmatmul.f32.gmra.mxu0 %v600
    %v602 = vpop.f32.mrf.mxu0
    %v603 = vadd.f32 %v556, %v602
    %v604 = vand.u32 %v411, 4294901760
    %v605 = vsub.f32 %v411, %v604
    %v606 = vand.u32 %v605, 4294901760
    %607 = vmatmul.f32.gmra.mxu0 %v606
    %v608 = vpop.f32.mrf.mxu0
    %v609 = vadd.f32 %v561, %v608
    %v610 = vand.u32 %v414, 4294901760
    %v611 = vsub.f32 %v414, %v610
    %v612 = vand.u32 %v611, 4294901760
    %613 = vmatmul.f32.gmra.mxu0 %v612
    %v614 = vpop.f32.mrf.mxu0
    %v615 = vadd.f32 %v566, %v614
    %616 = vdwg.mxu0
    %617 = vmatpush.msra.mxu0 0.0
    %618 = vmatpush.msra.mxu0 0.0
    %619 = vmatpush.msra.mxu0 0.0
    %620 = vmatpush.msra.mxu0 0.0
    %621 = vmatpush.msra.mxu0 0.0
    %622 = vmatpush.msra.mxu0 0.0
    %623 = vmatpush.msra.mxu0 0.0
    %624 = vmatpush.msra.mxu0 0.0
    %625 = vmatpush.msra.mxu0 0.0
    %626 = vmatpush.msra.mxu0 0.0
    %627 = vmatpush.msra.mxu0 0.0
    %628 = vmatpush.msra.mxu0 0.0
    %629 = vmatpush.msra.mxu0 0.0
    %630 = vmatpush.msra.mxu0 0.0
    %v631 = vand.u32 %v370, 4294901760
    %v632 = vsub.f32 %v370, %v631
    %v633 = vand.u32 %v632, 4294901760
    %634 = vmatpush.msra.mxu0 %v633
    %v635 = vand.u32 %v366, 4294901760
    %v636 = vsub.f32 %v366, %v635
    %v637 = vand.u32 %v636, 4294901760
    %638 = vmatpush.msra.mxu0 %v637
    %v639 = vand.u32 %v402, 4294901760
    %640 = vmatmul.f32.gmra.mxu0 %v639
    %v641 = vpop.f32.mrf.mxu0
    %v642 = vadd.f32 %v591, %v641
    %v643 = vand.u32 %v405, 4294901760
    %644 = vmatmul.f32.gmra.mxu0 %v643
    %v645 = vpop.f32.mrf.mxu0
    %v646 = vadd.f32 %v597, %v645
    %v647 = vand.u32 %v408, 4294901760
    %648 = vmatmul.f32.gmra.mxu0 %v647
    %v649 = vpop.f32.mrf.mxu0
    %v650 = vadd.f32 %v603, %v649
    %v651 = vand.u32 %v411, 4294901760
    %652 = vmatmul.f32.gmra.mxu0 %v651
    %v653 = vpop.f32.mrf.mxu0
    %v654 = vadd.f32 %v609, %v653
    %v655 = vand.u32 %v414, 4294901760
    %656 = vmatmul.f32.gmra.mxu0 %v655
    %v657 = vpop.f32.mrf.mxu0
    %v658 = vadd.f32 %v615, %v657
    %659 = vdwg.mxu0
    %660 = vmatpush.msra.mxu0 0.0
    %661 = vmatpush.msra.mxu0 0.0
    %662 = vmatpush.msra.mxu0 0.0
    %663 = vmatpush.msra.mxu0 0.0
    %664 = vmatpush.msra.mxu0 0.0
    %665 = vmatpush.msra.mxu0 0.0
    %666 = vmatpush.msra.mxu0 0.0
    %667 = vmatpush.msra.mxu0 0.0
    %668 = vmatpush.msra.mxu0 0.0
    %669 = vmatpush.msra.mxu0 0.0
    %670 = vmatpush.msra.mxu0 0.0
    %671 = vmatpush.msra.mxu0 0.0
    %672 = vmatpush.msra.mxu0 0.0
    %673 = vmatpush.msra.mxu0 0.0
    %v674 = vand.u32 %v370, 4294901760
    %675 = vmatpush.msra.mxu0 %v674
    %v676 = vand.u32 %v366, 4294901760
    %677 = vmatpush.msra.mxu0 %v676
    %v678 = vand.u32 %v402, 4294901760
    %679 = vmatmul.f32.gmra.mxu0 %v678
    %v680 = vpop.f32.mrf.mxu0
    %v681 = vadd.f32 %v642, %v680
    %v682 = vand.u32 %v405, 4294901760
    %683 = vmatmul.f32.gmra.mxu0 %v682
    %v684 = vpop.f32.mrf.mxu0
    %v685 = vadd.f32 %v646, %v684
    %v686 = vand.u32 %v408, 4294901760
    %687 = vmatmul.f32.gmra.mxu0 %v686
    %v688 = vpop.f32.mrf.mxu0
    %v689 = vadd.f32 %v650, %v688
    %v690 = vand.u32 %v411, 4294901760
    %691 = vmatmul.f32.gmra.mxu0 %v690
    %v692 = vpop.f32.mrf.mxu0
    %v693 = vadd.f32 %v654, %v692
    %v694 = vand.u32 %v414, 4294901760
    %695 = vmatmul.f32.gmra.mxu0 %v694
    %v696 = vpop.f32.mrf.mxu0
    %v697 = vadd.f32 %v658, %v696
    %698 = vdwg.mxu0
    %701 = vrot.lane.b32.xlu0 %v366, 96
    %v702 = vpop.permute.xlu0 %701
    %703 = vrot.lane.b32.xlu0 %v370, 96
    %v704 = vpop.permute.xlu0 %703
    %v708 = vsel %vm400, %v122, 0
    %v711 = vsel %vm400, %v123, 0
    %v714 = vsel %vm400, %v124, 0
    %v717 = vsel %vm400, %v125, 0
    %v720 = vsel %vm400, %v126, 0
    %722 = vmatpush.msra.mxu0 0.0
    %723 = vmatpush.msra.mxu0 0.0
    %724 = vmatpush.msra.mxu0 0.0
    %725 = vmatpush.msra.mxu0 0.0
    %726 = vmatpush.msra.mxu0 0.0
    %727 = vmatpush.msra.mxu0 0.0
    %728 = vmatpush.msra.mxu0 0.0
    %729 = vmatpush.msra.mxu0 0.0
    %730 = vmatpush.msra.mxu0 0.0
    %731 = vmatpush.msra.mxu0 0.0
    %732 = vmatpush.msra.mxu0 0.0
    %733 = vmatpush.msra.mxu0 0.0
    %734 = vmatpush.msra.mxu0 0.0
    %735 = vmatpush.msra.mxu0 0.0
    %v736 = vand.u32 %v704, 4294901760
    %737 = vmatpush.msra.mxu0 %v736
    %v738 = vand.u32 %v702, 4294901760
    %739 = vmatpush.msra.mxu0 %v738
    %v740 = vand.u32 %v708, 4294901760
    %v741 = vsub.f32 %v708, %v740
    %v742 = vand.u32 %v741, 4294901760
    %v743 = vsub.f32 %v741, %v742
    %v744 = vand.u32 %v743, 4294901760
    %745 = vmatmul.f32.gmra.mxu0 %v744
    %v746 = vpop.f32.mrf.mxu0
    %v747 = vadd.f32 0.0, %v746
    %v748 = vand.u32 %v711, 4294901760
    %v749 = vsub.f32 %v711, %v748
    %v750 = vand.u32 %v749, 4294901760
    %v751 = vsub.f32 %v749, %v750
    %v752 = vand.u32 %v751, 4294901760
    %753 = vmatmul.f32.gmra.mxu0 %v752
    %v754 = vpop.f32.mrf.mxu0
    %v755 = vadd.f32 0.0, %v754
    %v756 = vand.u32 %v714, 4294901760
    %v757 = vsub.f32 %v714, %v756
    %v758 = vand.u32 %v757, 4294901760
    %v759 = vsub.f32 %v757, %v758
    %v760 = vand.u32 %v759, 4294901760
    %761 = vmatmul.f32.gmra.mxu0 %v760
    %v762 = vpop.f32.mrf.mxu0
    %v763 = vadd.f32 0.0, %v762
    %v764 = vand.u32 %v717, 4294901760
    %v765 = vsub.f32 %v717, %v764
    %v766 = vand.u32 %v765, 4294901760
    %v767 = vsub.f32 %v765, %v766
    %v768 = vand.u32 %v767, 4294901760
    %769 = vmatmul.f32.gmra.mxu0 %v768
    %v770 = vpop.f32.mrf.mxu0
    %v771 = vadd.f32 0.0, %v770
    %v772 = vand.u32 %v720, 4294901760
    %v773 = vsub.f32 %v720, %v772
    %v774 = vand.u32 %v773, 4294901760
    %v775 = vsub.f32 %v773, %v774
    %v776 = vand.u32 %v775, 4294901760
    %777 = vmatmul.f32.gmra.mxu0 %v776
    %v778 = vpop.f32.mrf.mxu0
    %v779 = vadd.f32 0.0, %v778
    %780 = vdwg.mxu0
    %781 = vmatpush.msra.mxu0 0.0
    %782 = vmatpush.msra.mxu0 0.0
    %783 = vmatpush.msra.mxu0 0.0
    %784 = vmatpush.msra.mxu0 0.0
    %785 = vmatpush.msra.mxu0 0.0
    %786 = vmatpush.msra.mxu0 0.0
    %787 = vmatpush.msra.mxu0 0.0
    %788 = vmatpush.msra.mxu0 0.0
    %789 = vmatpush.msra.mxu0 0.0
    %790 = vmatpush.msra.mxu0 0.0
    %791 = vmatpush.msra.mxu0 0.0
    %792 = vmatpush.msra.mxu0 0.0
    %793 = vmatpush.msra.mxu0 0.0
    %794 = vmatpush.msra.mxu0 0.0
    %v795 = vand.u32 %v704, 4294901760
    %v796 = vsub.f32 %v704, %v795
    %v797 = vand.u32 %v796, 4294901760
    %v798 = vsub.f32 %v796, %v797
    %v799 = vand.u32 %v798, 4294901760
    %800 = vmatpush.msra.mxu0 %v799
    %v801 = vand.u32 %v702, 4294901760
    %v802 = vsub.f32 %v702, %v801
    %v803 = vand.u32 %v802, 4294901760
    %v804 = vsub.f32 %v802, %v803
    %v805 = vand.u32 %v804, 4294901760
    %806 = vmatpush.msra.mxu0 %v805
    %v807 = vand.u32 %v708, 4294901760
    %808 = vmatmul.f32.gmra.mxu0 %v807
    %v809 = vpop.f32.mrf.mxu0
    %v810 = vadd.f32 %v747, %v809
    %v811 = vand.u32 %v711, 4294901760
    %812 = vmatmul.f32.gmra.mxu0 %v811
    %v813 = vpop.f32.mrf.mxu0
    %v814 = vadd.f32 %v755, %v813
    %v815 = vand.u32 %v714, 4294901760
    %816 = vmatmul.f32.gmra.mxu0 %v815
    %v817 = vpop.f32.mrf.mxu0
    %v818 = vadd.f32 %v763, %v817
    %v819 = vand.u32 %v717, 4294901760
    %820 = vmatmul.f32.gmra.mxu0 %v819
    %v821 = vpop.f32.mrf.mxu0
    %v822 = vadd.f32 %v771, %v821
    %v823 = vand.u32 %v720, 4294901760
    %824 = vmatmul.f32.gmra.mxu0 %v823
    %v825 = vpop.f32.mrf.mxu0
    %v826 = vadd.f32 %v779, %v825
    %827 = vdwg.mxu0
    %828 = vmatpush.msra.mxu0 0.0
    %829 = vmatpush.msra.mxu0 0.0
    %830 = vmatpush.msra.mxu0 0.0
    %831 = vmatpush.msra.mxu0 0.0
    %832 = vmatpush.msra.mxu0 0.0
    %833 = vmatpush.msra.mxu0 0.0
    %834 = vmatpush.msra.mxu0 0.0
    %835 = vmatpush.msra.mxu0 0.0
    %836 = vmatpush.msra.mxu0 0.0
    %837 = vmatpush.msra.mxu0 0.0
    %838 = vmatpush.msra.mxu0 0.0
    %839 = vmatpush.msra.mxu0 0.0
    %840 = vmatpush.msra.mxu0 0.0
    %841 = vmatpush.msra.mxu0 0.0
    %v842 = vand.u32 %v704, 4294901760
    %v843 = vsub.f32 %v704, %v842
    %844 = vmatpush.msra.mxu0 %v843
    %v845 = vand.u32 %v702, 4294901760
    %v846 = vsub.f32 %v702, %v845
    %847 = vmatpush.msra.mxu0 %v846
    %v848 = vand.u32 %v708, 4294901760
    %v849 = vsub.f32 %v708, %v848
    %850 = vmatmul.f32.gmra.mxu0 %v849
    %v851 = vpop.f32.mrf.mxu0
    %v852 = vadd.f32 %v810, %v851
    %v853 = vand.u32 %v711, 4294901760
    %v854 = vsub.f32 %v711, %v853
    %855 = vmatmul.f32.gmra.mxu0 %v854
    %v856 = vpop.f32.mrf.mxu0
    %v857 = vadd.f32 %v814, %v856
    %v858 = vand.u32 %v714, 4294901760
    %v859 = vsub.f32 %v714, %v858
    %860 = vmatmul.f32.gmra.mxu0 %v859
    %v861 = vpop.f32.mrf.mxu0
    %v862 = vadd.f32 %v818, %v861
    %v863 = vand.u32 %v717, 4294901760
    %v864 = vsub.f32 %v717, %v863
    %865 = vmatmul.f32.gmra.mxu0 %v864
    %v866 = vpop.f32.mrf.mxu0
    %v867 = vadd.f32 %v822, %v866
    %v868 = vand.u32 %v720, 4294901760
    %v869 = vsub.f32 %v720, %v868
    %870 = vmatmul.f32.gmra.mxu0 %v869
    %v871 = vpop.f32.mrf.mxu0
    %v872 = vadd.f32 %v826, %v871
    %873 = vdwg.mxu0
    %874 = vmatpush.msra.mxu0 0.0
    %875 = vmatpush.msra.mxu0 0.0
    %876 = vmatpush.msra.mxu0 0.0
    %877 = vmatpush.msra.mxu0 0.0
    %878 = vmatpush.msra.mxu0 0.0
    %879 = vmatpush.msra.mxu0 0.0
    %880 = vmatpush.msra.mxu0 0.0
    %881 = vmatpush.msra.mxu0 0.0
    %882 = vmatpush.msra.mxu0 0.0
    %883 = vmatpush.msra.mxu0 0.0
    %884 = vmatpush.msra.mxu0 0.0
    %885 = vmatpush.msra.mxu0 0.0
    %886 = vmatpush.msra.mxu0 0.0
    %887 = vmatpush.msra.mxu0 0.0
    %v888 = vand.u32 %v704, 4294901760
    %889 = vmatpush.msra.mxu0 %v888
    %v890 = vand.u32 %v702, 4294901760
    %891 = vmatpush.msra.mxu0 %v890
    %v892 = vand.u32 %v708, 4294901760
    %v893 = vsub.f32 %v708, %v892
    %v894 = vand.u32 %v893, 4294901760
    %895 = vmatmul.f32.gmra.mxu0 %v894
    %v896 = vpop.f32.mrf.mxu0
    %v897 = vadd.f32 %v852, %v896
    %v898 = vand.u32 %v711, 4294901760
    %v899 = vsub.f32 %v711, %v898
    %v900 = vand.u32 %v899, 4294901760
    %901 = vmatmul.f32.gmra.mxu0 %v900
    %v902 = vpop.f32.mrf.mxu0
    %v903 = vadd.f32 %v857, %v902
    %v904 = vand.u32 %v714, 4294901760
    %v905 = vsub.f32 %v714, %v904
    %v906 = vand.u32 %v905, 4294901760
    %907 = vmatmul.f32.gmra.mxu0 %v906
    %v908 = vpop.f32.mrf.mxu0
    %v909 = vadd.f32 %v862, %v908
    %v910 = vand.u32 %v717, 4294901760
    %v911 = vsub.f32 %v717, %v910
    %v912 = vand.u32 %v911, 4294901760
    %913 = vmatmul.f32.gmra.mxu0 %v912
    %v914 = vpop.f32.mrf.mxu0
    %v915 = vadd.f32 %v867, %v914
    %v916 = vand.u32 %v720, 4294901760
    %v917 = vsub.f32 %v720, %v916
    %v918 = vand.u32 %v917, 4294901760
    %919 = vmatmul.f32.gmra.mxu0 %v918
    %v920 = vpop.f32.mrf.mxu0
    %v921 = vadd.f32 %v872, %v920
    %922 = vdwg.mxu0
    %923 = vmatpush.msra.mxu0 0.0
    %924 = vmatpush.msra.mxu0 0.0
    %925 = vmatpush.msra.mxu0 0.0
    %926 = vmatpush.msra.mxu0 0.0
    %927 = vmatpush.msra.mxu0 0.0
    %928 = vmatpush.msra.mxu0 0.0
    %929 = vmatpush.msra.mxu0 0.0
    %930 = vmatpush.msra.mxu0 0.0
    %931 = vmatpush.msra.mxu0 0.0
    %932 = vmatpush.msra.mxu0 0.0
    %933 = vmatpush.msra.mxu0 0.0
    %934 = vmatpush.msra.mxu0 0.0
    %935 = vmatpush.msra.mxu0 0.0
    %936 = vmatpush.msra.mxu0 0.0
    %v937 = vand.u32 %v704, 4294901760
    %v938 = vsub.f32 %v704, %v937
    %v939 = vand.u32 %v938, 4294901760
    %940 = vmatpush.msra.mxu0 %v939
    %v941 = vand.u32 %v702, 4294901760
    %v942 = vsub.f32 %v702, %v941
    %v943 = vand.u32 %v942, 4294901760
    %944 = vmatpush.msra.mxu0 %v943
    %v945 = vand.u32 %v708, 4294901760
    %946 = vmatmul.f32.gmra.mxu0 %v945
    %v947 = vpop.f32.mrf.mxu0
    %v948 = vadd.f32 %v897, %v947
    %v949 = vand.u32 %v711, 4294901760
    %950 = vmatmul.f32.gmra.mxu0 %v949
    %v951 = vpop.f32.mrf.mxu0
    %v952 = vadd.f32 %v903, %v951
    %v953 = vand.u32 %v714, 4294901760
    %954 = vmatmul.f32.gmra.mxu0 %v953
    %v955 = vpop.f32.mrf.mxu0
    %v956 = vadd.f32 %v909, %v955
    %v957 = vand.u32 %v717, 4294901760
    %958 = vmatmul.f32.gmra.mxu0 %v957
    %v959 = vpop.f32.mrf.mxu0
    %v960 = vadd.f32 %v915, %v959
    %v961 = vand.u32 %v720, 4294901760
    %962 = vmatmul.f32.gmra.mxu0 %v961
    %v963 = vpop.f32.mrf.mxu0
    %v964 = vadd.f32 %v921, %v963
    %965 = vdwg.mxu0
    %966 = vmatpush.msra.mxu0 0.0
    %967 = vmatpush.msra.mxu0 0.0
    %968 = vmatpush.msra.mxu0 0.0
    %969 = vmatpush.msra.mxu0 0.0
    %970 = vmatpush.msra.mxu0 0.0
    %971 = vmatpush.msra.mxu0 0.0
    %972 = vmatpush.msra.mxu0 0.0
    %973 = vmatpush.msra.mxu0 0.0
    %974 = vmatpush.msra.mxu0 0.0
    %975 = vmatpush.msra.mxu0 0.0
    %976 = vmatpush.msra.mxu0 0.0
    %977 = vmatpush.msra.mxu0 0.0
    %978 = vmatpush.msra.mxu0 0.0
    %979 = vmatpush.msra.mxu0 0.0
    %v980 = vand.u32 %v704, 4294901760
    %981 = vmatpush.msra.mxu0 %v980
    %v982 = vand.u32 %v702, 4294901760
    %983 = vmatpush.msra.mxu0 %v982
    %v984 = vand.u32 %v708, 4294901760
    %985 = vmatmul.f32.gmra.mxu0 %v984
    %v986 = vpop.f32.mrf.mxu0
    %v987 = vadd.f32 %v948, %v986
    %v988 = vand.u32 %v711, 4294901760
    %989 = vmatmul.f32.gmra.mxu0 %v988
    %v990 = vpop.f32.mrf.mxu0
    %v991 = vadd.f32 %v952, %v990
    %v992 = vand.u32 %v714, 4294901760
    %993 = vmatmul.f32.gmra.mxu0 %v992
    %v994 = vpop.f32.mrf.mxu0
    %v995 = vadd.f32 %v956, %v994
    %v996 = vand.u32 %v717, 4294901760
    %997 = vmatmul.f32.gmra.mxu0 %v996
    %v998 = vpop.f32.mrf.mxu0
    %v999 = vadd.f32 %v960, %v998
    %v1000 = vand.u32 %v720, 4294901760
    %1001 = vmatmul.f32.gmra.mxu0 %v1000
    %v1002 = vpop.f32.mrf.mxu0
    %v1003 = vadd.f32 %v964, %v1002
    %1004 = vdwg.mxu0
    %1010 = vrot.lane.b32.xlu0 %v987, 31
    %v1011 = vpop.permute.xlu0 %1010
    %1012 = vrot.lane.b32.xlu0 %v991, 31
    %v1013 = vpop.permute.xlu0 %1012
    %1014 = vrot.lane.b32.xlu0 %v995, 31
    %v1015 = vpop.permute.xlu0 %1014
    %1016 = vrot.lane.b32.xlu0 %v999, 31
    %v1017 = vpop.permute.xlu0 %1016
    %1018 = vrot.lane.b32.xlu0 %v1003, 31
    %v1019 = vpop.permute.xlu0 %1018
    %v1025 = vadd.f32 %v681, %v1011
    %v1026 = vadd.f32 %v685, %v1013
    %v1027 = vadd.f32 %v689, %v1015
    %v1028 = vadd.f32 %v693, %v1017
    %v1029 = vadd.f32 %v697, %v1019
    %v1030 = vadd.f32 %v1025, %v387
    %v1031 = vadd.f32 %v1026, %v390
    %v1032 = vadd.f32 %v1027, %v393
    %v1033 = vadd.f32 %v1028, %v396
    %v1034 = vadd.f32 %v1029, %v399
    %vm1035 = vcmp.gt.f32.partialorder %v1030, 0.0
    %vm1036 = vcmp.gt.f32.partialorder %v1031, 0.0
    %vm1037 = vcmp.gt.f32.partialorder %v1032, 0.0
    %vm1038 = vcmp.gt.f32.partialorder %v1033, 0.0
    %vm1039 = vcmp.gt.f32.partialorder %v1034, 0.0
    %v1040 = vmul.f32 %v1030, 0.2
    %v1041 = vmul.f32 %v1031, 0.2
    %v1042 = vmul.f32 %v1032, 0.2
    %v1043 = vmul.f32 %v1033, 0.2
    %v1044 = vmul.f32 %v1034, 0.2
    %v1045 = vsel %vm1035, %v1030, %v1040
    %v1046 = vsel %vm1036, %v1031, %v1041
    %v1047 = vsel %vm1037, %v1032, %v1042
    %v1048 = vsel %vm1038, %v1033, %v1043
    %v1049 = vsel %vm1039, %v1034, %v1044
    %vm1050 = vcmp.gt.f32.partialorder %v122, 0.0
    %vm1051 = vcmp.gt.f32.partialorder %v123, 0.0
    %vm1052 = vcmp.gt.f32.partialorder %v124, 0.0
    %vm1053 = vcmp.gt.f32.partialorder %v125, 0.0
    %vm1054 = vcmp.gt.f32.partialorder %v126, 0.0
    %1056 = vset.pattern.permute.xlu0 32
    %1057 = vperm.xlu0 %1056, %v1045
    %v1058 = vpop.permute.xlu0 %1057
    %1061 = vset.pattern.permute.xlu0 32
    %1062 = vperm.xlu0 %1061, %v1046
    %v1063 = vpop.permute.xlu0 %1062
    %1066 = vset.pattern.permute.xlu0 32
    %1067 = vperm.xlu0 %1066, %v1047
    %v1068 = vpop.permute.xlu0 %1067
    %1071 = vset.pattern.permute.xlu0 32
    %1072 = vperm.xlu0 %1071, %v1048
    %v1073 = vpop.permute.xlu0 %1072
    %1076 = vset.pattern.permute.xlu0 32
    %1077 = vperm.xlu0 %1076, %v1049
    %v1078 = vpop.permute.xlu0 %1077
    %v1080 = vsel %vm1050, %v1058, -1e+30
    %v1081 = vsel %vm1051, %v1063, -1e+30
    %v1082 = vsel %vm1052, %v1068, -1e+30
    %v1083 = vsel %vm1053, %v1073, -1e+30
    %v1084 = vsel %vm1054, %v1078, -1e+30
    %v1085 = vsel %vm400, %v1080, -inf
    %v1086 = vsel %vm400, %v1081, -inf
    %v1087 = vsel %vm400, %v1082, -inf
    %v1088 = vsel %vm400, %v1083, -inf
    %v1089 = vsel %vm400, %v1084, -inf
    %v1090 = vmax.f32 %v1085, %v1089
    %v1091 = vmax.f32 %v1090, %v1086
    %v1092 = vmax.f32 %v1087, %v1088
    %v1093 = vmax.f32 %v1091, %v1092
    %v1094 = vrot.slane %v1093, 4
    %v1095 = vmax.f32 %v1093, %v1094
    %v1096 = vrot.slane %v1095, 2
    %v1097 = vmax.f32 %v1095, %v1096
    %v1098 = vrot.slane %v1097, 1
    %v1099 = vmax.f32 %v1097, %v1098
    %v1100 = vmul.f32 %v122, %v1099
    %v1101 = vmul.f32 %v123, %v1099
    %v1102 = vmul.f32 %v124, %v1099
    %v1103 = vmul.f32 %v125, %v1099
    %v1104 = vmul.f32 %v126, %v1099
    %v1105 = vsel %vm400, %v1100, 0.0
    %1106 = vadd.xlane.f32.xlu0 %v1105
    %v1107 = vpop.xlane.xlu0 %1106
    %v1108 = vsel %vm400, %v1101, 0.0
    %1109 = vadd.xlane.f32.xlu0 %v1108
    %v1110 = vpop.xlane.xlu0 %1109
    %v1111 = vsel %vm400, %v1102, 0.0
    %1112 = vadd.xlane.f32.xlu0 %v1111
    %v1113 = vpop.xlane.xlu0 %1112
    %v1114 = vsel %vm400, %v1103, 0.0
    %1115 = vadd.xlane.f32.xlu0 %v1114
    %v1116 = vpop.xlane.xlu0 %1115
    %v1117 = vsel %vm400, %v1104, 0.0
    %1118 = vadd.xlane.f32.xlu0 %v1117
    %v1119 = vpop.xlane.xlu0 %1118
    %v1120 = vsub.f32 %v1045, %v1107
    %v1121 = vsub.f32 %v1046, %v1110
    %v1122 = vsub.f32 %v1047, %v1113
    %v1123 = vsub.f32 %v1048, %v1116
    %v1124 = vsub.f32 %v1049, %v1119
    %v1125 = vmul.f32 %v1120, 1.442695
    %v1126 = vpow.pop %v1125
    %v1127 = vmul.f32 %v1121, 1.442695
    %v1128 = vpow.pop %v1127
    %v1129 = vmul.f32 %v1122, 1.442695
    %v1130 = vpow.pop %v1129
    %v1131 = vmul.f32 %v1123, 1.442695
    %v1132 = vpow.pop %v1131
    %v1133 = vmul.f32 %v1124, 1.442695
    %v1134 = vpow.pop %v1133
    %1136 = vset.pattern.permute.xlu0 32
    %1137 = vperm.xlu0 %1136, %v1126
    %v1138 = vpop.permute.xlu0 %1137
    %1141 = vset.pattern.permute.xlu0 32
    %1142 = vperm.xlu0 %1141, %v1128
    %v1143 = vpop.permute.xlu0 %1142
    %1146 = vset.pattern.permute.xlu0 32
    %1147 = vperm.xlu0 %1146, %v1130
    %v1148 = vpop.permute.xlu0 %1147
    %1151 = vset.pattern.permute.xlu0 32
    %1152 = vperm.xlu0 %1151, %v1132
    %v1153 = vpop.permute.xlu0 %1152
    %1156 = vset.pattern.permute.xlu0 32
    %1157 = vperm.xlu0 %1156, %v1134
    %v1158 = vpop.permute.xlu0 %1157
    %v1160 = vmul.f32 %v1138, %v681
    %v1161 = vmul.f32 %v1143, %v685
    %v1162 = vmul.f32 %v1148, %v689
    %v1163 = vmul.f32 %v1153, %v693
    %v1164 = vmul.f32 %v1158, %v697
    %v1165 = vsel %vm149, %v1160, %v1126
    %v1166 = vsel %vm149, %v1161, %v1128
    %v1167 = vsel %vm149, %v1162, %v1130
    %v1168 = vsel %vm149, %v1163, %v1132
    %v1169 = vsel %vm149, %v1164, %v1134
    %vm1170 = vcmask 326656
    %v1172 = vsel %vm1170, %v136, 0
    %v1175 = vsel %vm1170, %v137, 0
    %1177 = vmatpush.msra.mxu0 0.0
    %1178 = vmatpush.msra.mxu0 0.0
    %1179 = vmatpush.msra.mxu0 0.0
    %1180 = vmatpush.msra.mxu0 0.0
    %1181 = vmatpush.msra.mxu0 0.0
    %1182 = vmatpush.msra.mxu0 0.0
    %1183 = vmatpush.msra.mxu0 0.0
    %1184 = vmatpush.msra.mxu0 0.0
    %1185 = vmatpush.msra.mxu0 0.0
    %1186 = vmatpush.msra.mxu0 0.0
    %1187 = vmatpush.msra.mxu0 0.0
    %v1188 = vand.u32 %v1169, 4294901760
    %1189 = vmatpush.msra.mxu0 %v1188
    %v1190 = vand.u32 %v1168, 4294901760
    %1191 = vmatpush.msra.mxu0 %v1190
    %v1192 = vand.u32 %v1167, 4294901760
    %1193 = vmatpush.msra.mxu0 %v1192
    %v1194 = vand.u32 %v1166, 4294901760
    %1195 = vmatpush.msra.mxu0 %v1194
    %v1196 = vand.u32 %v1165, 4294901760
    %1197 = vmatpush.msra.mxu0 %v1196
    %v1198 = vand.u32 %v1172, 4294901760
    %v1199 = vsub.f32 %v1172, %v1198
    %v1200 = vand.u32 %v1199, 4294901760
    %v1201 = vsub.f32 %v1199, %v1200
    %v1202 = vand.u32 %v1201, 4294901760
    %1203 = vmatmul.f32.gmra.mxu0 %v1202
    %v1204 = vpop.f32.mrf.mxu0
    %v1205 = vadd.f32 0.0, %v1204
    %v1206 = vand.u32 %v1175, 4294901760
    %v1207 = vsub.f32 %v1175, %v1206
    %v1208 = vand.u32 %v1207, 4294901760
    %v1209 = vsub.f32 %v1207, %v1208
    %v1210 = vand.u32 %v1209, 4294901760
    %1211 = vmatmul.f32.gmra.mxu0 %v1210
    %v1212 = vpop.f32.mrf.mxu0
    %v1213 = vadd.f32 0.0, %v1212
    %1214 = vdwg.mxu0
    %1215 = vmatpush.msra.mxu0 0.0
    %1216 = vmatpush.msra.mxu0 0.0
    %1217 = vmatpush.msra.mxu0 0.0
    %1218 = vmatpush.msra.mxu0 0.0
    %1219 = vmatpush.msra.mxu0 0.0
    %1220 = vmatpush.msra.mxu0 0.0
    %1221 = vmatpush.msra.mxu0 0.0
    %1222 = vmatpush.msra.mxu0 0.0
    %1223 = vmatpush.msra.mxu0 0.0
    %1224 = vmatpush.msra.mxu0 0.0
    %1225 = vmatpush.msra.mxu0 0.0
    %v1226 = vand.u32 %v1169, 4294901760
    %v1227 = vsub.f32 %v1169, %v1226
    %v1228 = vand.u32 %v1227, 4294901760
    %v1229 = vsub.f32 %v1227, %v1228
    %v1230 = vand.u32 %v1229, 4294901760
    %1231 = vmatpush.msra.mxu0 %v1230
    %v1232 = vand.u32 %v1168, 4294901760
    %v1233 = vsub.f32 %v1168, %v1232
    %v1234 = vand.u32 %v1233, 4294901760
    %v1235 = vsub.f32 %v1233, %v1234
    %v1236 = vand.u32 %v1235, 4294901760
    %1237 = vmatpush.msra.mxu0 %v1236
    %v1238 = vand.u32 %v1167, 4294901760
    %v1239 = vsub.f32 %v1167, %v1238
    %v1240 = vand.u32 %v1239, 4294901760
    %v1241 = vsub.f32 %v1239, %v1240
    %v1242 = vand.u32 %v1241, 4294901760
    %1243 = vmatpush.msra.mxu0 %v1242
    %v1244 = vand.u32 %v1166, 4294901760
    %v1245 = vsub.f32 %v1166, %v1244
    %v1246 = vand.u32 %v1245, 4294901760
    %v1247 = vsub.f32 %v1245, %v1246
    %v1248 = vand.u32 %v1247, 4294901760
    %1249 = vmatpush.msra.mxu0 %v1248
    %v1250 = vand.u32 %v1165, 4294901760
    %v1251 = vsub.f32 %v1165, %v1250
    %v1252 = vand.u32 %v1251, 4294901760
    %v1253 = vsub.f32 %v1251, %v1252
    %v1254 = vand.u32 %v1253, 4294901760
    %1255 = vmatpush.msra.mxu0 %v1254
    %v1256 = vand.u32 %v1172, 4294901760
    %1257 = vmatmul.f32.gmra.mxu0 %v1256
    %v1258 = vpop.f32.mrf.mxu0
    %v1259 = vadd.f32 %v1205, %v1258
    %v1260 = vand.u32 %v1175, 4294901760
    %1261 = vmatmul.f32.gmra.mxu0 %v1260
    %v1262 = vpop.f32.mrf.mxu0
    %v1263 = vadd.f32 %v1213, %v1262
    %1264 = vdwg.mxu0
    %1265 = vmatpush.msra.mxu0 0.0
    %1266 = vmatpush.msra.mxu0 0.0
    %1267 = vmatpush.msra.mxu0 0.0
    %1268 = vmatpush.msra.mxu0 0.0
    %1269 = vmatpush.msra.mxu0 0.0
    %1270 = vmatpush.msra.mxu0 0.0
    %1271 = vmatpush.msra.mxu0 0.0
    %1272 = vmatpush.msra.mxu0 0.0
    %1273 = vmatpush.msra.mxu0 0.0
    %1274 = vmatpush.msra.mxu0 0.0
    %1275 = vmatpush.msra.mxu0 0.0
    %v1276 = vand.u32 %v1169, 4294901760
    %v1277 = vsub.f32 %v1169, %v1276
    %1278 = vmatpush.msra.mxu0 %v1277
    %v1279 = vand.u32 %v1168, 4294901760
    %v1280 = vsub.f32 %v1168, %v1279
    %1281 = vmatpush.msra.mxu0 %v1280
    %v1282 = vand.u32 %v1167, 4294901760
    %v1283 = vsub.f32 %v1167, %v1282
    %1284 = vmatpush.msra.mxu0 %v1283
    %v1285 = vand.u32 %v1166, 4294901760
    %v1286 = vsub.f32 %v1166, %v1285
    %1287 = vmatpush.msra.mxu0 %v1286
    %v1288 = vand.u32 %v1165, 4294901760
    %v1289 = vsub.f32 %v1165, %v1288
    %1290 = vmatpush.msra.mxu0 %v1289
    %v1291 = vand.u32 %v1172, 4294901760
    %v1292 = vsub.f32 %v1172, %v1291
    %1293 = vmatmul.f32.gmra.mxu0 %v1292
    %v1294 = vpop.f32.mrf.mxu0
    %v1295 = vadd.f32 %v1259, %v1294
    %v1296 = vand.u32 %v1175, 4294901760
    %v1297 = vsub.f32 %v1175, %v1296
    %1298 = vmatmul.f32.gmra.mxu0 %v1297
    %v1299 = vpop.f32.mrf.mxu0
    %v1300 = vadd.f32 %v1263, %v1299
    %1301 = vdwg.mxu0
    %1302 = vmatpush.msra.mxu0 0.0
    %1303 = vmatpush.msra.mxu0 0.0
    %1304 = vmatpush.msra.mxu0 0.0
    %1305 = vmatpush.msra.mxu0 0.0
    %1306 = vmatpush.msra.mxu0 0.0
    %1307 = vmatpush.msra.mxu0 0.0
    %1308 = vmatpush.msra.mxu0 0.0
    %1309 = vmatpush.msra.mxu0 0.0
    %1310 = vmatpush.msra.mxu0 0.0
    %1311 = vmatpush.msra.mxu0 0.0
    %1312 = vmatpush.msra.mxu0 0.0
    %v1313 = vand.u32 %v1169, 4294901760
    %1314 = vmatpush.msra.mxu0 %v1313
    %v1315 = vand.u32 %v1168, 4294901760
    %1316 = vmatpush.msra.mxu0 %v1315
    %v1317 = vand.u32 %v1167, 4294901760
    %1318 = vmatpush.msra.mxu0 %v1317
    %v1319 = vand.u32 %v1166, 4294901760
    %1320 = vmatpush.msra.mxu0 %v1319
    %v1321 = vand.u32 %v1165, 4294901760
    %1322 = vmatpush.msra.mxu0 %v1321
    %v1323 = vand.u32 %v1172, 4294901760
    %v1324 = vsub.f32 %v1172, %v1323
    %v1325 = vand.u32 %v1324, 4294901760
    %1326 = vmatmul.f32.gmra.mxu0 %v1325
    %v1327 = vpop.f32.mrf.mxu0
    %v1328 = vadd.f32 %v1295, %v1327
    %v1329 = vand.u32 %v1175, 4294901760
    %v1330 = vsub.f32 %v1175, %v1329
    %v1331 = vand.u32 %v1330, 4294901760
    %1332 = vmatmul.f32.gmra.mxu0 %v1331
    %v1333 = vpop.f32.mrf.mxu0
    %v1334 = vadd.f32 %v1300, %v1333
    %1335 = vdwg.mxu0
    %1336 = vmatpush.msra.mxu0 0.0
    %1337 = vmatpush.msra.mxu0 0.0
    %1338 = vmatpush.msra.mxu0 0.0
    %1339 = vmatpush.msra.mxu0 0.0
    %1340 = vmatpush.msra.mxu0 0.0
    %1341 = vmatpush.msra.mxu0 0.0
    %1342 = vmatpush.msra.mxu0 0.0
    %1343 = vmatpush.msra.mxu0 0.0
    %1344 = vmatpush.msra.mxu0 0.0
    %1345 = vmatpush.msra.mxu0 0.0
    %1346 = vmatpush.msra.mxu0 0.0
    %v1347 = vand.u32 %v1169, 4294901760
    %v1348 = vsub.f32 %v1169, %v1347
    %v1349 = vand.u32 %v1348, 4294901760
    %1350 = vmatpush.msra.mxu0 %v1349
    %v1351 = vand.u32 %v1168, 4294901760
    %v1352 = vsub.f32 %v1168, %v1351
    %v1353 = vand.u32 %v1352, 4294901760
    %1354 = vmatpush.msra.mxu0 %v1353
    %v1355 = vand.u32 %v1167, 4294901760
    %v1356 = vsub.f32 %v1167, %v1355
    %v1357 = vand.u32 %v1356, 4294901760
    %1358 = vmatpush.msra.mxu0 %v1357
    %v1359 = vand.u32 %v1166, 4294901760
    %v1360 = vsub.f32 %v1166, %v1359
    %v1361 = vand.u32 %v1360, 4294901760
    %1362 = vmatpush.msra.mxu0 %v1361
    %v1363 = vand.u32 %v1165, 4294901760
    %v1364 = vsub.f32 %v1165, %v1363
    %v1365 = vand.u32 %v1364, 4294901760
    %1366 = vmatpush.msra.mxu0 %v1365
    %v1367 = vand.u32 %v1172, 4294901760
    %1368 = vmatmul.f32.gmra.mxu0 %v1367
    %v1369 = vpop.f32.mrf.mxu0
    %v1370 = vadd.f32 %v1328, %v1369
    %v1371 = vand.u32 %v1175, 4294901760
    %1372 = vmatmul.f32.gmra.mxu0 %v1371
    %v1373 = vpop.f32.mrf.mxu0
    %v1374 = vadd.f32 %v1334, %v1373
    %1375 = vdwg.mxu0
    %1376 = vmatpush.msra.mxu0 0.0
    %1377 = vmatpush.msra.mxu0 0.0
    %1378 = vmatpush.msra.mxu0 0.0
    %1379 = vmatpush.msra.mxu0 0.0
    %1380 = vmatpush.msra.mxu0 0.0
    %1381 = vmatpush.msra.mxu0 0.0
    %1382 = vmatpush.msra.mxu0 0.0
    %1383 = vmatpush.msra.mxu0 0.0
    %1384 = vmatpush.msra.mxu0 0.0
    %1385 = vmatpush.msra.mxu0 0.0
    %1386 = vmatpush.msra.mxu0 0.0
    %v1387 = vand.u32 %v1169, 4294901760
    %1388 = vmatpush.msra.mxu0 %v1387
    %v1389 = vand.u32 %v1168, 4294901760
    %1390 = vmatpush.msra.mxu0 %v1389
    %v1391 = vand.u32 %v1167, 4294901760
    %1392 = vmatpush.msra.mxu0 %v1391
    %v1393 = vand.u32 %v1166, 4294901760
    %1394 = vmatpush.msra.mxu0 %v1393
    %v1395 = vand.u32 %v1165, 4294901760
    %1396 = vmatpush.msra.mxu0 %v1395
    %v1397 = vand.u32 %v1172, 4294901760
    %1398 = vmatmul.f32.gmra.mxu0 %v1397
    %v1399 = vpop.f32.mrf.mxu0
    %v1400 = vadd.f32 %v1370, %v1399
    %v1401 = vand.u32 %v1175, 4294901760
    %1402 = vmatmul.f32.gmra.mxu0 %v1401
    %v1403 = vpop.f32.mrf.mxu0
    %v1404 = vadd.f32 %v1374, %v1403
    %1405 = vdwg.mxu0
    %vm1406 = vcmp.gt.f32.partialorder %v1400, 0.0
    %vm1407 = vcmp.gt.f32.partialorder %v1404, 0.0
    %v1408 = vsel %vm1406, %v1400, 1.0
    %v1409 = vsel %vm1407, %v1404, 1.0
    %v1410 = vrcp.pop %v1408
    %v1411 = vmul.f32 %v1408, %v1410
    %v1412 = vsub.f32 1.0, %v1411
    %v1413 = vmul.f32 %v1410, %v1412
    %v1414 = vadd.f32 %v1410, %v1413
    %vm1415 = vweird.f32 %v1408
    %vm1416 = vweird.f32 %v1410
    %vm1417 = vmor %vm1415, %vm1416
    %v1418 = vsel %vm1417, %v1410, %v1414
    %v1419 = vand.u32 2147483647, %v1408
    %vm1420 = vcmp.eq.f32.partialorder %v1419, 8.507059e+37
    %v1421 = vand.u32 %v1408, 2147483648
    %v1422 = vor.u32 1.1754944e-38, %v1421
    %v1423 = vsel %vm1420, %v1422, %v1418
    %v1424 = vrcp.pop %v1409
    %v1425 = vmul.f32 %v1409, %v1424
    %v1426 = vsub.f32 1.0, %v1425
    %v1427 = vmul.f32 %v1424, %v1426
    %v1428 = vadd.f32 %v1424, %v1427
    %vm1429 = vweird.f32 %v1409
    %vm1430 = vweird.f32 %v1424
    %vm1431 = vmor %vm1429, %vm1430
    %v1432 = vsel %vm1431, %v1424, %v1428
    %v1433 = vand.u32 2147483647, %v1409
    %vm1434 = vcmp.eq.f32.partialorder %v1433, 8.507059e+37
    %v1435 = vand.u32 %v1409, 2147483648
    %v1436 = vor.u32 1.1754944e-38, %v1435
    %v1437 = vsel %vm1434, %v1436, %v1432
    %v1438 = vld [vmem:[#allocation2] sm:$0x1]
    %1440 = vset.pattern.permute.xlu0 32
    %1441 = vperm.xlu0 %1440, %v1423
    %v1442 = vpop.permute.xlu0 %1441
    %1445 = vset.pattern.permute.xlu0 32
    %1446 = vperm.xlu0 %1445, %v1437
    %v1447 = vpop.permute.xlu0 %1446
    %v1449 = vmul.f32 %v1400, %v1442
    %v1450 = vmul.f32 %v1404, %v1447
    %v1451 = vperm.slane %v1438, 0
    %v1452 = vadd.f32 %v1449, %v1451
    %v1453 = vadd.f32 %v1450, %v1451
    %v1454 = vld [vmem:[#allocation2 + $0x1] sm:$0x1]
    %v1455 = vld [vmem:[#allocation2 + $0x2] sm:$0x1]
    %v1456 = vsel %vm149, %v1452, 0.0
    %1457 = vadd.xlane.f32.xlu0 %v1456
    %v1458 = vpop.xlane.xlu0 %1457
    %v1459 = vsel %vm149, %v1453, 0.0
    %1460 = vadd.xlane.f32.xlu0 %v1459
    %v1461 = vpop.xlane.xlu0 %1460
    %v1462 = vrcp.pop 32.0
    %v1463 = vmul.f32 32.0, %v1462
    %v1464 = vsub.f32 1.0, %v1463
    %v1465 = vmul.f32 %v1462, %v1464
    %v1466 = vadd.f32 %v1462, %v1465
    %vm1467 = vweird.f32 %v1462
    %v1468 = vsel %vm1467, %v1462, %v1466
    %v1469 = vmul.f32 %v1458, %v1468
    %v1470 = vmul.f32 %v1461, %v1468
    %v1471 = vsub.f32 %v1452, %v1469
    %v1472 = vsub.f32 %v1453, %v1470
    %v1473 = vmul.f32 %v1471, %v1471
    %v1474 = vmul.f32 %v1472, %v1472
    %v1475 = vsel %vm149, %v1473, 0.0
    %1476 = vadd.xlane.f32.xlu0 %v1475
    %v1477 = vpop.xlane.xlu0 %1476
    %v1478 = vsel %vm149, %v1474, 0.0
    %1479 = vadd.xlane.f32.xlu0 %v1478
    %v1480 = vpop.xlane.xlu0 %1479
    %v1481 = vmul.f32 %v1477, %v1468
    %v1482 = vmul.f32 %v1480, %v1468
    %v1483 = vadd.f32 %v1481, 1e-05
    %v1484 = vadd.f32 %v1482, 1e-05
    %v1485 = vrsqrt.pop %v1483
    %v1486 = vmul.f32 %v1485, %v1483
    %v1487 = vmul.f32 %v1486, %v1485
    %v1488 = vmul.f32 0.5, %v1487
    %v1489 = vsub.f32 1.5, %v1488
    %v1490 = vmul.f32 %v1485, %v1489
    %vm1491 = vweird.f32 %v1483
    %vm1492 = vweird.f32 %v1485
    %vm1493 = vmor %vm1491, %vm1492
    %v1494 = vsel %vm1493, %v1485, %v1490
    %v1495 = vrsqrt.pop %v1484
    %v1496 = vmul.f32 %v1495, %v1484
    %v1497 = vmul.f32 %v1496, %v1495
    %v1498 = vmul.f32 0.5, %v1497
    %v1499 = vsub.f32 1.5, %v1498
    %v1500 = vmul.f32 %v1495, %v1499
    %vm1501 = vweird.f32 %v1484
    %vm1502 = vweird.f32 %v1495
    %vm1503 = vmor %vm1501, %vm1502
    %v1504 = vsel %vm1503, %v1495, %v1500
    %v1505 = vmul.f32 %v1471, %v1494
    %v1506 = vmul.f32 %v1472, %v1504
    %v1507 = vperm.slane %v1454, 0
    %v1508 = vmul.f32 %v1505, %v1507
    %v1509 = vmul.f32 %v1506, %v1507
    %v1510 = vperm.slane %v1455, 0
    %v1511 = vadd.f32 %v1508, %v1510
    %v1512 = vadd.f32 %v1509, %v1510
    %s1513 = scalar_lea.vmem %s7, 32
    %v1514 = vld [vmem:[%s1513] sm:$0xff]
    %v1515 = vld [vmem:[%s1513 + $0x8] sm:$0xff]
    %v1516 = vld [vmem:[%s1513 + $0x10] sm:$0xff]
    %v1517 = vld [vmem:[%s1513 + $0x18] sm:$0xff]
    %v1519 = vsel %vm149, %v1511, 0
    %v1522 = vsel %vm149, %v1512, 0
    %1524 = vmatpush.msra.mxu0 0.0
    %1525 = vmatpush.msra.mxu0 0.0
    %1526 = vmatpush.msra.mxu0 0.0
    %1527 = vmatpush.msra.mxu0 0.0
    %1528 = vmatpush.msra.mxu0 0.0
    %1529 = vmatpush.msra.mxu0 0.0
    %1530 = vmatpush.msra.mxu0 0.0
    %1531 = vmatpush.msra.mxu0 0.0
    %1532 = vmatpush.msra.mxu0 0.0
    %1533 = vmatpush.msra.mxu0 0.0
    %1534 = vmatpush.msra.mxu0 0.0
    %1535 = vmatpush.msra.mxu0 0.0
    %v1536 = vand.u32 %v1517, 4294901760
    %1537 = vmatpush.msra.mxu0 %v1536
    %v1538 = vand.u32 %v1516, 4294901760
    %1539 = vmatpush.msra.mxu0 %v1538
    %v1540 = vand.u32 %v1515, 4294901760
    %1541 = vmatpush.msra.mxu0 %v1540
    %v1542 = vand.u32 %v1514, 4294901760
    %1543 = vmatpush.msra.mxu0 %v1542
    %v1544 = vand.u32 %v1519, 4294901760
    %v1545 = vsub.f32 %v1519, %v1544
    %v1546 = vand.u32 %v1545, 4294901760
    %v1547 = vsub.f32 %v1545, %v1546
    %v1548 = vand.u32 %v1547, 4294901760
    %1549 = vmatmul.f32.gmra.mxu0 %v1548
    %v1550 = vpop.f32.mrf.mxu0
    %v1551 = vadd.f32 0.0, %v1550
    %v1552 = vand.u32 %v1522, 4294901760
    %v1553 = vsub.f32 %v1522, %v1552
    %v1554 = vand.u32 %v1553, 4294901760
    %v1555 = vsub.f32 %v1553, %v1554
    %v1556 = vand.u32 %v1555, 4294901760
    %1557 = vmatmul.f32.gmra.mxu0 %v1556
    %v1558 = vpop.f32.mrf.mxu0
    %v1559 = vadd.f32 0.0, %v1558
    %1560 = vdwg.mxu0
    %1561 = vmatpush.msra.mxu0 0.0
    %1562 = vmatpush.msra.mxu0 0.0
    %1563 = vmatpush.msra.mxu0 0.0
    %1564 = vmatpush.msra.mxu0 0.0
    %1565 = vmatpush.msra.mxu0 0.0
    %1566 = vmatpush.msra.mxu0 0.0
    %1567 = vmatpush.msra.mxu0 0.0
    %1568 = vmatpush.msra.mxu0 0.0
    %1569 = vmatpush.msra.mxu0 0.0
    %1570 = vmatpush.msra.mxu0 0.0
    %1571 = vmatpush.msra.mxu0 0.0
    %1572 = vmatpush.msra.mxu0 0.0
    %v1573 = vand.u32 %v1517, 4294901760
    %v1574 = vsub.f32 %v1517, %v1573
    %v1575 = vand.u32 %v1574, 4294901760
    %v1576 = vsub.f32 %v1574, %v1575
    %v1577 = vand.u32 %v1576, 4294901760
    %1578 = vmatpush.msra.mxu0 %v1577
    %v1579 = vand.u32 %v1516, 4294901760
    %v1580 = vsub.f32 %v1516, %v1579
    %v1581 = vand.u32 %v1580, 4294901760
    %v1582 = vsub.f32 %v1580, %v1581
    %v1583 = vand.u32 %v1582, 4294901760
    %1584 = vmatpush.msra.mxu0 %v1583
    %v1585 = vand.u32 %v1515, 4294901760
    %v1586 = vsub.f32 %v1515, %v1585
    %v1587 = vand.u32 %v1586, 4294901760
    %v1588 = vsub.f32 %v1586, %v1587
    %v1589 = vand.u32 %v1588, 4294901760
    %1590 = vmatpush.msra.mxu0 %v1589
    %v1591 = vand.u32 %v1514, 4294901760
    %v1592 = vsub.f32 %v1514, %v1591
    %v1593 = vand.u32 %v1592, 4294901760
    %v1594 = vsub.f32 %v1592, %v1593
    %v1595 = vand.u32 %v1594, 4294901760
    %1596 = vmatpush.msra.mxu0 %v1595
    %v1597 = vand.u32 %v1519, 4294901760
    %1598 = vmatmul.f32.gmra.mxu0 %v1597
    %v1599 = vpop.f32.mrf.mxu0
    %v1600 = vadd.f32 %v1551, %v1599
    %v1601 = vand.u32 %v1522, 4294901760
    %1602 = vmatmul.f32.gmra.mxu0 %v1601
    %v1603 = vpop.f32.mrf.mxu0
    %v1604 = vadd.f32 %v1559, %v1603
    %1605 = vdwg.mxu0
    %1606 = vmatpush.msra.mxu0 0.0
    %1607 = vmatpush.msra.mxu0 0.0
    %1608 = vmatpush.msra.mxu0 0.0
    %1609 = vmatpush.msra.mxu0 0.0
    %1610 = vmatpush.msra.mxu0 0.0
    %1611 = vmatpush.msra.mxu0 0.0
    %1612 = vmatpush.msra.mxu0 0.0
    %1613 = vmatpush.msra.mxu0 0.0
    %1614 = vmatpush.msra.mxu0 0.0
    %1615 = vmatpush.msra.mxu0 0.0
    %1616 = vmatpush.msra.mxu0 0.0
    %1617 = vmatpush.msra.mxu0 0.0
    %v1618 = vand.u32 %v1517, 4294901760
    %v1619 = vsub.f32 %v1517, %v1618
    %1620 = vmatpush.msra.mxu0 %v1619
    %v1621 = vand.u32 %v1516, 4294901760
    %v1622 = vsub.f32 %v1516, %v1621
    %1623 = vmatpush.msra.mxu0 %v1622
    %v1624 = vand.u32 %v1515, 4294901760
    %v1625 = vsub.f32 %v1515, %v1624
    %1626 = vmatpush.msra.mxu0 %v1625
    %v1627 = vand.u32 %v1514, 4294901760
    %v1628 = vsub.f32 %v1514, %v1627
    %1629 = vmatpush.msra.mxu0 %v1628
    %v1630 = vand.u32 %v1519, 4294901760
    %v1631 = vsub.f32 %v1519, %v1630
    %1632 = vmatmul.f32.gmra.mxu0 %v1631
    %v1633 = vpop.f32.mrf.mxu0
    %v1634 = vadd.f32 %v1600, %v1633
    %v1635 = vand.u32 %v1522, 4294901760
    %v1636 = vsub.f32 %v1522, %v1635
    %1637 = vmatmul.f32.gmra.mxu0 %v1636
    %v1638 = vpop.f32.mrf.mxu0
    %v1639 = vadd.f32 %v1604, %v1638
    %1640 = vdwg.mxu0
    %1641 = vmatpush.msra.mxu0 0.0
    %1642 = vmatpush.msra.mxu0 0.0
    %1643 = vmatpush.msra.mxu0 0.0
    %1644 = vmatpush.msra.mxu0 0.0
    %1645 = vmatpush.msra.mxu0 0.0
    %1646 = vmatpush.msra.mxu0 0.0
    %1647 = vmatpush.msra.mxu0 0.0
    %1648 = vmatpush.msra.mxu0 0.0
    %1649 = vmatpush.msra.mxu0 0.0
    %1650 = vmatpush.msra.mxu0 0.0
    %1651 = vmatpush.msra.mxu0 0.0
    %1652 = vmatpush.msra.mxu0 0.0
    %v1653 = vand.u32 %v1517, 4294901760
    %1654 = vmatpush.msra.mxu0 %v1653
    %v1655 = vand.u32 %v1516, 4294901760
    %1656 = vmatpush.msra.mxu0 %v1655
    %v1657 = vand.u32 %v1515, 4294901760
    %1658 = vmatpush.msra.mxu0 %v1657
    %v1659 = vand.u32 %v1514, 4294901760
    %1660 = vmatpush.msra.mxu0 %v1659
    %v1661 = vand.u32 %v1519, 4294901760
    %v1662 = vsub.f32 %v1519, %v1661
    %v1663 = vand.u32 %v1662, 4294901760
    %1664 = vmatmul.f32.gmra.mxu0 %v1663
    %v1665 = vpop.f32.mrf.mxu0
    %v1666 = vadd.f32 %v1634, %v1665
    %v1667 = vand.u32 %v1522, 4294901760
    %v1668 = vsub.f32 %v1522, %v1667
    %v1669 = vand.u32 %v1668, 4294901760
    %1670 = vmatmul.f32.gmra.mxu0 %v1669
    %v1671 = vpop.f32.mrf.mxu0
    %v1672 = vadd.f32 %v1639, %v1671
    %1673 = vdwg.mxu0
    %1674 = vmatpush.msra.mxu0 0.0
    %1675 = vmatpush.msra.mxu0 0.0
    %1676 = vmatpush.msra.mxu0 0.0
    %1677 = vmatpush.msra.mxu0 0.0
    %1678 = vmatpush.msra.mxu0 0.0
    %1679 = vmatpush.msra.mxu0 0.0
    %1680 = vmatpush.msra.mxu0 0.0
    %1681 = vmatpush.msra.mxu0 0.0
    %1682 = vmatpush.msra.mxu0 0.0
    %1683 = vmatpush.msra.mxu0 0.0
    %1684 = vmatpush.msra.mxu0 0.0
    %1685 = vmatpush.msra.mxu0 0.0
    %v1686 = vand.u32 %v1517, 4294901760
    %v1687 = vsub.f32 %v1517, %v1686
    %v1688 = vand.u32 %v1687, 4294901760
    %1689 = vmatpush.msra.mxu0 %v1688
    %v1690 = vand.u32 %v1516, 4294901760
    %v1691 = vsub.f32 %v1516, %v1690
    %v1692 = vand.u32 %v1691, 4294901760
    %1693 = vmatpush.msra.mxu0 %v1692
    %v1694 = vand.u32 %v1515, 4294901760
    %v1695 = vsub.f32 %v1515, %v1694
    %v1696 = vand.u32 %v1695, 4294901760
    %1697 = vmatpush.msra.mxu0 %v1696
    %v1698 = vand.u32 %v1514, 4294901760
    %v1699 = vsub.f32 %v1514, %v1698
    %v1700 = vand.u32 %v1699, 4294901760
    %1701 = vmatpush.msra.mxu0 %v1700
    %v1702 = vand.u32 %v1519, 4294901760
    %1703 = vmatmul.f32.gmra.mxu0 %v1702
    %v1704 = vpop.f32.mrf.mxu0
    %v1705 = vadd.f32 %v1666, %v1704
    %v1706 = vand.u32 %v1522, 4294901760
    %1707 = vmatmul.f32.gmra.mxu0 %v1706
    %v1708 = vpop.f32.mrf.mxu0
    %v1709 = vadd.f32 %v1672, %v1708
    %1710 = vdwg.mxu0
    %1711 = vmatpush.msra.mxu0 0.0
    %1712 = vmatpush.msra.mxu0 0.0
    %1713 = vmatpush.msra.mxu0 0.0
    %1714 = vmatpush.msra.mxu0 0.0
    %1715 = vmatpush.msra.mxu0 0.0
    %1716 = vmatpush.msra.mxu0 0.0
    %1717 = vmatpush.msra.mxu0 0.0
    %1718 = vmatpush.msra.mxu0 0.0
    %1719 = vmatpush.msra.mxu0 0.0
    %1720 = vmatpush.msra.mxu0 0.0
    %1721 = vmatpush.msra.mxu0 0.0
    %1722 = vmatpush.msra.mxu0 0.0
    %v1723 = vand.u32 %v1517, 4294901760
    %1724 = vmatpush.msra.mxu0 %v1723
    %v1725 = vand.u32 %v1516, 4294901760
    %1726 = vmatpush.msra.mxu0 %v1725
    %v1727 = vand.u32 %v1515, 4294901760
    %1728 = vmatpush.msra.mxu0 %v1727
    %v1729 = vand.u32 %v1514, 4294901760
    %1730 = vmatpush.msra.mxu0 %v1729
    %v1731 = vand.u32 %v1519, 4294901760
    %1732 = vmatmul.f32.gmra.mxu0 %v1731
    %v1733 = vpop.f32.mrf.mxu0
    %v1734 = vadd.f32 %v1705, %v1733
    %v1735 = vand.u32 %v1522, 4294901760
    %1736 = vmatmul.f32.gmra.mxu0 %v1735
    %v1737 = vpop.f32.mrf.mxu0
    %v1738 = vadd.f32 %v1709, %v1737
    %1739 = vdwg.mxu0
    %v1740 = vld [vmem:[%s8 + $0x1] sm:$0x1]
    %v1741 = vperm.slane %v1740, 0
    %v1742 = vmul.f32 %v372, %v1741
    %v1743 = vmul.f32 %v373, %v1741
    %v1744 = vmul.f32 %v374, %v1741
    %v1745 = vmul.f32 %v375, %v1741
    %v1746 = vmul.f32 %v376, %v1741
    %v1747 = vsel %vm384, %v1742, 0.0
    %1748 = vadd.xlane.f32.xlu0 %v1747
    %v1749 = vpop.xlane.xlu0 %1748
    %v1750 = vsel %vm384, %v1743, 0.0
    %1751 = vadd.xlane.f32.xlu0 %v1750
    %v1752 = vpop.xlane.xlu0 %1751
    %v1753 = vsel %vm384, %v1744, 0.0
    %1754 = vadd.xlane.f32.xlu0 %v1753
    %v1755 = vpop.xlane.xlu0 %1754
    %v1756 = vsel %vm384, %v1745, 0.0
    %1757 = vadd.xlane.f32.xlu0 %v1756
    %v1758 = vpop.xlane.xlu0 %1757
    %v1759 = vsel %vm384, %v1746, 0.0
    %1760 = vadd.xlane.f32.xlu0 %v1759
    %v1761 = vpop.xlane.xlu0 %1760
    %1762 = vmatpush.msra.mxu0 0.0
    %1763 = vmatpush.msra.mxu0 0.0
    %1764 = vmatpush.msra.mxu0 0.0
    %1765 = vmatpush.msra.mxu0 0.0
    %1766 = vmatpush.msra.mxu0 0.0
    %1767 = vmatpush.msra.mxu0 0.0
    %1768 = vmatpush.msra.mxu0 0.0
    %1769 = vmatpush.msra.mxu0 0.0
    %1770 = vmatpush.msra.mxu0 0.0
    %1771 = vmatpush.msra.mxu0 0.0
    %1772 = vmatpush.msra.mxu0 0.0
    %1773 = vmatpush.msra.mxu0 0.0
    %1774 = vmatpush.msra.mxu0 0.0
    %1775 = vmatpush.msra.mxu0 0.0
    %v1776 = vand.u32 %v1738, 4294901760
    %1777 = vmatpush.msra.mxu0 %v1776
    %v1778 = vand.u32 %v1734, 4294901760
    %1779 = vmatpush.msra.mxu0 %v1778
    %v1780 = vand.u32 %v402, 4294901760
    %v1781 = vsub.f32 %v402, %v1780
    %v1782 = vand.u32 %v1781, 4294901760
    %v1783 = vsub.f32 %v1781, %v1782
    %v1784 = vand.u32 %v1783, 4294901760
    %1785 = vmatmul.f32.gmra.mxu0 %v1784
    %v1786 = vpop.f32.mrf.mxu0
    %v1787 = vadd.f32 0.0, %v1786
    %v1788 = vand.u32 %v405, 4294901760
    %v1789 = vsub.f32 %v405, %v1788
    %v1790 = vand.u32 %v1789, 4294901760
    %v1791 = vsub.f32 %v1789, %v1790
    %v1792 = vand.u32 %v1791, 4294901760
    %1793 = vmatmul.f32.gmra.mxu0 %v1792
    %v1794 = vpop.f32.mrf.mxu0
    %v1795 = vadd.f32 0.0, %v1794
    %v1796 = vand.u32 %v408, 4294901760
    %v1797 = vsub.f32 %v408, %v1796
    %v1798 = vand.u32 %v1797, 4294901760
    %v1799 = vsub.f32 %v1797, %v1798
    %v1800 = vand.u32 %v1799, 4294901760
    %1801 = vmatmul.f32.gmra.mxu0 %v1800
    %v1802 = vpop.f32.mrf.mxu0
    %v1803 = vadd.f32 0.0, %v1802
    %v1804 = vand.u32 %v411, 4294901760
    %v1805 = vsub.f32 %v411, %v1804
    %v1806 = vand.u32 %v1805, 4294901760
    %v1807 = vsub.f32 %v1805, %v1806
    %v1808 = vand.u32 %v1807, 4294901760
    %1809 = vmatmul.f32.gmra.mxu0 %v1808
    %v1810 = vpop.f32.mrf.mxu0
    %v1811 = vadd.f32 0.0, %v1810
    %v1812 = vand.u32 %v414, 4294901760
    %v1813 = vsub.f32 %v414, %v1812
    %v1814 = vand.u32 %v1813, 4294901760
    %v1815 = vsub.f32 %v1813, %v1814
    %v1816 = vand.u32 %v1815, 4294901760
    %1817 = vmatmul.f32.gmra.mxu0 %v1816
    %v1818 = vpop.f32.mrf.mxu0
    %v1819 = vadd.f32 0.0, %v1818
    %1820 = vdwg.mxu0
    %1821 = vmatpush.msra.mxu0 0.0
    %1822 = vmatpush.msra.mxu0 0.0
    %1823 = vmatpush.msra.mxu0 0.0
    %1824 = vmatpush.msra.mxu0 0.0
    %1825 = vmatpush.msra.mxu0 0.0
    %1826 = vmatpush.msra.mxu0 0.0
    %1827 = vmatpush.msra.mxu0 0.0
    %1828 = vmatpush.msra.mxu0 0.0
    %1829 = vmatpush.msra.mxu0 0.0
    %1830 = vmatpush.msra.mxu0 0.0
    %1831 = vmatpush.msra.mxu0 0.0
    %1832 = vmatpush.msra.mxu0 0.0
    %1833 = vmatpush.msra.mxu0 0.0
    %1834 = vmatpush.msra.mxu0 0.0
    %v1835 = vand.u32 %v1738, 4294901760
    %v1836 = vsub.f32 %v1738, %v1835
    %v1837 = vand.u32 %v1836, 4294901760
    %v1838 = vsub.f32 %v1836, %v1837
    %v1839 = vand.u32 %v1838, 4294901760
    %1840 = vmatpush.msra.mxu0 %v1839
    %v1841 = vand.u32 %v1734, 4294901760
    %v1842 = vsub.f32 %v1734, %v1841
    %v1843 = vand.u32 %v1842, 4294901760
    %v1844 = vsub.f32 %v1842, %v1843
    %v1845 = vand.u32 %v1844, 4294901760
    %1846 = vmatpush.msra.mxu0 %v1845
    %v1847 = vand.u32 %v402, 4294901760
    %1848 = vmatmul.f32.gmra.mxu0 %v1847
    %v1849 = vpop.f32.mrf.mxu0
    %v1850 = vadd.f32 %v1787, %v1849
    %v1851 = vand.u32 %v405, 4294901760
    %1852 = vmatmul.f32.gmra.mxu0 %v1851
    %v1853 = vpop.f32.mrf.mxu0
    %v1854 = vadd.f32 %v1795, %v1853
    %v1855 = vand.u32 %v408, 4294901760
    %1856 = vmatmul.f32.gmra.mxu0 %v1855
    %v1857 = vpop.f32.mrf.mxu0
    %v1858 = vadd.f32 %v1803, %v1857
    %v1859 = vand.u32 %v411, 4294901760
    %1860 = vmatmul.f32.gmra.mxu0 %v1859
    %v1861 = vpop.f32.mrf.mxu0
    %v1862 = vadd.f32 %v1811, %v1861
    %v1863 = vand.u32 %v414, 4294901760
    %1864 = vmatmul.f32.gmra.mxu0 %v1863
    %v1865 = vpop.f32.mrf.mxu0
    %v1866 = vadd.f32 %v1819, %v1865
    %1867 = vdwg.mxu0
    %1868 = vmatpush.msra.mxu0 0.0
    %1869 = vmatpush.msra.mxu0 0.0
    %1870 = vmatpush.msra.mxu0 0.0
    %1871 = vmatpush.msra.mxu0 0.0
    %1872 = vmatpush.msra.mxu0 0.0
    %1873 = vmatpush.msra.mxu0 0.0
    %1874 = vmatpush.msra.mxu0 0.0
    %1875 = vmatpush.msra.mxu0 0.0
    %1876 = vmatpush.msra.mxu0 0.0
    %1877 = vmatpush.msra.mxu0 0.0
    %1878 = vmatpush.msra.mxu0 0.0
    %1879 = vmatpush.msra.mxu0 0.0
    %1880 = vmatpush.msra.mxu0 0.0
    %1881 = vmatpush.msra.mxu0 0.0
    %v1882 = vand.u32 %v1738, 4294901760
    %v1883 = vsub.f32 %v1738, %v1882
    %1884 = vmatpush.msra.mxu0 %v1883
    %v1885 = vand.u32 %v1734, 4294901760
    %v1886 = vsub.f32 %v1734, %v1885
    %1887 = vmatpush.msra.mxu0 %v1886
    %v1888 = vand.u32 %v402, 4294901760
    %v1889 = vsub.f32 %v402, %v1888
    %1890 = vmatmul.f32.gmra.mxu0 %v1889
    %v1891 = vpop.f32.mrf.mxu0
    %v1892 = vadd.f32 %v1850, %v1891
    %v1893 = vand.u32 %v405, 4294901760
    %v1894 = vsub.f32 %v405, %v1893
    %1895 = vmatmul.f32.gmra.mxu0 %v1894
    %v1896 = vpop.f32.mrf.mxu0
    %v1897 = vadd.f32 %v1854, %v1896
    %v1898 = vand.u32 %v408, 4294901760
    %v1899 = vsub.f32 %v408, %v1898
    %1900 = vmatmul.f32.gmra.mxu0 %v1899
    %v1901 = vpop.f32.mrf.mxu0
    %v1902 = vadd.f32 %v1858, %v1901
    %v1903 = vand.u32 %v411, 4294901760
    %v1904 = vsub.f32 %v411, %v1903
    %1905 = vmatmul.f32.gmra.mxu0 %v1904
    %v1906 = vpop.f32.mrf.mxu0
    %v1907 = vadd.f32 %v1862, %v1906
    %v1908 = vand.u32 %v414, 4294901760
    %v1909 = vsub.f32 %v414, %v1908
    %1910 = vmatmul.f32.gmra.mxu0 %v1909
    %v1911 = vpop.f32.mrf.mxu0
    %v1912 = vadd.f32 %v1866, %v1911
    %1913 = vdwg.mxu0
    %1914 = vmatpush.msra.mxu0 0.0
    %1915 = vmatpush.msra.mxu0 0.0
    %1916 = vmatpush.msra.mxu0 0.0
    %1917 = vmatpush.msra.mxu0 0.0
    %1918 = vmatpush.msra.mxu0 0.0
    %1919 = vmatpush.msra.mxu0 0.0
    %1920 = vmatpush.msra.mxu0 0.0
    %1921 = vmatpush.msra.mxu0 0.0
    %1922 = vmatpush.msra.mxu0 0.0
    %1923 = vmatpush.msra.mxu0 0.0
    %1924 = vmatpush.msra.mxu0 0.0
    %1925 = vmatpush.msra.mxu0 0.0
    %1926 = vmatpush.msra.mxu0 0.0
    %1927 = vmatpush.msra.mxu0 0.0
    %v1928 = vand.u32 %v1738, 4294901760
    %1929 = vmatpush.msra.mxu0 %v1928
    %v1930 = vand.u32 %v1734, 4294901760
    %1931 = vmatpush.msra.mxu0 %v1930
    %v1932 = vand.u32 %v402, 4294901760
    %v1933 = vsub.f32 %v402, %v1932
    %v1934 = vand.u32 %v1933, 4294901760
    %1935 = vmatmul.f32.gmra.mxu0 %v1934
    %v1936 = vpop.f32.mrf.mxu0
    %v1937 = vadd.f32 %v1892, %v1936
    %v1938 = vand.u32 %v405, 4294901760
    %v1939 = vsub.f32 %v405, %v1938
    %v1940 = vand.u32 %v1939, 4294901760
    %1941 = vmatmul.f32.gmra.mxu0 %v1940
    %v1942 = vpop.f32.mrf.mxu0
    %v1943 = vadd.f32 %v1897, %v1942
    %v1944 = vand.u32 %v408, 4294901760
    %v1945 = vsub.f32 %v408, %v1944
    %v1946 = vand.u32 %v1945, 4294901760
    %1947 = vmatmul.f32.gmra.mxu0 %v1946
    %v1948 = vpop.f32.mrf.mxu0
    %v1949 = vadd.f32 %v1902, %v1948
    %v1950 = vand.u32 %v411, 4294901760
    %v1951 = vsub.f32 %v411, %v1950
    %v1952 = vand.u32 %v1951, 4294901760
    %1953 = vmatmul.f32.gmra.mxu0 %v1952
    %v1954 = vpop.f32.mrf.mxu0
    %v1955 = vadd.f32 %v1907, %v1954
    %v1956 = vand.u32 %v414, 4294901760
    %v1957 = vsub.f32 %v414, %v1956
    %v1958 = vand.u32 %v1957, 4294901760
    %1959 = vmatmul.f32.gmra.mxu0 %v1958
    %v1960 = vpop.f32.mrf.mxu0
    %v1961 = vadd.f32 %v1912, %v1960
    %1962 = vdwg.mxu0
    %1963 = vmatpush.msra.mxu0 0.0
    %1964 = vmatpush.msra.mxu0 0.0
    %1965 = vmatpush.msra.mxu0 0.0
    %1966 = vmatpush.msra.mxu0 0.0
    %1967 = vmatpush.msra.mxu0 0.0
    %1968 = vmatpush.msra.mxu0 0.0
    %1969 = vmatpush.msra.mxu0 0.0
    %1970 = vmatpush.msra.mxu0 0.0
    %1971 = vmatpush.msra.mxu0 0.0
    %1972 = vmatpush.msra.mxu0 0.0
    %1973 = vmatpush.msra.mxu0 0.0
    %1974 = vmatpush.msra.mxu0 0.0
    %1975 = vmatpush.msra.mxu0 0.0
    %1976 = vmatpush.msra.mxu0 0.0
    %v1977 = vand.u32 %v1738, 4294901760
    %v1978 = vsub.f32 %v1738, %v1977
    %v1979 = vand.u32 %v1978, 4294901760
    %1980 = vmatpush.msra.mxu0 %v1979
    %v1981 = vand.u32 %v1734, 4294901760
    %v1982 = vsub.f32 %v1734, %v1981
    %v1983 = vand.u32 %v1982, 4294901760
    %1984 = vmatpush.msra.mxu0 %v1983
    %v1985 = vand.u32 %v402, 4294901760
    %1986 = vmatmul.f32.gmra.mxu0 %v1985
    %v1987 = vpop.f32.mrf.mxu0
    %v1988 = vadd.f32 %v1937, %v1987
    %v1989 = vand.u32 %v405, 4294901760
    %1990 = vmatmul.f32.gmra.mxu0 %v1989
    %v1991 = vpop.f32.mrf.mxu0
    %v1992 = vadd.f32 %v1943, %v1991
    %v1993 = vand.u32 %v408, 4294901760
    %1994 = vmatmul.f32.gmra.mxu0 %v1993
    %v1995 = vpop.f32.mrf.mxu0
    %v1996 = vadd.f32 %v1949, %v1995
    %v1997 = vand.u32 %v411, 4294901760
    %1998 = vmatmul.f32.gmra.mxu0 %v1997
    %v1999 = vpop.f32.mrf.mxu0
    %v2000 = vadd.f32 %v1955, %v1999
    %v2001 = vand.u32 %v414, 4294901760
    %2002 = vmatmul.f32.gmra.mxu0 %v2001
    %v2003 = vpop.f32.mrf.mxu0
    %v2004 = vadd.f32 %v1961, %v2003
    %2005 = vdwg.mxu0
    %2006 = vmatpush.msra.mxu0 0.0
    %2007 = vmatpush.msra.mxu0 0.0
    %2008 = vmatpush.msra.mxu0 0.0
    %2009 = vmatpush.msra.mxu0 0.0
    %2010 = vmatpush.msra.mxu0 0.0
    %2011 = vmatpush.msra.mxu0 0.0
    %2012 = vmatpush.msra.mxu0 0.0
    %2013 = vmatpush.msra.mxu0 0.0
    %2014 = vmatpush.msra.mxu0 0.0
    %2015 = vmatpush.msra.mxu0 0.0
    %2016 = vmatpush.msra.mxu0 0.0
    %2017 = vmatpush.msra.mxu0 0.0
    %2018 = vmatpush.msra.mxu0 0.0
    %2019 = vmatpush.msra.mxu0 0.0
    %v2020 = vand.u32 %v1738, 4294901760
    %2021 = vmatpush.msra.mxu0 %v2020
    %v2022 = vand.u32 %v1734, 4294901760
    %2023 = vmatpush.msra.mxu0 %v2022
    %v2024 = vand.u32 %v402, 4294901760
    %2025 = vmatmul.f32.gmra.mxu0 %v2024
    %v2026 = vpop.f32.mrf.mxu0
    %v2027 = vadd.f32 %v1988, %v2026
    %v2028 = vand.u32 %v405, 4294901760
    %2029 = vmatmul.f32.gmra.mxu0 %v2028
    %v2030 = vpop.f32.mrf.mxu0
    %v2031 = vadd.f32 %v1992, %v2030
    %v2032 = vand.u32 %v408, 4294901760
    %2033 = vmatmul.f32.gmra.mxu0 %v2032
    %v2034 = vpop.f32.mrf.mxu0
    %v2035 = vadd.f32 %v1996, %v2034
    %v2036 = vand.u32 %v411, 4294901760
    %2037 = vmatmul.f32.gmra.mxu0 %v2036
    %v2038 = vpop.f32.mrf.mxu0
    %v2039 = vadd.f32 %v2000, %v2038
    %v2040 = vand.u32 %v414, 4294901760
    %2041 = vmatmul.f32.gmra.mxu0 %v2040
    %v2042 = vpop.f32.mrf.mxu0
    %v2043 = vadd.f32 %v2004, %v2042
    %2044 = vdwg.mxu0
    %2047 = vrot.lane.b32.xlu0 %v1734, 96
    %v2048 = vpop.permute.xlu0 %2047
    %2049 = vrot.lane.b32.xlu0 %v1738, 96
    %v2050 = vpop.permute.xlu0 %2049
    %2053 = vmatpush.msra.mxu0 0.0
    %2054 = vmatpush.msra.mxu0 0.0
    %2055 = vmatpush.msra.mxu0 0.0
    %2056 = vmatpush.msra.mxu0 0.0
    %2057 = vmatpush.msra.mxu0 0.0
    %2058 = vmatpush.msra.mxu0 0.0
    %2059 = vmatpush.msra.mxu0 0.0
    %2060 = vmatpush.msra.mxu0 0.0
    %2061 = vmatpush.msra.mxu0 0.0
    %2062 = vmatpush.msra.mxu0 0.0
    %2063 = vmatpush.msra.mxu0 0.0
    %2064 = vmatpush.msra.mxu0 0.0
    %2065 = vmatpush.msra.mxu0 0.0
    %2066 = vmatpush.msra.mxu0 0.0
    %v2067 = vand.u32 %v2050, 4294901760
    %2068 = vmatpush.msra.mxu0 %v2067
    %v2069 = vand.u32 %v2048, 4294901760
    %2070 = vmatpush.msra.mxu0 %v2069
    %v2071 = vand.u32 %v708, 4294901760
    %v2072 = vsub.f32 %v708, %v2071
    %v2073 = vand.u32 %v2072, 4294901760
    %v2074 = vsub.f32 %v2072, %v2073
    %v2075 = vand.u32 %v2074, 4294901760
    %2076 = vmatmul.f32.gmra.mxu0 %v2075
    %v2077 = vpop.f32.mrf.mxu0
    %v2078 = vadd.f32 0.0, %v2077
    %v2079 = vand.u32 %v711, 4294901760
    %v2080 = vsub.f32 %v711, %v2079
    %v2081 = vand.u32 %v2080, 4294901760
    %v2082 = vsub.f32 %v2080, %v2081
    %v2083 = vand.u32 %v2082, 4294901760
    %2084 = vmatmul.f32.gmra.mxu0 %v2083
    %v2085 = vpop.f32.mrf.mxu0
    %v2086 = vadd.f32 0.0, %v2085
    %v2087 = vand.u32 %v714, 4294901760
    %v2088 = vsub.f32 %v714, %v2087
    %v2089 = vand.u32 %v2088, 4294901760
    %v2090 = vsub.f32 %v2088, %v2089
    %v2091 = vand.u32 %v2090, 4294901760
    %2092 = vmatmul.f32.gmra.mxu0 %v2091
    %v2093 = vpop.f32.mrf.mxu0
    %v2094 = vadd.f32 0.0, %v2093
    %v2095 = vand.u32 %v717, 4294901760
    %v2096 = vsub.f32 %v717, %v2095
    %v2097 = vand.u32 %v2096, 4294901760
    %v2098 = vsub.f32 %v2096, %v2097
    %v2099 = vand.u32 %v2098, 4294901760
    %2100 = vmatmul.f32.gmra.mxu0 %v2099
    %v2101 = vpop.f32.mrf.mxu0
    %v2102 = vadd.f32 0.0, %v2101
    %v2103 = vand.u32 %v720, 4294901760
    %v2104 = vsub.f32 %v720, %v2103
    %v2105 = vand.u32 %v2104, 4294901760
    %v2106 = vsub.f32 %v2104, %v2105
    %v2107 = vand.u32 %v2106, 4294901760
    %2108 = vmatmul.f32.gmra.mxu0 %v2107
    %v2109 = vpop.f32.mrf.mxu0
    %v2110 = vadd.f32 0.0, %v2109
    %2111 = vdwg.mxu0
    %2112 = vmatpush.msra.mxu0 0.0
    %2113 = vmatpush.msra.mxu0 0.0
    %2114 = vmatpush.msra.mxu0 0.0
    %2115 = vmatpush.msra.mxu0 0.0
    %2116 = vmatpush.msra.mxu0 0.0
    %2117 = vmatpush.msra.mxu0 0.0
    %2118 = vmatpush.msra.mxu0 0.0
    %2119 = vmatpush.msra.mxu0 0.0
    %2120 = vmatpush.msra.mxu0 0.0
    %2121 = vmatpush.msra.mxu0 0.0
    %2122 = vmatpush.msra.mxu0 0.0
    %2123 = vmatpush.msra.mxu0 0.0
    %2124 = vmatpush.msra.mxu0 0.0
    %2125 = vmatpush.msra.mxu0 0.0
    %v2126 = vand.u32 %v2050, 4294901760
    %v2127 = vsub.f32 %v2050, %v2126
    %v2128 = vand.u32 %v2127, 4294901760
    %v2129 = vsub.f32 %v2127, %v2128
    %v2130 = vand.u32 %v2129, 4294901760
    %2131 = vmatpush.msra.mxu0 %v2130
    %v2132 = vand.u32 %v2048, 4294901760
    %v2133 = vsub.f32 %v2048, %v2132
    %v2134 = vand.u32 %v2133, 4294901760
    %v2135 = vsub.f32 %v2133, %v2134
    %v2136 = vand.u32 %v2135, 4294901760
    %2137 = vmatpush.msra.mxu0 %v2136
    %v2138 = vand.u32 %v708, 4294901760
    %2139 = vmatmul.f32.gmra.mxu0 %v2138
    %v2140 = vpop.f32.mrf.mxu0
    %v2141 = vadd.f32 %v2078, %v2140
    %v2142 = vand.u32 %v711, 4294901760
    %2143 = vmatmul.f32.gmra.mxu0 %v2142
    %v2144 = vpop.f32.mrf.mxu0
    %v2145 = vadd.f32 %v2086, %v2144
    %v2146 = vand.u32 %v714, 4294901760
    %2147 = vmatmul.f32.gmra.mxu0 %v2146
    %v2148 = vpop.f32.mrf.mxu0
    %v2149 = vadd.f32 %v2094, %v2148
    %v2150 = vand.u32 %v717, 4294901760
    %2151 = vmatmul.f32.gmra.mxu0 %v2150
    %v2152 = vpop.f32.mrf.mxu0
    %v2153 = vadd.f32 %v2102, %v2152
    %v2154 = vand.u32 %v720, 4294901760
    %2155 = vmatmul.f32.gmra.mxu0 %v2154
    %v2156 = vpop.f32.mrf.mxu0
    %v2157 = vadd.f32 %v2110, %v2156
    %2158 = vdwg.mxu0
    %2159 = vmatpush.msra.mxu0 0.0
    %2160 = vmatpush.msra.mxu0 0.0
    %2161 = vmatpush.msra.mxu0 0.0
    %2162 = vmatpush.msra.mxu0 0.0
    %2163 = vmatpush.msra.mxu0 0.0
    %2164 = vmatpush.msra.mxu0 0.0
    %2165 = vmatpush.msra.mxu0 0.0
    %2166 = vmatpush.msra.mxu0 0.0
    %2167 = vmatpush.msra.mxu0 0.0
    %2168 = vmatpush.msra.mxu0 0.0
    %2169 = vmatpush.msra.mxu0 0.0
    %2170 = vmatpush.msra.mxu0 0.0
    %2171 = vmatpush.msra.mxu0 0.0
    %2172 = vmatpush.msra.mxu0 0.0
    %v2173 = vand.u32 %v2050, 4294901760
    %v2174 = vsub.f32 %v2050, %v2173
    %2175 = vmatpush.msra.mxu0 %v2174
    %v2176 = vand.u32 %v2048, 4294901760
    %v2177 = vsub.f32 %v2048, %v2176
    %2178 = vmatpush.msra.mxu0 %v2177
    %v2179 = vand.u32 %v708, 4294901760
    %v2180 = vsub.f32 %v708, %v2179
    %2181 = vmatmul.f32.gmra.mxu0 %v2180
    %v2182 = vpop.f32.mrf.mxu0
    %v2183 = vadd.f32 %v2141, %v2182
    %v2184 = vand.u32 %v711, 4294901760
    %v2185 = vsub.f32 %v711, %v2184
    %2186 = vmatmul.f32.gmra.mxu0 %v2185
    %v2187 = vpop.f32.mrf.mxu0
    %v2188 = vadd.f32 %v2145, %v2187
    %v2189 = vand.u32 %v714, 4294901760
    %v2190 = vsub.f32 %v714, %v2189
    %2191 = vmatmul.f32.gmra.mxu0 %v2190
    %v2192 = vpop.f32.mrf.mxu0
    %v2193 = vadd.f32 %v2149, %v2192
    %v2194 = vand.u32 %v717, 4294901760
    %v2195 = vsub.f32 %v717, %v2194
    %2196 = vmatmul.f32.gmra.mxu0 %v2195
    %v2197 = vpop.f32.mrf.mxu0
    %v2198 = vadd.f32 %v2153, %v2197
    %v2199 = vand.u32 %v720, 4294901760
    %v2200 = vsub.f32 %v720, %v2199
    %2201 = vmatmul.f32.gmra.mxu0 %v2200
    %v2202 = vpop.f32.mrf.mxu0
    %v2203 = vadd.f32 %v2157, %v2202
    %2204 = vdwg.mxu0
    %2205 = vmatpush.msra.mxu0 0.0
    %2206 = vmatpush.msra.mxu0 0.0
    %2207 = vmatpush.msra.mxu0 0.0
    %2208 = vmatpush.msra.mxu0 0.0
    %2209 = vmatpush.msra.mxu0 0.0
    %2210 = vmatpush.msra.mxu0 0.0
    %2211 = vmatpush.msra.mxu0 0.0
    %2212 = vmatpush.msra.mxu0 0.0
    %2213 = vmatpush.msra.mxu0 0.0
    %2214 = vmatpush.msra.mxu0 0.0
    %2215 = vmatpush.msra.mxu0 0.0
    %2216 = vmatpush.msra.mxu0 0.0
    %2217 = vmatpush.msra.mxu0 0.0
    %2218 = vmatpush.msra.mxu0 0.0
    %v2219 = vand.u32 %v2050, 4294901760
    %2220 = vmatpush.msra.mxu0 %v2219
    %v2221 = vand.u32 %v2048, 4294901760
    %2222 = vmatpush.msra.mxu0 %v2221
    %v2223 = vand.u32 %v708, 4294901760
    %v2224 = vsub.f32 %v708, %v2223
    %v2225 = vand.u32 %v2224, 4294901760
    %2226 = vmatmul.f32.gmra.mxu0 %v2225
    %v2227 = vpop.f32.mrf.mxu0
    %v2228 = vadd.f32 %v2183, %v2227
    %v2229 = vand.u32 %v711, 4294901760
    %v2230 = vsub.f32 %v711, %v2229
    %v2231 = vand.u32 %v2230, 4294901760
    %2232 = vmatmul.f32.gmra.mxu0 %v2231
    %v2233 = vpop.f32.mrf.mxu0
    %v2234 = vadd.f32 %v2188, %v2233
    %v2235 = vand.u32 %v714, 4294901760
    %v2236 = vsub.f32 %v714, %v2235
    %v2237 = vand.u32 %v2236, 4294901760
    %2238 = vmatmul.f32.gmra.mxu0 %v2237
    %v2239 = vpop.f32.mrf.mxu0
    %v2240 = vadd.f32 %v2193, %v2239
    %v2241 = vand.u32 %v717, 4294901760
    %v2242 = vsub.f32 %v717, %v2241
    %v2243 = vand.u32 %v2242, 4294901760
    %2244 = vmatmul.f32.gmra.mxu0 %v2243
    %v2245 = vpop.f32.mrf.mxu0
    %v2246 = vadd.f32 %v2198, %v2245
    %v2247 = vand.u32 %v720, 4294901760
    %v2248 = vsub.f32 %v720, %v2247
    %v2249 = vand.u32 %v2248, 4294901760
    %2250 = vmatmul.f32.gmra.mxu0 %v2249
    %v2251 = vpop.f32.mrf.mxu0
    %v2252 = vadd.f32 %v2203, %v2251
    %2253 = vdwg.mxu0
    %2254 = vmatpush.msra.mxu0 0.0
    %2255 = vmatpush.msra.mxu0 0.0
    %2256 = vmatpush.msra.mxu0 0.0
    %2257 = vmatpush.msra.mxu0 0.0
    %2258 = vmatpush.msra.mxu0 0.0
    %2259 = vmatpush.msra.mxu0 0.0
    %2260 = vmatpush.msra.mxu0 0.0
    %2261 = vmatpush.msra.mxu0 0.0
    %2262 = vmatpush.msra.mxu0 0.0
    %2263 = vmatpush.msra.mxu0 0.0
    %2264 = vmatpush.msra.mxu0 0.0
    %2265 = vmatpush.msra.mxu0 0.0
    %2266 = vmatpush.msra.mxu0 0.0
    %2267 = vmatpush.msra.mxu0 0.0
    %v2268 = vand.u32 %v2050, 4294901760
    %v2269 = vsub.f32 %v2050, %v2268
    %v2270 = vand.u32 %v2269, 4294901760
    %2271 = vmatpush.msra.mxu0 %v2270
    %v2272 = vand.u32 %v2048, 4294901760
    %v2273 = vsub.f32 %v2048, %v2272
    %v2274 = vand.u32 %v2273, 4294901760
    %2275 = vmatpush.msra.mxu0 %v2274
    %v2276 = vand.u32 %v708, 4294901760
    %2277 = vmatmul.f32.gmra.mxu0 %v2276
    %v2278 = vpop.f32.mrf.mxu0
    %v2279 = vadd.f32 %v2228, %v2278
    %v2280 = vand.u32 %v711, 4294901760
    %2281 = vmatmul.f32.gmra.mxu0 %v2280
    %v2282 = vpop.f32.mrf.mxu0
    %v2283 = vadd.f32 %v2234, %v2282
    %v2284 = vand.u32 %v714, 4294901760
    %2285 = vmatmul.f32.gmra.mxu0 %v2284
    %v2286 = vpop.f32.mrf.mxu0
    %v2287 = vadd.f32 %v2240, %v2286
    %v2288 = vand.u32 %v717, 4294901760
    %2289 = vmatmul.f32.gmra.mxu0 %v2288
    %v2290 = vpop.f32.mrf.mxu0
    %v2291 = vadd.f32 %v2246, %v2290
    %v2292 = vand.u32 %v720, 4294901760
    %2293 = vmatmul.f32.gmra.mxu0 %v2292
    %v2294 = vpop.f32.mrf.mxu0
    %v2295 = vadd.f32 %v2252, %v2294
    %2296 = vdwg.mxu0
    %2297 = vmatpush.msra.mxu0 0.0
    %2298 = vmatpush.msra.mxu0 0.0
    %2299 = vmatpush.msra.mxu0 0.0
    %2300 = vmatpush.msra.mxu0 0.0
    %2301 = vmatpush.msra.mxu0 0.0
    %2302 = vmatpush.msra.mxu0 0.0
    %2303 = vmatpush.msra.mxu0 0.0
    %2304 = vmatpush.msra.mxu0 0.0
    %2305 = vmatpush.msra.mxu0 0.0
    %2306 = vmatpush.msra.mxu0 0.0
    %2307 = vmatpush.msra.mxu0 0.0
    %2308 = vmatpush.msra.mxu0 0.0
    %2309 = vmatpush.msra.mxu0 0.0
    %2310 = vmatpush.msra.mxu0 0.0
    %v2311 = vand.u32 %v2050, 4294901760
    %2312 = vmatpush.msra.mxu0 %v2311
    %v2313 = vand.u32 %v2048, 4294901760
    %2314 = vmatpush.msra.mxu0 %v2313
    %v2315 = vand.u32 %v708, 4294901760
    %2316 = vmatmul.f32.gmra.mxu0 %v2315
    %v2317 = vpop.f32.mrf.mxu0
    %v2318 = vadd.f32 %v2279, %v2317
    %v2319 = vand.u32 %v711, 4294901760
    %2320 = vmatmul.f32.gmra.mxu0 %v2319
    %v2321 = vpop.f32.mrf.mxu0
    %v2322 = vadd.f32 %v2283, %v2321
    %v2323 = vand.u32 %v714, 4294901760
    %2324 = vmatmul.f32.gmra.mxu0 %v2323
    %v2325 = vpop.f32.mrf.mxu0
    %v2326 = vadd.f32 %v2287, %v2325
    %v2327 = vand.u32 %v717, 4294901760
    %2328 = vmatmul.f32.gmra.mxu0 %v2327
    %v2329 = vpop.f32.mrf.mxu0
    %v2330 = vadd.f32 %v2291, %v2329
    %v2331 = vand.u32 %v720, 4294901760
    %2332 = vmatmul.f32.gmra.mxu0 %v2331
    %v2333 = vpop.f32.mrf.mxu0
    %v2334 = vadd.f32 %v2295, %v2333
    %2335 = vdwg.mxu0
    %2341 = vrot.lane.b32.xlu0 %v2318, 31
    %v2342 = vpop.permute.xlu0 %2341
    %2343 = vrot.lane.b32.xlu0 %v2322, 31
    %v2344 = vpop.permute.xlu0 %2343
    %2345 = vrot.lane.b32.xlu0 %v2326, 31
    %v2346 = vpop.permute.xlu0 %2345
    %2347 = vrot.lane.b32.xlu0 %v2330, 31
    %v2348 = vpop.permute.xlu0 %2347
    %2349 = vrot.lane.b32.xlu0 %v2334, 31
    %v2350 = vpop.permute.xlu0 %2349
    %v2356 = vadd.f32 %v2027, %v2342
    %v2357 = vadd.f32 %v2031, %v2344
    %v2358 = vadd.f32 %v2035, %v2346
    %v2359 = vadd.f32 %v2039, %v2348
    %v2360 = vadd.f32 %v2043, %v2350
    %v2361 = vadd.f32 %v2356, %v1749
    %v2362 = vadd.f32 %v2357, %v1752
    %v2363 = vadd.f32 %v2358, %v1755
    %v2364 = vadd.f32 %v2359, %v1758
    %v2365 = vadd.f32 %v2360, %v1761
    %vm2366 = vcmp.gt.f32.partialorder %v2361, 0.0
    %vm2367 = vcmp.gt.f32.partialorder %v2362, 0.0
    %vm2368 = vcmp.gt.f32.partialorder %v2363, 0.0
    %vm2369 = vcmp.gt.f32.partialorder %v2364, 0.0
    %vm2370 = vcmp.gt.f32.partialorder %v2365, 0.0
    %v2371 = vmul.f32 %v2361, 0.2
    %v2372 = vmul.f32 %v2362, 0.2
    %v2373 = vmul.f32 %v2363, 0.2
    %v2374 = vmul.f32 %v2364, 0.2
    %v2375 = vmul.f32 %v2365, 0.2
    %v2376 = vsel %vm2366, %v2361, %v2371
    %v2377 = vsel %vm2367, %v2362, %v2372
    %v2378 = vsel %vm2368, %v2363, %v2373
    %v2379 = vsel %vm2369, %v2364, %v2374
    %v2380 = vsel %vm2370, %v2365, %v2375
    %2382 = vset.pattern.permute.xlu0 32
    %2383 = vperm.xlu0 %2382, %v2376
    %v2384 = vpop.permute.xlu0 %2383
    %2387 = vset.pattern.permute.xlu0 32
    %2388 = vperm.xlu0 %2387, %v2377
    %v2389 = vpop.permute.xlu0 %2388
    %2392 = vset.pattern.permute.xlu0 32
    %2393 = vperm.xlu0 %2392, %v2378
    %v2394 = vpop.permute.xlu0 %2393
    %2397 = vset.pattern.permute.xlu0 32
    %2398 = vperm.xlu0 %2397, %v2379
    %v2399 = vpop.permute.xlu0 %2398
    %2402 = vset.pattern.permute.xlu0 32
    %2403 = vperm.xlu0 %2402, %v2380
    %v2404 = vpop.permute.xlu0 %2403
    %v2406 = vsel %vm1050, %v2384, -1e+30
    %v2407 = vsel %vm1051, %v2389, -1e+30
    %v2408 = vsel %vm1052, %v2394, -1e+30
    %v2409 = vsel %vm1053, %v2399, -1e+30
    %v2410 = vsel %vm1054, %v2404, -1e+30
    %v2411 = vsel %vm400, %v2406, -inf
    %v2412 = vsel %vm400, %v2407, -inf
    %v2413 = vsel %vm400, %v2408, -inf
    %v2414 = vsel %vm400, %v2409, -inf
    %v2415 = vsel %vm400, %v2410, -inf
    %v2416 = vmax.f32 %v2411, %v2415
    %v2417 = vmax.f32 %v2416, %v2412
    %v2418 = vmax.f32 %v2413, %v2414
    %v2419 = vmax.f32 %v2417, %v2418
    %v2420 = vrot.slane %v2419, 4
    %v2421 = vmax.f32 %v2419, %v2420
    %v2422 = vrot.slane %v2421, 2
    %v2423 = vmax.f32 %v2421, %v2422
    %v2424 = vrot.slane %v2423, 1
    %v2425 = vmax.f32 %v2423, %v2424
    %v2426 = vmul.f32 %v122, %v2425
    %v2427 = vmul.f32 %v123, %v2425
    %v2428 = vmul.f32 %v124, %v2425
    %v2429 = vmul.f32 %v125, %v2425
    %v2430 = vmul.f32 %v126, %v2425
    %v2431 = vsel %vm400, %v2426, 0.0
    %2432 = vadd.xlane.f32.xlu0 %v2431
    %v2433 = vpop.xlane.xlu0 %2432
    %v2434 = vsel %vm400, %v2427, 0.0
    %2435 = vadd.xlane.f32.xlu0 %v2434
    %v2436 = vpop.xlane.xlu0 %2435
    %v2437 = vsel %vm400, %v2428, 0.0
    %2438 = vadd.xlane.f32.xlu0 %v2437
    %v2439 = vpop.xlane.xlu0 %2438
    %v2440 = vsel %vm400, %v2429, 0.0
    %2441 = vadd.xlane.f32.xlu0 %v2440
    %v2442 = vpop.xlane.xlu0 %2441
    %v2443 = vsel %vm400, %v2430, 0.0
    %2444 = vadd.xlane.f32.xlu0 %v2443
    %v2445 = vpop.xlane.xlu0 %2444
    %v2446 = vsub.f32 %v2376, %v2433
    %v2447 = vsub.f32 %v2377, %v2436
    %v2448 = vsub.f32 %v2378, %v2439
    %v2449 = vsub.f32 %v2379, %v2442
    %v2450 = vsub.f32 %v2380, %v2445
    %v2451 = vmul.f32 %v2446, 1.442695
    %v2452 = vpow.pop %v2451
    %v2453 = vmul.f32 %v2447, 1.442695
    %v2454 = vpow.pop %v2453
    %v2455 = vmul.f32 %v2448, 1.442695
    %v2456 = vpow.pop %v2455
    %v2457 = vmul.f32 %v2449, 1.442695
    %v2458 = vpow.pop %v2457
    %v2459 = vmul.f32 %v2450, 1.442695
    %v2460 = vpow.pop %v2459
    %2462 = vset.pattern.permute.xlu0 32
    %2463 = vperm.xlu0 %2462, %v2452
    %v2464 = vpop.permute.xlu0 %2463
    %2467 = vset.pattern.permute.xlu0 32
    %2468 = vperm.xlu0 %2467, %v2454
    %v2469 = vpop.permute.xlu0 %2468
    %2472 = vset.pattern.permute.xlu0 32
    %2473 = vperm.xlu0 %2472, %v2456
    %v2474 = vpop.permute.xlu0 %2473
    %2477 = vset.pattern.permute.xlu0 32
    %2478 = vperm.xlu0 %2477, %v2458
    %v2479 = vpop.permute.xlu0 %2478
    %2482 = vset.pattern.permute.xlu0 32
    %2483 = vperm.xlu0 %2482, %v2460
    %v2484 = vpop.permute.xlu0 %2483
    %v2486 = vmul.f32 %v2464, %v2027
    %v2487 = vmul.f32 %v2469, %v2031
    %v2488 = vmul.f32 %v2474, %v2035
    %v2489 = vmul.f32 %v2479, %v2039
    %v2490 = vmul.f32 %v2484, %v2043
    %v2491 = vsel %vm149, %v2486, %v2452
    %v2492 = vsel %vm149, %v2487, %v2454
    %v2493 = vsel %vm149, %v2488, %v2456
    %v2494 = vsel %vm149, %v2489, %v2458
    %v2495 = vsel %vm149, %v2490, %v2460
    %2496 = vmatpush.msra.mxu0 0.0
    %2497 = vmatpush.msra.mxu0 0.0
    %2498 = vmatpush.msra.mxu0 0.0
    %2499 = vmatpush.msra.mxu0 0.0
    %2500 = vmatpush.msra.mxu0 0.0
    %2501 = vmatpush.msra.mxu0 0.0
    %2502 = vmatpush.msra.mxu0 0.0
    %2503 = vmatpush.msra.mxu0 0.0
    %2504 = vmatpush.msra.mxu0 0.0
    %2505 = vmatpush.msra.mxu0 0.0
    %2506 = vmatpush.msra.mxu0 0.0
    %v2507 = vand.u32 %v2495, 4294901760
    %2508 = vmatpush.msra.mxu0 %v2507
    %v2509 = vand.u32 %v2494, 4294901760
    %2510 = vmatpush.msra.mxu0 %v2509
    %v2511 = vand.u32 %v2493, 4294901760
    %2512 = vmatpush.msra.mxu0 %v2511
    %v2513 = vand.u32 %v2492, 4294901760
    %2514 = vmatpush.msra.mxu0 %v2513
    %v2515 = vand.u32 %v2491, 4294901760
    %2516 = vmatpush.msra.mxu0 %v2515
    %v2517 = vand.u32 %v1172, 4294901760
    %v2518 = vsub.f32 %v1172, %v2517
    %v2519 = vand.u32 %v2518, 4294901760
    %v2520 = vsub.f32 %v2518, %v2519
    %v2521 = vand.u32 %v2520, 4294901760
    %2522 = vmatmul.f32.gmra.mxu0 %v2521
    %v2523 = vpop.f32.mrf.mxu0
    %v2524 = vadd.f32 0.0, %v2523
    %v2525 = vand.u32 %v1175, 4294901760
    %v2526 = vsub.f32 %v1175, %v2525
    %v2527 = vand.u32 %v2526, 4294901760
    %v2528 = vsub.f32 %v2526, %v2527
    %v2529 = vand.u32 %v2528, 4294901760
    %2530 = vmatmul.f32.gmra.mxu0 %v2529
    %v2531 = vpop.f32.mrf.mxu0
    %v2532 = vadd.f32 0.0, %v2531
    %2533 = vdwg.mxu0
    %2534 = vmatpush.msra.mxu0 0.0
    %2535 = vmatpush.msra.mxu0 0.0
    %2536 = vmatpush.msra.mxu0 0.0
    %2537 = vmatpush.msra.mxu0 0.0
    %2538 = vmatpush.msra.mxu0 0.0
    %2539 = vmatpush.msra.mxu0 0.0
    %2540 = vmatpush.msra.mxu0 0.0
    %2541 = vmatpush.msra.mxu0 0.0
    %2542 = vmatpush.msra.mxu0 0.0
    %2543 = vmatpush.msra.mxu0 0.0
    %2544 = vmatpush.msra.mxu0 0.0
    %v2545 = vand.u32 %v2495, 4294901760
    %v2546 = vsub.f32 %v2495, %v2545
    %v2547 = vand.u32 %v2546, 4294901760
    %v2548 = vsub.f32 %v2546, %v2547
    %v2549 = vand.u32 %v2548, 4294901760
    %2550 = vmatpush.msra.mxu0 %v2549
    %v2551 = vand.u32 %v2494, 4294901760
    %v2552 = vsub.f32 %v2494, %v2551
    %v2553 = vand.u32 %v2552, 4294901760
    %v2554 = vsub.f32 %v2552, %v2553
    %v2555 = vand.u32 %v2554, 4294901760
    %2556 = vmatpush.msra.mxu0 %v2555
    %v2557 = vand.u32 %v2493, 4294901760
    %v2558 = vsub.f32 %v2493, %v2557
    %v2559 = vand.u32 %v2558, 4294901760
    %v2560 = vsub.f32 %v2558, %v2559
    %v2561 = vand.u32 %v2560, 4294901760
    %2562 = vmatpush.msra.mxu0 %v2561
    %v2563 = vand.u32 %v2492, 4294901760
    %v2564 = vsub.f32 %v2492, %v2563
    %v2565 = vand.u32 %v2564, 4294901760
    %v2566 = vsub.f32 %v2564, %v2565
    %v2567 = vand.u32 %v2566, 4294901760
    %2568 = vmatpush.msra.mxu0 %v2567
    %v2569 = vand.u32 %v2491, 4294901760
    %v2570 = vsub.f32 %v2491, %v2569
    %v2571 = vand.u32 %v2570, 4294901760
    %v2572 = vsub.f32 %v2570, %v2571
    %v2573 = vand.u32 %v2572, 4294901760
    %2574 = vmatpush.msra.mxu0 %v2573
    %v2575 = vand.u32 %v1172, 4294901760
    %2576 = vmatmul.f32.gmra.mxu0 %v2575
    %v2577 = vpop.f32.mrf.mxu0
    %v2578 = vadd.f32 %v2524, %v2577
    %v2579 = vand.u32 %v1175, 4294901760
    %2580 = vmatmul.f32.gmra.mxu0 %v2579
    %v2581 = vpop.f32.mrf.mxu0
    %v2582 = vadd.f32 %v2532, %v2581
    %2583 = vdwg.mxu0
    %2584 = vmatpush.msra.mxu0 0.0
    %2585 = vmatpush.msra.mxu0 0.0
    %2586 = vmatpush.msra.mxu0 0.0
    %2587 = vmatpush.msra.mxu0 0.0
    %2588 = vmatpush.msra.mxu0 0.0
    %2589 = vmatpush.msra.mxu0 0.0
    %2590 = vmatpush.msra.mxu0 0.0
    %2591 = vmatpush.msra.mxu0 0.0
    %2592 = vmatpush.msra.mxu0 0.0
    %2593 = vmatpush.msra.mxu0 0.0
    %2594 = vmatpush.msra.mxu0 0.0
    %v2595 = vand.u32 %v2495, 4294901760
    %v2596 = vsub.f32 %v2495, %v2595
    %2597 = vmatpush.msra.mxu0 %v2596
    %v2598 = vand.u32 %v2494, 4294901760
    %v2599 = vsub.f32 %v2494, %v2598
    %2600 = vmatpush.msra.mxu0 %v2599
    %v2601 = vand.u32 %v2493, 4294901760
    %v2602 = vsub.f32 %v2493, %v2601
    %2603 = vmatpush.msra.mxu0 %v2602
    %v2604 = vand.u32 %v2492, 4294901760
    %v2605 = vsub.f32 %v2492, %v2604
    %2606 = vmatpush.msra.mxu0 %v2605
    %v2607 = vand.u32 %v2491, 4294901760
    %v2608 = vsub.f32 %v2491, %v2607
    %2609 = vmatpush.msra.mxu0 %v2608
    %v2610 = vand.u32 %v1172, 4294901760
    %v2611 = vsub.f32 %v1172, %v2610
    %2612 = vmatmul.f32.gmra.mxu0 %v2611
    %v2613 = vpop.f32.mrf.mxu0
    %v2614 = vadd.f32 %v2578, %v2613
    %v2615 = vand.u32 %v1175, 4294901760
    %v2616 = vsub.f32 %v1175, %v2615
    %2617 = vmatmul.f32.gmra.mxu0 %v2616
    %v2618 = vpop.f32.mrf.mxu0
    %v2619 = vadd.f32 %v2582, %v2618
    %2620 = vdwg.mxu0
    %2621 = vmatpush.msra.mxu0 0.0
    %2622 = vmatpush.msra.mxu0 0.0
    %2623 = vmatpush.msra.mxu0 0.0
    %2624 = vmatpush.msra.mxu0 0.0
    %2625 = vmatpush.msra.mxu0 0.0
    %2626 = vmatpush.msra.mxu0 0.0
    %2627 = vmatpush.msra.mxu0 0.0
    %2628 = vmatpush.msra.mxu0 0.0
    %2629 = vmatpush.msra.mxu0 0.0
    %2630 = vmatpush.msra.mxu0 0.0
    %2631 = vmatpush.msra.mxu0 0.0
    %v2632 = vand.u32 %v2495, 4294901760
    %2633 = vmatpush.msra.mxu0 %v2632
    %v2634 = vand.u32 %v2494, 4294901760
    %2635 = vmatpush.msra.mxu0 %v2634
    %v2636 = vand.u32 %v2493, 4294901760
    %2637 = vmatpush.msra.mxu0 %v2636
    %v2638 = vand.u32 %v2492, 4294901760
    %2639 = vmatpush.msra.mxu0 %v2638
    %v2640 = vand.u32 %v2491, 4294901760
    %2641 = vmatpush.msra.mxu0 %v2640
    %v2642 = vand.u32 %v1172, 4294901760
    %v2643 = vsub.f32 %v1172, %v2642
    %v2644 = vand.u32 %v2643, 4294901760
    %2645 = vmatmul.f32.gmra.mxu0 %v2644
    %v2646 = vpop.f32.mrf.mxu0
    %v2647 = vadd.f32 %v2614, %v2646
    %v2648 = vand.u32 %v1175, 4294901760
    %v2649 = vsub.f32 %v1175, %v2648
    %v2650 = vand.u32 %v2649, 4294901760
    %2651 = vmatmul.f32.gmra.mxu0 %v2650
    %v2652 = vpop.f32.mrf.mxu0
    %v2653 = vadd.f32 %v2619, %v2652
    %2654 = vdwg.mxu0
    %2655 = vmatpush.msra.mxu0 0.0
    %2656 = vmatpush.msra.mxu0 0.0
    %2657 = vmatpush.msra.mxu0 0.0
    %2658 = vmatpush.msra.mxu0 0.0
    %2659 = vmatpush.msra.mxu0 0.0
    %2660 = vmatpush.msra.mxu0 0.0
    %2661 = vmatpush.msra.mxu0 0.0
    %2662 = vmatpush.msra.mxu0 0.0
    %2663 = vmatpush.msra.mxu0 0.0
    %2664 = vmatpush.msra.mxu0 0.0
    %2665 = vmatpush.msra.mxu0 0.0
    %v2666 = vand.u32 %v2495, 4294901760
    %v2667 = vsub.f32 %v2495, %v2666
    %v2668 = vand.u32 %v2667, 4294901760
    %2669 = vmatpush.msra.mxu0 %v2668
    %v2670 = vand.u32 %v2494, 4294901760
    %v2671 = vsub.f32 %v2494, %v2670
    %v2672 = vand.u32 %v2671, 4294901760
    %2673 = vmatpush.msra.mxu0 %v2672
    %v2674 = vand.u32 %v2493, 4294901760
    %v2675 = vsub.f32 %v2493, %v2674
    %v2676 = vand.u32 %v2675, 4294901760
    %2677 = vmatpush.msra.mxu0 %v2676
    %v2678 = vand.u32 %v2492, 4294901760
    %v2679 = vsub.f32 %v2492, %v2678
    %v2680 = vand.u32 %v2679, 4294901760
    %2681 = vmatpush.msra.mxu0 %v2680
    %v2682 = vand.u32 %v2491, 4294901760
    %v2683 = vsub.f32 %v2491, %v2682
    %v2684 = vand.u32 %v2683, 4294901760
    %2685 = vmatpush.msra.mxu0 %v2684
    %v2686 = vand.u32 %v1172, 4294901760
    %2687 = vmatmul.f32.gmra.mxu0 %v2686
    %v2688 = vpop.f32.mrf.mxu0
    %v2689 = vadd.f32 %v2647, %v2688
    %v2690 = vand.u32 %v1175, 4294901760
    %2691 = vmatmul.f32.gmra.mxu0 %v2690
    %v2692 = vpop.f32.mrf.mxu0
    %v2693 = vadd.f32 %v2653, %v2692
    %2694 = vdwg.mxu0
    %2695 = vmatpush.msra.mxu0 0.0
    %2696 = vmatpush.msra.mxu0 0.0
    %2697 = vmatpush.msra.mxu0 0.0
    %2698 = vmatpush.msra.mxu0 0.0
    %2699 = vmatpush.msra.mxu0 0.0
    %2700 = vmatpush.msra.mxu0 0.0
    %2701 = vmatpush.msra.mxu0 0.0
    %2702 = vmatpush.msra.mxu0 0.0
    %2703 = vmatpush.msra.mxu0 0.0
    %2704 = vmatpush.msra.mxu0 0.0
    %2705 = vmatpush.msra.mxu0 0.0
    %v2706 = vand.u32 %v2495, 4294901760
    %2707 = vmatpush.msra.mxu0 %v2706
    %v2708 = vand.u32 %v2494, 4294901760
    %2709 = vmatpush.msra.mxu0 %v2708
    %v2710 = vand.u32 %v2493, 4294901760
    %2711 = vmatpush.msra.mxu0 %v2710
    %v2712 = vand.u32 %v2492, 4294901760
    %2713 = vmatpush.msra.mxu0 %v2712
    %v2714 = vand.u32 %v2491, 4294901760
    %2715 = vmatpush.msra.mxu0 %v2714
    %v2716 = vand.u32 %v1172, 4294901760
    %2717 = vmatmul.f32.gmra.mxu0 %v2716
    %v2718 = vpop.f32.mrf.mxu0
    %v2719 = vadd.f32 %v2689, %v2718
    %v2720 = vand.u32 %v1175, 4294901760
    %2721 = vmatmul.f32.gmra.mxu0 %v2720
    %v2722 = vpop.f32.mrf.mxu0
    %v2723 = vadd.f32 %v2693, %v2722
    %2724 = vdwg.mxu0
    %vm2725 = vcmp.gt.f32.partialorder %v2719, 0.0
    %vm2726 = vcmp.gt.f32.partialorder %v2723, 0.0
    %v2727 = vsel %vm2725, %v2719, 1.0
    %v2728 = vsel %vm2726, %v2723, 1.0
    %v2729 = vrcp.pop %v2727
    %v2730 = vmul.f32 %v2727, %v2729
    %v2731 = vsub.f32 1.0, %v2730
    %v2732 = vmul.f32 %v2729, %v2731
    %v2733 = vadd.f32 %v2729, %v2732
    %vm2734 = vweird.f32 %v2727
    %vm2735 = vweird.f32 %v2729
    %vm2736 = vmor %vm2734, %vm2735
    %v2737 = vsel %vm2736, %v2729, %v2733
    %v2738 = vand.u32 2147483647, %v2727
    %vm2739 = vcmp.eq.f32.partialorder %v2738, 8.507059e+37
    %v2740 = vand.u32 %v2727, 2147483648
    %v2741 = vor.u32 1.1754944e-38, %v2740
    %v2742 = vsel %vm2739, %v2741, %v2737
    %v2743 = vrcp.pop %v2728
    %v2744 = vmul.f32 %v2728, %v2743
    %v2745 = vsub.f32 1.0, %v2744
    %v2746 = vmul.f32 %v2743, %v2745
    %v2747 = vadd.f32 %v2743, %v2746
    %vm2748 = vweird.f32 %v2728
    %vm2749 = vweird.f32 %v2743
    %vm2750 = vmor %vm2748, %vm2749
    %v2751 = vsel %vm2750, %v2743, %v2747
    %v2752 = vand.u32 2147483647, %v2728
    %vm2753 = vcmp.eq.f32.partialorder %v2752, 8.507059e+37
    %v2754 = vand.u32 %v2728, 2147483648
    %v2755 = vor.u32 1.1754944e-38, %v2754
    %v2756 = vsel %vm2753, %v2755, %v2751
    %v2757 = vld [vmem:[#allocation2 + $0x3] sm:$0x1]
    %2759 = vset.pattern.permute.xlu0 32
    %2760 = vperm.xlu0 %2759, %v2742
    %v2761 = vpop.permute.xlu0 %2760
    %2764 = vset.pattern.permute.xlu0 32
    %2765 = vperm.xlu0 %2764, %v2756
    %v2766 = vpop.permute.xlu0 %2765
    %v2768 = vmul.f32 %v2719, %v2761
    %v2769 = vmul.f32 %v2723, %v2766
    %v2770 = vperm.slane %v2757, 0
    %v2771 = vadd.f32 %v2768, %v2770
    %v2772 = vadd.f32 %v2769, %v2770
    %v2773 = vld [vmem:[#allocation2 + $0x4] sm:$0x1]
    %v2774 = vld [vmem:[#allocation2 + $0x5] sm:$0x1]
    %v2775 = vsel %vm149, %v2771, 0.0
    %2776 = vadd.xlane.f32.xlu0 %v2775
    %v2777 = vpop.xlane.xlu0 %2776
    %v2778 = vsel %vm149, %v2772, 0.0
    %2779 = vadd.xlane.f32.xlu0 %v2778
    %v2780 = vpop.xlane.xlu0 %2779
    %v2781 = vmul.f32 %v2777, %v1468
    %v2782 = vmul.f32 %v2780, %v1468
    %v2783 = vsub.f32 %v2771, %v2781
    %v2784 = vsub.f32 %v2772, %v2782
    %v2785 = vmul.f32 %v2783, %v2783
    %v2786 = vmul.f32 %v2784, %v2784
    %v2787 = vsel %vm149, %v2785, 0.0
    %2788 = vadd.xlane.f32.xlu0 %v2787
    %v2789 = vpop.xlane.xlu0 %2788
    %v2790 = vsel %vm149, %v2786, 0.0
    %2791 = vadd.xlane.f32.xlu0 %v2790
    %v2792 = vpop.xlane.xlu0 %2791
    %v2793 = vmul.f32 %v2789, %v1468
    %v2794 = vmul.f32 %v2792, %v1468
    %v2795 = vadd.f32 %v2793, 1e-05
    %v2796 = vadd.f32 %v2794, 1e-05
    %v2797 = vrsqrt.pop %v2795
    %v2798 = vmul.f32 %v2797, %v2795
    %v2799 = vmul.f32 %v2798, %v2797
    %v2800 = vmul.f32 0.5, %v2799
    %v2801 = vsub.f32 1.5, %v2800
    %v2802 = vmul.f32 %v2797, %v2801
    %vm2803 = vweird.f32 %v2795
    %vm2804 = vweird.f32 %v2797
    %vm2805 = vmor %vm2803, %vm2804
    %v2806 = vsel %vm2805, %v2797, %v2802
    %v2807 = vrsqrt.pop %v2796
    %v2808 = vmul.f32 %v2807, %v2796
    %v2809 = vmul.f32 %v2808, %v2807
    %v2810 = vmul.f32 0.5, %v2809
    %v2811 = vsub.f32 1.5, %v2810
    %v2812 = vmul.f32 %v2807, %v2811
    %vm2813 = vweird.f32 %v2796
    %vm2814 = vweird.f32 %v2807
    %vm2815 = vmor %vm2813, %vm2814
    %v2816 = vsel %vm2815, %v2807, %v2812
    %v2817 = vmul.f32 %v2783, %v2806
    %v2818 = vmul.f32 %v2784, %v2816
    %v2819 = vperm.slane %v2773, 0
    %v2820 = vmul.f32 %v2817, %v2819
    %v2821 = vmul.f32 %v2818, %v2819
    %v2822 = vperm.slane %v2774, 0
    %v2823 = vadd.f32 %v2820, %v2822
    %v2824 = vadd.f32 %v2821, %v2822
    %v2826 = vsel %vm400, %v142, 0
    %2828 = vmatpush.msra.mxu0 0.0
    %2829 = vmatpush.msra.mxu0 0.0
    %2830 = vmatpush.msra.mxu0 0.0
    %2831 = vmatpush.msra.mxu0 0.0
    %2832 = vmatpush.msra.mxu0 0.0
    %2833 = vmatpush.msra.mxu0 0.0
    %2834 = vmatpush.msra.mxu0 0.0
    %2835 = vmatpush.msra.mxu0 0.0
    %2836 = vmatpush.msra.mxu0 0.0
    %2837 = vmatpush.msra.mxu0 0.0
    %2838 = vmatpush.msra.mxu0 0.0
    %2839 = vmatpush.msra.mxu0 0.0
    %2840 = vmatpush.msra.mxu0 0.0
    %2841 = vmatpush.msra.mxu0 0.0
    %v2842 = vand.u32 %v2824, 4294901760
    %2843 = vmatpush.msra.mxu0 %v2842
    %v2844 = vand.u32 %v2823, 4294901760
    %2845 = vmatpush.msra.mxu0 %v2844
    %v2846 = vand.u32 %v2826, 4294901760
    %v2847 = vsub.f32 %v2826, %v2846
    %v2848 = vand.u32 %v2847, 4294901760
    %v2849 = vsub.f32 %v2847, %v2848
    %v2850 = vand.u32 %v2849, 4294901760
    %2851 = vmatmul.f32.gmra.mxu0 %v2850
    %v2852 = vpop.f32.mrf.mxu0
    %v2853 = vadd.f32 0.0, %v2852
    %2854 = vdwg.mxu0
    %2855 = vmatpush.msra.mxu0 0.0
    %2856 = vmatpush.msra.mxu0 0.0
    %2857 = vmatpush.msra.mxu0 0.0
    %2858 = vmatpush.msra.mxu0 0.0
    %2859 = vmatpush.msra.mxu0 0.0
    %2860 = vmatpush.msra.mxu0 0.0
    %2861 = vmatpush.msra.mxu0 0.0
    %2862 = vmatpush.msra.mxu0 0.0
    %2863 = vmatpush.msra.mxu0 0.0
    %2864 = vmatpush.msra.mxu0 0.0
    %2865 = vmatpush.msra.mxu0 0.0
    %2866 = vmatpush.msra.mxu0 0.0
    %2867 = vmatpush.msra.mxu0 0.0
    %2868 = vmatpush.msra.mxu0 0.0
    %v2869 = vand.u32 %v2824, 4294901760
    %v2870 = vsub.f32 %v2824, %v2869
    %v2871 = vand.u32 %v2870, 4294901760
    %v2872 = vsub.f32 %v2870, %v2871
    %v2873 = vand.u32 %v2872, 4294901760
    %2874 = vmatpush.msra.mxu0 %v2873
    %v2875 = vand.u32 %v2823, 4294901760
    %v2876 = vsub.f32 %v2823, %v2875
    %v2877 = vand.u32 %v2876, 4294901760
    %v2878 = vsub.f32 %v2876, %v2877
    %v2879 = vand.u32 %v2878, 4294901760
    %2880 = vmatpush.msra.mxu0 %v2879
    %v2881 = vand.u32 %v2826, 4294901760
    %2882 = vmatmul.f32.gmra.mxu0 %v2881
    %v2883 = vpop.f32.mrf.mxu0
    %v2884 = vadd.f32 %v2853, %v2883
    %2885 = vdwg.mxu0
    %2886 = vmatpush.msra.mxu0 0.0
    %2887 = vmatpush.msra.mxu0 0.0
    %2888 = vmatpush.msra.mxu0 0.0
    %2889 = vmatpush.msra.mxu0 0.0
    %2890 = vmatpush.msra.mxu0 0.0
    %2891 = vmatpush.msra.mxu0 0.0
    %2892 = vmatpush.msra.mxu0 0.0
    %2893 = vmatpush.msra.mxu0 0.0
    %2894 = vmatpush.msra.mxu0 0.0
    %2895 = vmatpush.msra.mxu0 0.0
    %2896 = vmatpush.msra.mxu0 0.0
    %2897 = vmatpush.msra.mxu0 0.0
    %2898 = vmatpush.msra.mxu0 0.0
    %2899 = vmatpush.msra.mxu0 0.0
    %v2900 = vand.u32 %v2824, 4294901760
    %v2901 = vsub.f32 %v2824, %v2900
    %2902 = vmatpush.msra.mxu0 %v2901
    %v2903 = vand.u32 %v2823, 4294901760
    %v2904 = vsub.f32 %v2823, %v2903
    %2905 = vmatpush.msra.mxu0 %v2904
    %v2906 = vand.u32 %v2826, 4294901760
    %v2907 = vsub.f32 %v2826, %v2906
    %2908 = vmatmul.f32.gmra.mxu0 %v2907
    %v2909 = vpop.f32.mrf.mxu0
    %v2910 = vadd.f32 %v2884, %v2909
    %2911 = vdwg.mxu0
    %2912 = vmatpush.msra.mxu0 0.0
    %2913 = vmatpush.msra.mxu0 0.0
    %2914 = vmatpush.msra.mxu0 0.0
    %2915 = vmatpush.msra.mxu0 0.0
    %2916 = vmatpush.msra.mxu0 0.0
    %2917 = vmatpush.msra.mxu0 0.0
    %2918 = vmatpush.msra.mxu0 0.0
    %2919 = vmatpush.msra.mxu0 0.0
    %2920 = vmatpush.msra.mxu0 0.0
    %2921 = vmatpush.msra.mxu0 0.0
    %2922 = vmatpush.msra.mxu0 0.0
    %2923 = vmatpush.msra.mxu0 0.0
    %2924 = vmatpush.msra.mxu0 0.0
    %2925 = vmatpush.msra.mxu0 0.0
    %v2926 = vand.u32 %v2824, 4294901760
    %2927 = vmatpush.msra.mxu0 %v2926
    %v2928 = vand.u32 %v2823, 4294901760
    %2929 = vmatpush.msra.mxu0 %v2928
    %v2930 = vand.u32 %v2826, 4294901760
    %v2931 = vsub.f32 %v2826, %v2930
    %v2932 = vand.u32 %v2931, 4294901760
    %2933 = vmatmul.f32.gmra.mxu0 %v2932
    %v2934 = vpop.f32.mrf.mxu0
    %v2935 = vadd.f32 %v2910, %v2934
    %2936 = vdwg.mxu0
    %2937 = vmatpush.msra.mxu0 0.0
    %2938 = vmatpush.msra.mxu0 0.0
    %2939 = vmatpush.msra.mxu0 0.0
    %2940 = vmatpush.msra.mxu0 0.0
    %2941 = vmatpush.msra.mxu0 0.0
    %2942 = vmatpush.msra.mxu0 0.0
    %2943 = vmatpush.msra.mxu0 0.0
    %2944 = vmatpush.msra.mxu0 0.0
    %2945 = vmatpush.msra.mxu0 0.0
    %2946 = vmatpush.msra.mxu0 0.0
    %2947 = vmatpush.msra.mxu0 0.0
    %2948 = vmatpush.msra.mxu0 0.0
    %2949 = vmatpush.msra.mxu0 0.0
    %2950 = vmatpush.msra.mxu0 0.0
    %v2951 = vand.u32 %v2824, 4294901760
    %v2952 = vsub.f32 %v2824, %v2951
    %v2953 = vand.u32 %v2952, 4294901760
    %2954 = vmatpush.msra.mxu0 %v2953
    %v2955 = vand.u32 %v2823, 4294901760
    %v2956 = vsub.f32 %v2823, %v2955
    %v2957 = vand.u32 %v2956, 4294901760
    %2958 = vmatpush.msra.mxu0 %v2957
    %v2959 = vand.u32 %v2826, 4294901760
    %2960 = vmatmul.f32.gmra.mxu0 %v2959
    %v2961 = vpop.f32.mrf.mxu0
    %v2962 = vadd.f32 %v2935, %v2961
    %2963 = vdwg.mxu0
    %2964 = vmatpush.msra.mxu0 0.0
    %2965 = vmatpush.msra.mxu0 0.0
    %2966 = vmatpush.msra.mxu0 0.0
    %2967 = vmatpush.msra.mxu0 0.0
    %2968 = vmatpush.msra.mxu0 0.0
    %2969 = vmatpush.msra.mxu0 0.0
    %2970 = vmatpush.msra.mxu0 0.0
    %2971 = vmatpush.msra.mxu0 0.0
    %2972 = vmatpush.msra.mxu0 0.0
    %2973 = vmatpush.msra.mxu0 0.0
    %2974 = vmatpush.msra.mxu0 0.0
    %2975 = vmatpush.msra.mxu0 0.0
    %2976 = vmatpush.msra.mxu0 0.0
    %2977 = vmatpush.msra.mxu0 0.0
    %v2978 = vand.u32 %v2824, 4294901760
    %2979 = vmatpush.msra.mxu0 %v2978
    %v2980 = vand.u32 %v2823, 4294901760
    %2981 = vmatpush.msra.mxu0 %v2980
    %v2982 = vand.u32 %v2826, 4294901760
    %2983 = vmatmul.f32.gmra.mxu0 %v2982
    %v2984 = vpop.f32.mrf.mxu0
    %v2985 = vadd.f32 %v2962, %v2984
    %2986 = vdwg.mxu0
    %v2987 = vld [vmem:[%s6] sm:$0x3]
    %2989 = vset.pattern.permute.xlu0 0
    %2990 = vperm.xlu0 %2989, %v2987
    %v2991 = vpop.permute.xlu0 %2990
    %v2993 = vmul.f32 %v2985, %v2991
    %v2994 = vld [vmem:[%s10] sm:$0xff]
    %v2995 = vld [vmem:[%s10 + $0x8] sm:$0xff]
    %v2996 = vld [vmem:[%s10 + $0x10] sm:$0xff]
    %v2997 = vld [vmem:[%s10 + $0x18] sm:$0xff]
    %v2998 = vld [vmem:[#allocation2 + $0x6] sm:$0x1]
    %v2999 = vperm.slane %v2998, 0
    %v3001 = vsel %vm149, %v2993, 0
    %3003 = vmatpush.msra.mxu0 0.0
    %3004 = vmatpush.msra.mxu0 0.0
    %3005 = vmatpush.msra.mxu0 0.0
    %3006 = vmatpush.msra.mxu0 0.0
    %3007 = vmatpush.msra.mxu0 0.0
    %3008 = vmatpush.msra.mxu0 0.0
    %3009 = vmatpush.msra.mxu0 0.0
    %3010 = vmatpush.msra.mxu0 0.0
    %3011 = vmatpush.msra.mxu0 0.0
    %3012 = vmatpush.msra.mxu0 0.0
    %3013 = vmatpush.msra.mxu0 0.0
    %3014 = vmatpush.msra.mxu0 0.0
    %v3015 = vand.u32 %v2997, 4294901760
    %3016 = vmatpush.msra.mxu0 %v3015
    %v3017 = vand.u32 %v2996, 4294901760
    %3018 = vmatpush.msra.mxu0 %v3017
    %v3019 = vand.u32 %v2995, 4294901760
    %3020 = vmatpush.msra.mxu0 %v3019
    %v3021 = vand.u32 %v2994, 4294901760
    %3022 = vmatpush.msra.mxu0 %v3021
    %v3023 = vand.u32 %v3001, 4294901760
    %v3024 = vsub.f32 %v3001, %v3023
    %v3025 = vand.u32 %v3024, 4294901760
    %v3026 = vsub.f32 %v3024, %v3025
    %v3027 = vand.u32 %v3026, 4294901760
    %3028 = vmatmul.f32.gmra.mxu0 %v3027
    %v3029 = vpop.f32.mrf.mxu0
    %v3030 = vadd.f32 %v2999, %v3029
    %3031 = vdwg.mxu0
    %3032 = vmatpush.msra.mxu0 0.0
    %3033 = vmatpush.msra.mxu0 0.0
    %3034 = vmatpush.msra.mxu0 0.0
    %3035 = vmatpush.msra.mxu0 0.0
    %3036 = vmatpush.msra.mxu0 0.0
    %3037 = vmatpush.msra.mxu0 0.0
    %3038 = vmatpush.msra.mxu0 0.0
    %3039 = vmatpush.msra.mxu0 0.0
    %3040 = vmatpush.msra.mxu0 0.0
    %3041 = vmatpush.msra.mxu0 0.0
    %3042 = vmatpush.msra.mxu0 0.0
    %3043 = vmatpush.msra.mxu0 0.0
    %v3044 = vand.u32 %v2997, 4294901760
    %v3045 = vsub.f32 %v2997, %v3044
    %v3046 = vand.u32 %v3045, 4294901760
    %v3047 = vsub.f32 %v3045, %v3046
    %v3048 = vand.u32 %v3047, 4294901760
    %3049 = vmatpush.msra.mxu0 %v3048
    %v3050 = vand.u32 %v2996, 4294901760
    %v3051 = vsub.f32 %v2996, %v3050
    %v3052 = vand.u32 %v3051, 4294901760
    %v3053 = vsub.f32 %v3051, %v3052
    %v3054 = vand.u32 %v3053, 4294901760
    %3055 = vmatpush.msra.mxu0 %v3054
    %v3056 = vand.u32 %v2995, 4294901760
    %v3057 = vsub.f32 %v2995, %v3056
    %v3058 = vand.u32 %v3057, 4294901760
    %v3059 = vsub.f32 %v3057, %v3058
    %v3060 = vand.u32 %v3059, 4294901760
    %3061 = vmatpush.msra.mxu0 %v3060
    %v3062 = vand.u32 %v2994, 4294901760
    %v3063 = vsub.f32 %v2994, %v3062
    %v3064 = vand.u32 %v3063, 4294901760
    %v3065 = vsub.f32 %v3063, %v3064
    %v3066 = vand.u32 %v3065, 4294901760
    %3067 = vmatpush.msra.mxu0 %v3066
    %v3068 = vand.u32 %v3001, 4294901760
    %3069 = vmatmul.f32.gmra.mxu0 %v3068
    %v3070 = vpop.f32.mrf.mxu0
    %v3071 = vadd.f32 %v3030, %v3070
    %3072 = vdwg.mxu0
    %3073 = vmatpush.msra.mxu0 0.0
    %3074 = vmatpush.msra.mxu0 0.0
    %3075 = vmatpush.msra.mxu0 0.0
    %3076 = vmatpush.msra.mxu0 0.0
    %3077 = vmatpush.msra.mxu0 0.0
    %3078 = vmatpush.msra.mxu0 0.0
    %3079 = vmatpush.msra.mxu0 0.0
    %3080 = vmatpush.msra.mxu0 0.0
    %3081 = vmatpush.msra.mxu0 0.0
    %3082 = vmatpush.msra.mxu0 0.0
    %3083 = vmatpush.msra.mxu0 0.0
    %3084 = vmatpush.msra.mxu0 0.0
    %v3085 = vand.u32 %v2997, 4294901760
    %v3086 = vsub.f32 %v2997, %v3085
    %3087 = vmatpush.msra.mxu0 %v3086
    %v3088 = vand.u32 %v2996, 4294901760
    %v3089 = vsub.f32 %v2996, %v3088
    %3090 = vmatpush.msra.mxu0 %v3089
    %v3091 = vand.u32 %v2995, 4294901760
    %v3092 = vsub.f32 %v2995, %v3091
    %3093 = vmatpush.msra.mxu0 %v3092
    %v3094 = vand.u32 %v2994, 4294901760
    %v3095 = vsub.f32 %v2994, %v3094
    %3096 = vmatpush.msra.mxu0 %v3095
    %v3097 = vand.u32 %v3001, 4294901760
    %v3098 = vsub.f32 %v3001, %v3097
    %3099 = vmatmul.f32.gmra.mxu0 %v3098
    %v3100 = vpop.f32.mrf.mxu0
    %v3101 = vadd.f32 %v3071, %v3100
    %3102 = vdwg.mxu0
    %3103 = vmatpush.msra.mxu0 0.0
    %3104 = vmatpush.msra.mxu0 0.0
    %3105 = vmatpush.msra.mxu0 0.0
    %3106 = vmatpush.msra.mxu0 0.0
    %3107 = vmatpush.msra.mxu0 0.0
    %3108 = vmatpush.msra.mxu0 0.0
    %3109 = vmatpush.msra.mxu0 0.0
    %3110 = vmatpush.msra.mxu0 0.0
    %3111 = vmatpush.msra.mxu0 0.0
    %3112 = vmatpush.msra.mxu0 0.0
    %3113 = vmatpush.msra.mxu0 0.0
    %3114 = vmatpush.msra.mxu0 0.0
    %v3115 = vand.u32 %v2997, 4294901760
    %3116 = vmatpush.msra.mxu0 %v3115
    %v3117 = vand.u32 %v2996, 4294901760
    %3118 = vmatpush.msra.mxu0 %v3117
    %v3119 = vand.u32 %v2995, 4294901760
    %3120 = vmatpush.msra.mxu0 %v3119
    %v3121 = vand.u32 %v2994, 4294901760
    %3122 = vmatpush.msra.mxu0 %v3121
    %v3123 = vand.u32 %v3001, 4294901760
    %v3124 = vsub.f32 %v3001, %v3123
    %v3125 = vand.u32 %v3124, 4294901760
    %3126 = vmatmul.f32.gmra.mxu0 %v3125
    %v3127 = vpop.f32.mrf.mxu0
    %v3128 = vadd.f32 %v3101, %v3127
    %3129 = vdwg.mxu0
    %3130 = vmatpush.msra.mxu0 0.0
    %3131 = vmatpush.msra.mxu0 0.0
    %3132 = vmatpush.msra.mxu0 0.0
    %3133 = vmatpush.msra.mxu0 0.0
    %3134 = vmatpush.msra.mxu0 0.0
    %3135 = vmatpush.msra.mxu0 0.0
    %3136 = vmatpush.msra.mxu0 0.0
    %3137 = vmatpush.msra.mxu0 0.0
    %3138 = vmatpush.msra.mxu0 0.0
    %3139 = vmatpush.msra.mxu0 0.0
    %3140 = vmatpush.msra.mxu0 0.0
    %3141 = vmatpush.msra.mxu0 0.0
    %v3142 = vand.u32 %v2997, 4294901760
    %v3143 = vsub.f32 %v2997, %v3142
    %v3144 = vand.u32 %v3143, 4294901760
    %3145 = vmatpush.msra.mxu0 %v3144
    %v3146 = vand.u32 %v2996, 4294901760
    %v3147 = vsub.f32 %v2996, %v3146
    %v3148 = vand.u32 %v3147, 4294901760
    %3149 = vmatpush.msra.mxu0 %v3148
    %v3150 = vand.u32 %v2995, 4294901760
    %v3151 = vsub.f32 %v2995, %v3150
    %v3152 = vand.u32 %v3151, 4294901760
    %3153 = vmatpush.msra.mxu0 %v3152
    %v3154 = vand.u32 %v2994, 4294901760
    %v3155 = vsub.f32 %v2994, %v3154
    %v3156 = vand.u32 %v3155, 4294901760
    %3157 = vmatpush.msra.mxu0 %v3156
    %v3158 = vand.u32 %v3001, 4294901760
    %3159 = vmatmul.f32.gmra.mxu0 %v3158
    %v3160 = vpop.f32.mrf.mxu0
    %v3161 = vadd.f32 %v3128, %v3160
    %3162 = vdwg.mxu0
    %3163 = vmatpush.msra.mxu0 0.0
    %3164 = vmatpush.msra.mxu0 0.0
    %3165 = vmatpush.msra.mxu0 0.0
    %3166 = vmatpush.msra.mxu0 0.0
    %3167 = vmatpush.msra.mxu0 0.0
    %3168 = vmatpush.msra.mxu0 0.0
    %3169 = vmatpush.msra.mxu0 0.0
    %3170 = vmatpush.msra.mxu0 0.0
    %3171 = vmatpush.msra.mxu0 0.0
    %3172 = vmatpush.msra.mxu0 0.0
    %3173 = vmatpush.msra.mxu0 0.0
    %3174 = vmatpush.msra.mxu0 0.0
    %v3175 = vand.u32 %v2997, 4294901760
    %3176 = vmatpush.msra.mxu0 %v3175
    %v3177 = vand.u32 %v2996, 4294901760
    %3178 = vmatpush.msra.mxu0 %v3177
    %v3179 = vand.u32 %v2995, 4294901760
    %3180 = vmatpush.msra.mxu0 %v3179
    %v3181 = vand.u32 %v2994, 4294901760
    %3182 = vmatpush.msra.mxu0 %v3181
    %v3183 = vand.u32 %v3001, 4294901760
    %3184 = vmatmul.f32.gmra.mxu0 %v3183
    %v3185 = vpop.f32.mrf.mxu0
    %v3186 = vadd.f32 %v3161, %v3185
    %3187 = vdwg.mxu0
    %v3188 = vld [vmem:[#allocation2 + $0x7] sm:$0x1]
    %v3189 = vld [vmem:[#allocation2 + $0x8] sm:$0x1]
    %vm3190 = vcmask 254976
    %v3191 = vsel %vm3190, %v3186, 0.0
    %3192 = vadd.xlane.f32.xlu0 %v3191
    %v3193 = vpop.xlane.xlu0 %3192
    %v3194 = vmul.f32 %v3193, %v1468
    %v3195 = vsub.f32 %v3186, %v3194
    %v3196 = vmul.f32 %v3195, %v3195
    %v3197 = vsel %vm3190, %v3196, 0.0
    %3198 = vadd.xlane.f32.xlu0 %v3197
    %v3199 = vpop.xlane.xlu0 %3198
    %v3200 = vmul.f32 %v3199, %v1468
    %v3201 = vadd.f32 %v3200, 1e-05
    %v3202 = vrsqrt.pop %v3201
    %v3203 = vmul.f32 %v3202, %v3201
    %v3204 = vmul.f32 %v3203, %v3202
    %v3205 = vmul.f32 0.5, %v3204
    %v3206 = vsub.f32 1.5, %v3205
    %v3207 = vmul.f32 %v3202, %v3206
    %vm3208 = vweird.f32 %v3201
    %vm3209 = vweird.f32 %v3202
    %vm3210 = vmor %vm3208, %vm3209
    %v3211 = vsel %vm3210, %v3202, %v3207
    %v3212 = vmul.f32 %v3195, %v3211
    %v3213 = vperm.slane %v3188, 0
    %v3214 = vmul.f32 %v3212, %v3213
    %v3215 = vperm.slane %v3189, 0
    %v3216 = vadd.f32 %v3214, %v3215
    %v3217 = vmax.f32 %v3216, 0.0
    %3218 = vst.msk [vmem:[#allocation5] sm:$0x3] %vm3190, %v3217
    // Predicated region
    $region50: #{tpu_custom_call.1} parent=1 // pred_check
      _
    $region51: #{tpu_custom_call.1} parent=1 // pred_check_branch
      %3220 = sbr.rel (0) target = $region53
    $region52: #{tpu_custom_call.1} parent=1 // pred_region
      %3222 = vsyncadd [#allocation4], 0
      %s3224 = sshll.u32 [#allocation5], 4
      %s3225 = int_to_ptr.vmem [resolvable:$true] %s3224
      %s3226 = sshll.u32 %s11, 4
      %s3227 = int_to_ptr.hbm [resolvable:$true] %s3226
      %3229 = dma.vmem_to_hbm [thread:$0]  %s3225, 32, %s3227, [#allocation4]
    $region53: #{tpu_custom_call.1} parent=1 // pred_fallthru
      _
    // Predicated region
    $region54: #{tpu_custom_call.1} parent=1 // pred_check
      _
    $region55: #{tpu_custom_call.1} parent=1 // pred_check_branch
      %3231 = sbr.rel (0) target = $region57
    $region56: #{tpu_custom_call.1} parent=1 // pred_region
      %3233 = dma.done [#allocation4], 32
    $region57: #{tpu_custom_call.1} parent=1 // pred_fallthru
      _
    %3234 = vsyncpa [#allocation3], 1
    %3235 = vsyncpa [#allocation4], 1

</llo_original>
